<compile_context>
chip_gen: v7x
topology: tpu7x:2x2x1
jax: 0.10.0
libtpu: 0.0.40
codegen_flags: <defaults>
</compile_context>

<pallas_src>
import jax
import jax.numpy as jnp
from jax.experimental import pallas as pl
from jax.experimental.pallas import tpu as pltpu

LANE = 128


def _round_up(n, m):
    return ((n + m - 1) // m) * m


def _num_tensorcores():
    """TensorCores addressable by one pallas_call on the default device.

    v5e / v6e expose 1 TC per chip; v4 / v5p (megacore) and v7x expose 2.
    Conservative fallback is 1 (only affects the tiling heuristic, never correctness).
    """
    try:
        kind = str(getattr(jax.devices()[0], "device_kind", "")).lower()
        if ("v4" in kind) or ("v5p" in kind) or ("v7" in kind) or ("tpu7" in kind):
            return 2
    except Exception:
        pass
    return 1


def _choose_tile_m(batch, n_cores, *, max_tile=1024):
    """Generation-aware row tile.

    Small batches: exactly one grid step per TensorCore.  Large batches: cap the
    tile at `max_tile` rows and target >=4 steps per core so activation DMAs
    pipeline under compute.  Tile rounded to 128 rows (sublane/lane safe for both
    the f32 input block and the bf16 output block).
    """
    steps = n_cores
    if batch > n_cores * max_tile:
        steps = max(4 * n_cores, -(-batch // max_tile))
        steps = _round_up(steps, n_cores)
    return _round_up(-(-batch // steps), 128)


def _mlp_kernel(*refs):
    """refs = (x_ref, w1, b1, w2, b2, w3, b3, w4, b4, w5, b5, o_ref).

    x and W1 are f32 (full input fidelity); W2..W5 are bf16 (MXU-native) with f32
    accumulation via preferred_element_type.  Biases + ReLU in f32.  Output ref is a
    lane-dense bf16 slab.
    """
    x_ref, o_ref = refs[0], refs[-1]
    wb = refs[1:-1]
    n_layers = len(wb) // 2

    h = x_ref[...]                                       # f32 (tile_m, in_pad)
    for l in range(n_layers):
        w = wb[2 * l][...]                               # f32 (layer 1) / bf16 (rest)
        b = wb[2 * l + 1][...]                           # f32 (1, N_pad)
        h = jnp.dot(h.astype(w.dtype), w,
                    preferred_element_type=jnp.float32) + b
        if l < n_layers - 1:
            h = jnp.maximum(h, 0.0)                      # ReLU in f32
    o_ref[...] = h.astype(o_ref.dtype)                   # lane-dense bf16 store


def init_params(key, input_nodes, hidden=150, out=3):
    """Deterministic init mimicking torch Linear (uniform +/- 1/sqrt(fan_in))."""
    dims = [(input_nodes, hidden), (hidden, hidden), (hidden, hidden),
            (hidden, hidden), (hidden, out)]
    params = []
    for fan_in, fan_out in dims:
        key, kw, kb = jax.random.split(key, 3)
        bound = 1.0 / jnp.sqrt(fan_in)
        w = jax.random.uniform(kw, (fan_in, fan_out), jnp.float32, -bound, bound)
        b = jax.random.uniform(kb, (1, fan_out), jnp.float32, -bound, bound)
        params.append((w, b))
    return params


def pad_params(params, hidden_pad=256):
    """Zero-pad weights/biases to lane-aligned shapes.

    Layer-1 weight stays f32 (input fidelity); remaining weights stored bf16.
    Biases stay f32 (added to the f32 accumulator).
    """
    n = len(params)
    padded = []
    for i, (w, b) in enumerate(params):
        d_in, d_out = w.shape
        in_pad = _round_up(d_in, LANE) if i == 0 else hidden_pad
        out_pad = hidden_pad if i < n - 1 else _round_up(d_out, LANE)
        w_p = jnp.zeros((in_pad, out_pad), jnp.float32).at[:d_in, :d_out].set(w)
        b_p = jnp.zeros((1, out_pad), jnp.float32).at[:, :d_out].set(b)
        w_dtype = jnp.float32 if i == 0 else jnp.bfloat16
        padded.append((w_p.astype(w_dtype), b_p))
    return padded


def mlp_forward(x, padded_params, out_dim, *, tile_m=None):
    """x: (B, d_in) f32.  padded_params: output of pad_params.  Returns (B, out_dim) f32."""
    B, d_in = x.shape
    in_pad = padded_params[0][0].shape[0]
    out_pad = padded_params[-1][0].shape[1]
    if tile_m is None:
        tile_m = _choose_tile_m(B, _num_tensorcores())
    b_pad = _round_up(B, tile_m)

    # Lane-align the input features; keep f32 so layer 1 sees full input precision.
    x_p = jnp.zeros((b_pad, in_pad), jnp.float32).at[:B, :d_in].set(x)

    flat_args = [x_p]
    in_specs = [pl.BlockSpec((tile_m, in_pad), lambda i: (i, 0))]
    for w, b in padded_params:
        flat_args.extend([w, b])
        # Full-array blocks with constant index_maps -> weights/biases stay
        # VMEM-resident across all grid steps (activation-streaming pipeline).
        in_specs.append(pl.BlockSpec(w.shape, lambda i: (0, 0)))
        in_specs.append(pl.BlockSpec(b.shape, lambda i: (0, 0)))

    flops = 2 * b_pad * sum(int(w.shape[0]) * int(w.shape[1])
                            for w, _ in padded_params)
    bytes_accessed = int(
        x_p.size * x_p.dtype.itemsize
        + sum(int(w.size) * w.dtype.itemsize + int(b.size) * b.dtype.itemsize
              for w, b in padded_params)
        + b_pad * out_pad * 2)                            # bf16 output slab

    out_p = pl.pallas_call(
        _mlp_kernel,
        out_shape=jax.ShapeDtypeStruct((b_pad, out_pad), jnp.bfloat16),
        grid=(b_pad // tile_m,),
        in_specs=in_specs,
        out_specs=pl.BlockSpec((tile_m, out_pad), lambda i: (i, 0)),
        compiler_params=pltpu.CompilerParams(
            dimension_semantics=("parallel",)),           # both TCs on v7x
        cost_estimate=pl.CostEstimate(
            flops=flops, transcendentals=0, bytes_accessed=bytes_accessed),
    )(*flat_args)

    # Free slice of the lane-dense slab + upcast to f32 outside the kernel.
    return out_p[:B, :out_dim].astype(jnp.float32)


def reference_forward_f32(x, params):
    """Original all-f32 torch-module semantics."""
    h = x
    for i, (w, b) in enumerate(params):
        h = h @ w + b
        if i < len(params) - 1:
            h = jnp.maximum(h, 0.0)
    return h


def reference_forward_kernel_math(x, padded_params, d_in, out_dim):
    """Pure-JAX emulation of the kernel's exact dtype handling."""
    in_pad = padded_params[0][0].shape[0]
    h = jnp.zeros((x.shape[0], in_pad), jnp.float32).at[:, :d_in].set(x)
    for i, (w, b) in enumerate(padded_params):
        h = jnp.dot(h.astype(w.dtype), w, preferred_element_type=jnp.float32) + b
        if i < len(padded_params) - 1:
            h = jnp.maximum(h, 0.0)
    h = h.astype(jnp.bfloat16).astype(jnp.float32)        # bf16 output slab rounding
    return h[:, :out_dim]


if __name__ == "__main__":
    key = jax.random.PRNGKey(0)
    input_nodes = 20
    batch = 500          # deliberately not a tile multiple -> exercises batch padding

    kx, kp = jax.random.split(key)
    x = jax.random.normal(kx, (batch, input_nodes), jnp.float32)
    params = init_params(kp, input_nodes)
    padded = pad_params(params)

    out = mlp_forward(x, padded, out_dim=3)               # tile_m chosen per-generation
    out = jax.block_until_ready(out)
    assert out.shape == (batch, 3), out.shape

    # Check vs a reference that emulates the kernel's exact mixed-precision math
    # (tolerance loosened vs exact-match: MXU vs XLA accumulation order may differ).
    ref_kernel_math = reference_forward_kernel_math(x, padded, input_nodes, 3)
    assert jnp.allclose(out, ref_kernel_math, atol=2e-2, rtol=2e-2), \
        "mismatch vs kernel-math reference"

    # Loose check vs the original all-f32 module (bf16 layers 2..5 -> ~1e-2 drift).
    ref_f32 = reference_forward_f32(x, params)
    assert jnp.allclose(out, ref_f32, atol=5e-2, rtol=5e-2), \
        "mismatch vs f32 reference"

    print("KERNEL_OK")
</pallas_src>

<mosaic_0001>
module attributes {stable_mosaic.version = 11 : i64} {
  func.func @_mlp_kernel(%arg0: i32, %arg1: memref<512x128xf32, #tpu.memory_space<vmem>>, %arg2: memref<128x256xf32, #tpu.memory_space<vmem>>, %arg3: memref<1x256xf32, #tpu.memory_space<vmem>>, %arg4: memref<256x256xbf16, #tpu.memory_space<vmem>>, %arg5: memref<1x256xf32, #tpu.memory_space<vmem>>, %arg6: memref<256x256xbf16, #tpu.memory_space<vmem>>, %arg7: memref<1x256xf32, #tpu.memory_space<vmem>>, %arg8: memref<256x256xbf16, #tpu.memory_space<vmem>>, %arg9: memref<1x256xf32, #tpu.memory_space<vmem>>, %arg10: memref<256x128xbf16, #tpu.memory_space<vmem>>, %arg11: memref<1x128xf32, #tpu.memory_space<vmem>>, %arg12: memref<512x128xbf16, #tpu.memory_space<vmem>>) attributes {dimension_semantics = [#tpu.dimension_semantics<parallel>], iteration_bounds = array<i64: 1>, scalar_prefetch = 0 : i64, scratch_operands = 0 : i64, tpu.core_type = #tpu.core_type<tc>, window_params = [{transform_indices = @transform_0, window_bounds = array<i64: 512, 128>}, {pipeline_mode = #tpu.pipeline_mode<synchronous>, transform_indices = @transform_1, window_bounds = array<i64: 128, 256>}, {pipeline_mode = #tpu.pipeline_mode<synchronous>, transform_indices = @transform_2, window_bounds = array<i64: 1, 256>}, {pipeline_mode = #tpu.pipeline_mode<synchronous>, transform_indices = @transform_3, window_bounds = array<i64: 256, 256>}, {pipeline_mode = #tpu.pipeline_mode<synchronous>, transform_indices = @transform_4, window_bounds = array<i64: 1, 256>}, {pipeline_mode = #tpu.pipeline_mode<synchronous>, transform_indices = @transform_5, window_bounds = array<i64: 256, 256>}, {pipeline_mode = #tpu.pipeline_mode<synchronous>, transform_indices = @transform_6, window_bounds = array<i64: 1, 256>}, {pipeline_mode = #tpu.pipeline_mode<synchronous>, transform_indices = @transform_7, window_bounds = array<i64: 256, 256>}, {pipeline_mode = #tpu.pipeline_mode<synchronous>, transform_indices = @transform_8, window_bounds = array<i64: 1, 256>}, {pipeline_mode = #tpu.pipeline_mode<synchronous>, transform_indices = @transform_9, window_bounds = array<i64: 256, 128>}, {pipeline_mode = #tpu.pipeline_mode<synchronous>, transform_indices = @transform_10, window_bounds = array<i64: 1, 128>}, {transform_indices = @transform_11, window_bounds = array<i64: 512, 128>}]} {
    %c0 = arith.constant 0 : index
    %c0_0 = arith.constant 0 : index
    %0 = vector.load %arg1[%c0, %c0_0] : memref<512x128xf32, #tpu.memory_space<vmem>>, vector<512x128xf32>
    %c0_1 = arith.constant 0 : index
    %c0_2 = arith.constant 0 : index
    %1 = vector.load %arg2[%c0_1, %c0_2] : memref<128x256xf32, #tpu.memory_space<vmem>>, vector<128x256xf32>
    %c0_3 = arith.constant 0 : index
    %c0_4 = arith.constant 0 : index
    %2 = vector.load %arg3[%c0_3, %c0_4] : memref<1x256xf32, #tpu.memory_space<vmem>>, vector<1x256xf32>
    %cst = arith.constant dense<0.000000e+00> : vector<512x256xf32>
    %3 = tpu.matmul %0, %1, %cst {dimension_numbers = #tpu.dot_dimension_numbers<[1], [0], [0], [1], [0, 0, 1, 1], [], []>} : vector<512x128xf32>, vector<128x256xf32>, vector<512x256xf32> -> vector<512x256xf32>
    %4 = vector.broadcast %2 : vector<1x256xf32> to vector<512x256xf32>
    %5 = arith.addf %3, %4 : vector<512x256xf32>
    %cst_5 = arith.constant 0.000000e+00 : f32
    %6 = vector.broadcast %cst_5 : f32 to vector<512x256xf32>
    %7 = arith.maximumf %5, %6 : vector<512x256xf32>
    %c0_6 = arith.constant 0 : index
    %c0_7 = arith.constant 0 : index
    %8 = vector.load %arg4[%c0_6, %c0_7] : memref<256x256xbf16, #tpu.memory_space<vmem>>, vector<256x256xbf16>
    %c0_8 = arith.constant 0 : index
    %c0_9 = arith.constant 0 : index
    %9 = vector.load %arg5[%c0_8, %c0_9] : memref<1x256xf32, #tpu.memory_space<vmem>>, vector<1x256xf32>
    %10 = arith.truncf %7 : vector<512x256xf32> to vector<512x256xbf16>
    %cst_10 = arith.constant dense<0.000000e+00> : vector<512x256xf32>
    %11 = tpu.matmul %10, %8, %cst_10 {dimension_numbers = #tpu.dot_dimension_numbers<[1], [0], [0], [1], [0, 0, 1, 1], [], []>} : vector<512x256xbf16>, vector<256x256xbf16>, vector<512x256xf32> -> vector<512x256xf32>
    %12 = vector.broadcast %9 : vector<1x256xf32> to vector<512x256xf32>
    %13 = arith.addf %11, %12 : vector<512x256xf32>
    %cst_11 = arith.constant 0.000000e+00 : f32
    %14 = vector.broadcast %cst_11 : f32 to vector<512x256xf32>
    %15 = arith.maximumf %13, %14 : vector<512x256xf32>
    %c0_12 = arith.constant 0 : index
    %c0_13 = arith.constant 0 : index
    %16 = vector.load %arg6[%c0_12, %c0_13] : memref<256x256xbf16, #tpu.memory_space<vmem>>, vector<256x256xbf16>
    %c0_14 = arith.constant 0 : index
    %c0_15 = arith.constant 0 : index
    %17 = vector.load %arg7[%c0_14, %c0_15] : memref<1x256xf32, #tpu.memory_space<vmem>>, vector<1x256xf32>
    %18 = arith.truncf %15 : vector<512x256xf32> to vector<512x256xbf16>
    %cst_16 = arith.constant dense<0.000000e+00> : vector<512x256xf32>
    %19 = tpu.matmul %18, %16, %cst_16 {dimension_numbers = #tpu.dot_dimension_numbers<[1], [0], [0], [1], [0, 0, 1, 1], [], []>} : vector<512x256xbf16>, vector<256x256xbf16>, vector<512x256xf32> -> vector<512x256xf32>
    %20 = vector.broadcast %17 : vector<1x256xf32> to vector<512x256xf32>
    %21 = arith.addf %19, %20 : vector<512x256xf32>
    %cst_17 = arith.constant 0.000000e+00 : f32
    %22 = vector.broadcast %cst_17 : f32 to vector<512x256xf32>
    %23 = arith.maximumf %21, %22 : vector<512x256xf32>
    %c0_18 = arith.constant 0 : index
    %c0_19 = arith.constant 0 : index
    %24 = vector.load %arg8[%c0_18, %c0_19] : memref<256x256xbf16, #tpu.memory_space<vmem>>, vector<256x256xbf16>
    %c0_20 = arith.constant 0 : index
    %c0_21 = arith.constant 0 : index
    %25 = vector.load %arg9[%c0_20, %c0_21] : memref<1x256xf32, #tpu.memory_space<vmem>>, vector<1x256xf32>
    %26 = arith.truncf %23 : vector<512x256xf32> to vector<512x256xbf16>
    %cst_22 = arith.constant dense<0.000000e+00> : vector<512x256xf32>
    %27 = tpu.matmul %26, %24, %cst_22 {dimension_numbers = #tpu.dot_dimension_numbers<[1], [0], [0], [1], [0, 0, 1, 1], [], []>} : vector<512x256xbf16>, vector<256x256xbf16>, vector<512x256xf32> -> vector<512x256xf32>
    %28 = vector.broadcast %25 : vector<1x256xf32> to vector<512x256xf32>
    %29 = arith.addf %27, %28 : vector<512x256xf32>
    %cst_23 = arith.constant 0.000000e+00 : f32
    %30 = vector.broadcast %cst_23 : f32 to vector<512x256xf32>
    %31 = arith.maximumf %29, %30 : vector<512x256xf32>
    %c0_24 = arith.constant 0 : index
    %c0_25 = arith.constant 0 : index
    %32 = vector.load %arg10[%c0_24, %c0_25] : memref<256x128xbf16, #tpu.memory_space<vmem>>, vector<256x128xbf16>
    %c0_26 = arith.constant 0 : index
    %c0_27 = arith.constant 0 : index
    %33 = vector.load %arg11[%c0_26, %c0_27] : memref<1x128xf32, #tpu.memory_space<vmem>>, vector<1x128xf32>
    %34 = arith.truncf %31 : vector<512x256xf32> to vector<512x256xbf16>
    %cst_28 = arith.constant dense<0.000000e+00> : vector<512x128xf32>
    %35 = tpu.matmul %34, %32, %cst_28 {dimension_numbers = #tpu.dot_dimension_numbers<[1], [0], [0], [1], [0, 0, 1, 1], [], []>} : vector<512x256xbf16>, vector<256x128xbf16>, vector<512x128xf32> -> vector<512x128xf32>
    %36 = vector.broadcast %33 : vector<1x128xf32> to vector<512x128xf32>
    %37 = arith.addf %35, %36 : vector<512x128xf32>
    %38 = arith.truncf %37 : vector<512x128xf32> to vector<512x128xbf16>
    %c0_29 = arith.constant 0 : index
    %c0_30 = arith.constant 0 : index
    %39 = vector.load %arg12[%c0_29, %c0_30] : memref<512x128xbf16, #tpu.memory_space<vmem>>, vector<512x128xbf16>
    tpu.vector_store %arg12[%c0_29, %c0_30], %38 {strides = array<i32>} : memref<512x128xbf16, #tpu.memory_space<vmem>>, vector<512x128xbf16>,
    return
  }
  func.func @transform_0(%arg0: i32) -> (i32, i32) {
    %c0_i32 = arith.constant 0 : i32
    %c0_i32_0 = arith.constant 0 : i32
    return %arg0, %c0_i32 : i32, i32
  }
  func.func @transform_1(%arg0: i32) -> (i32, i32) {
    %c0_i32 = arith.constant 0 : i32
    %c0_i32_0 = arith.constant 0 : i32
    %c0_i32_1 = arith.constant 0 : i32
    return %c0_i32, %c0_i32_0 : i32, i32
  }
  func.func @transform_2(%arg0: i32) -> (i32, i32) {
    %c0_i32 = arith.constant 0 : i32
    %c0_i32_0 = arith.constant 0 : i32
    %c0_i32_1 = arith.constant 0 : i32
    return %c0_i32, %c0_i32_0 : i32, i32
  }
  func.func @transform_3(%arg0: i32) -> (i32, i32) {
    %c0_i32 = arith.constant 0 : i32
    %c0_i32_0 = arith.constant 0 : i32
    %c0_i32_1 = arith.constant 0 : i32
    return %c0_i32, %c0_i32_0 : i32, i32
  }
  func.func @transform_4(%arg0: i32) -> (i32, i32) {
    %c0_i32 = arith.constant 0 : i32
    %c0_i32_0 = arith.constant 0 : i32
    %c0_i32_1 = arith.constant 0 : i32
    return %c0_i32, %c0_i32_0 : i32, i32
  }
  func.func @transform_5(%arg0: i32) -> (i32, i32) {
    %c0_i32 = arith.constant 0 : i32
    %c0_i32_0 = arith.constant 0 : i32
    %c0_i32_1 = arith.constant 0 : i32
    return %c0_i32, %c0_i32_0 : i32, i32
  }
  func.func @transform_6(%arg0: i32) -> (i32, i32) {
    %c0_i32 = arith.constant 0 : i32
    %c0_i32_0 = arith.constant 0 : i32
    %c0_i32_1 = arith.constant 0 : i32
    return %c0_i32, %c0_i32_0 : i32, i32
  }
  func.func @transform_7(%arg0: i32) -> (i32, i32) {
    %c0_i32 = arith.constant 0 : i32
    %c0_i32_0 = arith.constant 0 : i32
    %c0_i32_1 = arith.constant 0 : i32
    return %c0_i32, %c0_i32_0 : i32, i32
  }
  func.func @transform_8(%arg0: i32) -> (i32, i32) {
    %c0_i32 = arith.constant 0 : i32
    %c0_i32_0 = arith.constant 0 : i32
    %c0_i32_1 = arith.constant 0 : i32
    return %c0_i32, %c0_i32_0 : i32, i32
  }
  func.func @transform_9(%arg0: i32) -> (i32, i32) {
    %c0_i32 = arith.constant 0 : i32
    %c0_i32_0 = arith.constant 0 : i32
    %c0_i32_1 = arith.constant 0 : i32
    return %c0_i32, %c0_i32_0 : i32, i32
  }
  func.func @transform_10(%arg0: i32) -> (i32, i32) {
    %c0_i32 = arith.constant 0 : i32
    %c0_i32_0 = arith.constant 0 : i32
    %c0_i32_1 = arith.constant 0 : i32
    return %c0_i32, %c0_i32_0 : i32, i32
  }
  func.func @transform_11(%arg0: i32) -> (i32, i32) {
    %c0_i32 = arith.constant 0 : i32
    %c0_i32_0 = arith.constant 0 : i32
    return %arg0, %c0_i32 : i32, i32
  }
}

</mosaic_0001>

<llo_original>
// kernel: tpu_custom_call.1
$region0: #{tpu_custom_call.1}
  #allocation0 [shape = 'u32[]', space=smem, size = 0x4, offset = 0x4, fixed_abs, tag = 'smem constant byte address 0x4 - core index']
  #allocation1 [shape = 'u32[144,128]{1,0:T(1,128)}', space=vmem, size = 0x12000, scoped, tag = 'internal scratch']
  %s0 = inlined_call_operand.hbm [shape: f32[512,128], index: 0, kind: input, shape index: {}]
  %s1 = inlined_call_operand.hbm [shape: f32[128,256], index: 1, kind: input, shape index: {}]
  %s2 = inlined_call_operand.vmem [shape: f32[1,256], index: 2, kind: input, shape index: {}]
  %s3 = inlined_call_operand.hbm [shape: bf16[256,256], index: 3, kind: input, shape index: {}]
  %s4 = inlined_call_operand.vmem [shape: f32[1,256], index: 4, kind: input, shape index: {}]
  %s5 = inlined_call_operand.hbm [shape: bf16[256,256], index: 5, kind: input, shape index: {}]
  %s6 = inlined_call_operand.vmem [shape: f32[1,256], index: 6, kind: input, shape index: {}]
  %s7 = inlined_call_operand.hbm [shape: bf16[256,256], index: 7, kind: input, shape index: {}]
  %s8 = inlined_call_operand.vmem [shape: f32[1,256], index: 8, kind: input, shape index: {}]
  %s9 = inlined_call_operand.hbm [shape: bf16[256,128], index: 9, kind: input, shape index: {}]
  %s10 = inlined_call_operand.vmem [shape: f32[1,128], index: 10, kind: input, shape index: {}]
  %s11 = inlined_call_operand.hbm [shape: bf16[512,128], index: 11, kind: output, shape index: {}]
  %s12 = sld [smem:[#allocation0]]
  $region78: #{tpu_custom_call.1} parent=0
    _
  %s14 = ssub.s32 1, %s12
  %s15 = scalar_select 0, %s14, %s12
  $region1: #{tpu_custom_call.1} parent=0
    #allocation2 [shape = 'u8[262144]{0}', space=vmem, size = 0x40000, scoped, tag = 'input window, operand 0, single buffered']
    #allocation3 [shape = 's32[1]{0}', space=sflag, size = 0x4, scoped, tag = 'scoped memory for tpu_custom_call.1']
    #allocation4 [shape = 's32[1]{0}', space=sflag, size = 0x4, scoped, tag = 'scoped memory for tpu_custom_call.1']
    #allocation5 [shape = 'u8[131072]{0}', space=vmem, size = 0x20000, scoped, tag = 'input window, operand 1, single buffered']
    #allocation6 [shape = 's32[1]{0}', space=sflag, size = 0x4, scoped, tag = 'scoped memory for tpu_custom_call.1']
    #allocation7 [shape = 'u8[131072]{0}', space=vmem, size = 0x20000, scoped, tag = 'input window, operand 3, single buffered']
    #allocation8 [shape = 'u8[131072]{0}', space=vmem, size = 0x20000, scoped, tag = 'input window, operand 5, single buffered']
    #allocation9 [shape = 's32[1]{0}', space=sflag, size = 0x4, scoped, tag = 'scoped memory for tpu_custom_call.1']
    #allocation10 [shape = 'u8[131072]{0}', space=vmem, size = 0x20000, scoped, tag = 'input window, operand 7, single buffered']
    #allocation11 [shape = 'u8[65536]{0}', space=vmem, size = 0x10000, scoped, tag = 'input window, operand 9, single buffered']
    #allocation12 [shape = 's32[1]{0}', space=sflag, size = 0x4, scoped, tag = 'scoped memory for tpu_custom_call.1']
    #allocation13 [shape = 'u8[131072]{0}', space=vmem, size = 0x20000, scoped, tag = 'output window, operand 0, single buffered']
    %16 = vsyncpa [#allocation3], 0
    %17 = vsyncpa [#allocation6], 0
    %18 = vsyncpa [#allocation9], 0
    %19 = vsyncpa [#allocation12], 0
    %20 = vsyncpa [#allocation4], 0
    // Predicated region
    $region2: #{tpu_custom_call.1} parent=1 // pred_check
      _
    $region3: #{tpu_custom_call.1} parent=1 // pred_check_branch
      %22 = sbr.rel (0) target = $region5
    $region4: #{tpu_custom_call.1} parent=1 // pred_region
      %s24 = ssub.s32 8192, 8192
      %25 = vsyncadd [#allocation3], %s24
      %s26 = sshll.u32 [#allocation2], 4
      %s27 = int_to_ptr.vmem [resolvable:$true] %s26
      %32 = dma.hbm_to_vmem [thread:$0]  %s0, 8192, %s27, [#allocation3], 128, 128, 8
    $region5: #{tpu_custom_call.1} parent=1 // pred_fallthru
      _
    // Predicated region
    $region6: #{tpu_custom_call.1} parent=1 // pred_check
      _
    $region7: #{tpu_custom_call.1} parent=1 // pred_check_branch
      %34 = sbr.rel (0) target = $region9
    $region8: #{tpu_custom_call.1} parent=1 // pred_region
      %s36 = ssub.s32 4096, 4096
      %37 = vsyncadd [#allocation6], %s36
      %s38 = sshll.u32 [#allocation5], 4
      %s39 = int_to_ptr.vmem [resolvable:$true] %s38
      %44 = dma.hbm_to_vmem [thread:$0]  %s1, 4096, %s39, [#allocation6], 256, 256, 16
    $region9: #{tpu_custom_call.1} parent=1 // pred_fallthru
      _
    // Predicated region
    $region10: #{tpu_custom_call.1} parent=1 // pred_check
      _
    $region11: #{tpu_custom_call.1} parent=1 // pred_check_branch
      %46 = sbr.rel (0) target = $region13
    $region12: #{tpu_custom_call.1} parent=1 // pred_region
      _
    $region13: #{tpu_custom_call.1} parent=1 // pred_fallthru
      _
    // Predicated region
    $region14: #{tpu_custom_call.1} parent=1 // pred_check
      _
    $region15: #{tpu_custom_call.1} parent=1 // pred_check_branch
      %48 = sbr.rel (0) target = $region17
    $region16: #{tpu_custom_call.1} parent=1 // pred_region
      %s50 = ssub.s32 4096, 4096
      %51 = vsyncadd [#allocation6], %s50
      %s52 = sshll.u32 [#allocation7], 4
      %s53 = int_to_ptr.vmem [resolvable:$true] %s52
      %58 = dma.hbm_to_vmem [thread:$0]  %s3, 4096, %s53, [#allocation6], 128, 128, 8
    $region17: #{tpu_custom_call.1} parent=1 // pred_fallthru
      _
    // Predicated region
    $region18: #{tpu_custom_call.1} parent=1 // pred_check
      _
    $region19: #{tpu_custom_call.1} parent=1 // pred_check_branch
      %60 = sbr.rel (0) target = $region21
    $region20: #{tpu_custom_call.1} parent=1 // pred_region
      _
    $region21: #{tpu_custom_call.1} parent=1 // pred_fallthru
      _
    // Predicated region
    $region22: #{tpu_custom_call.1} parent=1 // pred_check
      _
    $region23: #{tpu_custom_call.1} parent=1 // pred_check_branch
      %62 = sbr.rel (0) target = $region25
    $region24: #{tpu_custom_call.1} parent=1 // pred_region
      %s64 = ssub.s32 4096, 4096
      %65 = vsyncadd [#allocation9], %s64
      %s66 = sshll.u32 [#allocation8], 4
      %s67 = int_to_ptr.vmem [resolvable:$true] %s66
      %72 = dma.hbm_to_vmem [thread:$0]  %s5, 4096, %s67, [#allocation9], 128, 128, 8
    $region25: #{tpu_custom_call.1} parent=1 // pred_fallthru
      _
    // Predicated region
    $region26: #{tpu_custom_call.1} parent=1 // pred_check
      _
    $region27: #{tpu_custom_call.1} parent=1 // pred_check_branch
      %74 = sbr.rel (0) target = $region29
    $region28: #{tpu_custom_call.1} parent=1 // pred_region
      _
    $region29: #{tpu_custom_call.1} parent=1 // pred_fallthru
      _
    // Predicated region
    $region30: #{tpu_custom_call.1} parent=1 // pred_check
      _
    $region31: #{tpu_custom_call.1} parent=1 // pred_check_branch
      %76 = sbr.rel (0) target = $region33
    $region32: #{tpu_custom_call.1} parent=1 // pred_region
      %s78 = ssub.s32 4096, 4096
      %79 = vsyncadd [#allocation9], %s78
      %s80 = sshll.u32 [#allocation10], 4
      %s81 = int_to_ptr.vmem [resolvable:$true] %s80
      %86 = dma.hbm_to_vmem [thread:$0]  %s7, 4096, %s81, [#allocation9], 128, 128, 8
    $region33: #{tpu_custom_call.1} parent=1 // pred_fallthru
      _
    // Predicated region
    $region34: #{tpu_custom_call.1} parent=1 // pred_check
      _
    $region35: #{tpu_custom_call.1} parent=1 // pred_check_branch
      %88 = sbr.rel (0) target = $region37
    $region36: #{tpu_custom_call.1} parent=1 // pred_region
      _
    $region37: #{tpu_custom_call.1} parent=1 // pred_fallthru
      _
    // Predicated region
    $region38: #{tpu_custom_call.1} parent=1 // pred_check
      _
    $region39: #{tpu_custom_call.1} parent=1 // pred_check_branch
      %90 = sbr.rel (0) target = $region41
    $region40: #{tpu_custom_call.1} parent=1 // pred_region
      %s92 = ssub.s32 2048, 2048
      %93 = vsyncadd [#allocation12], %s92
      %s94 = sshll.u32 [#allocation11], 4
      %s95 = int_to_ptr.vmem [resolvable:$true] %s94
      %100 = dma.hbm_to_vmem [thread:$0]  %s9, 2048, %s95, [#allocation12], 64, 64, 4
    $region41: #{tpu_custom_call.1} parent=1 // pred_fallthru
      _
    // Predicated region
    $region42: #{tpu_custom_call.1} parent=1 // pred_check
      _
    $region43: #{tpu_custom_call.1} parent=1 // pred_check_branch
      %102 = sbr.rel (0) target = $region45
    $region44: #{tpu_custom_call.1} parent=1 // pred_region
      _
    $region45: #{tpu_custom_call.1} parent=1 // pred_fallthru
      _
    // Predicated region
    $region46: #{tpu_custom_call.1} parent=1 // pred_check
      _
    $region47: #{tpu_custom_call.1} parent=1 // pred_check_branch
      %104 = sbr.rel (0) target = $region49
    $region48: #{tpu_custom_call.1} parent=1 // pred_region
      %105 = dma.done [#allocation3], 8192
    $region49: #{tpu_custom_call.1} parent=1 // pred_fallthru
      _
    // Predicated region
    $region50: #{tpu_custom_call.1} parent=1 // pred_check
      _
    $region51: #{tpu_custom_call.1} parent=1 // pred_check_branch
      %107 = sbr.rel (0) target = $region53
    $region52: #{tpu_custom_call.1} parent=1 // pred_region
      %108 = dma.done [#allocation6], 4096
    $region53: #{tpu_custom_call.1} parent=1 // pred_fallthru
      _
    // Predicated region
    $region54: #{tpu_custom_call.1} parent=1 // pred_check
      _
    $region55: #{tpu_custom_call.1} parent=1 // pred_check_branch
      %110 = sbr.rel (0) target = $region57
    $region56: #{tpu_custom_call.1} parent=1 // pred_region
      %111 = dma.done [#allocation6], 4096
    $region57: #{tpu_custom_call.1} parent=1 // pred_fallthru
      _
    // Predicated region
    $region58: #{tpu_custom_call.1} parent=1 // pred_check
      _
    $region59: #{tpu_custom_call.1} parent=1 // pred_check_branch
      %113 = sbr.rel (0) target = $region61
    $region60: #{tpu_custom_call.1} parent=1 // pred_region
      %114 = dma.done [#allocation9], 4096
    $region61: #{tpu_custom_call.1} parent=1 // pred_fallthru
      _
    // Predicated region
    $region62: #{tpu_custom_call.1} parent=1 // pred_check
      _
    $region63: #{tpu_custom_call.1} parent=1 // pred_check_branch
      %116 = sbr.rel (0) target = $region65
    $region64: #{tpu_custom_call.1} parent=1 // pred_region
      %117 = dma.done [#allocation9], 4096
    $region65: #{tpu_custom_call.1} parent=1 // pred_fallthru
      _
    // Predicated region
    $region66: #{tpu_custom_call.1} parent=1 // pred_check
      _
    $region67: #{tpu_custom_call.1} parent=1 // pred_check_branch
      %119 = sbr.rel (0) target = $region69
    $region68: #{tpu_custom_call.1} parent=1 // pred_region
      %120 = dma.done [#allocation12], 2048
    $region69: #{tpu_custom_call.1} parent=1 // pred_fallthru
      _
    %v122 = vld [vmem:[#allocation2] sm:$0xff]
    %v123 = vld [vmem:[#allocation2 + $0x8] sm:$0xff]
    %v124 = vld [vmem:[#allocation2 + $0x10] sm:$0xff]
    %v125 = vld [vmem:[#allocation2 + $0x18] sm:$0xff]
    %v126 = vld [vmem:[#allocation2 + $0x20] sm:$0xff]
    %v127 = vld [vmem:[#allocation2 + $0x28] sm:$0xff]
    %v128 = vld [vmem:[#allocation2 + $0x30] sm:$0xff]
    %v129 = vld [vmem:[#allocation2 + $0x38] sm:$0xff]
    %v130 = vld [vmem:[#allocation2 + $0x40] sm:$0xff]
    %v131 = vld [vmem:[#allocation2 + $0x48] sm:$0xff]
    %v132 = vld [vmem:[#allocation2 + $0x50] sm:$0xff]
    %v133 = vld [vmem:[#allocation2 + $0x58] sm:$0xff]
    %v134 = vld [vmem:[#allocation2 + $0x60] sm:$0xff]
    %v135 = vld [vmem:[#allocation2 + $0x68] sm:$0xff]
    %v136 = vld [vmem:[#allocation2 + $0x70] sm:$0xff]
    %v137 = vld [vmem:[#allocation2 + $0x78] sm:$0xff]
    %v138 = vld [vmem:[#allocation2 + $0x80] sm:$0xff]
    %v139 = vld [vmem:[#allocation2 + $0x88] sm:$0xff]
    %v140 = vld [vmem:[#allocation2 + $0x90] sm:$0xff]
    %v141 = vld [vmem:[#allocation2 + $0x98] sm:$0xff]
    %v142 = vld [vmem:[#allocation2 + $0xa0] sm:$0xff]
    %v143 = vld [vmem:[#allocation2 + $0xa8] sm:$0xff]
    %v144 = vld [vmem:[#allocation2 + $0xb0] sm:$0xff]
    %v145 = vld [vmem:[#allocation2 + $0xb8] sm:$0xff]
    %v146 = vld [vmem:[#allocation2 + $0xc0] sm:$0xff]
    %v147 = vld [vmem:[#allocation2 + $0xc8] sm:$0xff]
    %v148 = vld [vmem:[#allocation2 + $0xd0] sm:$0xff]
    %v149 = vld [vmem:[#allocation2 + $0xd8] sm:$0xff]
    %v150 = vld [vmem:[#allocation2 + $0xe0] sm:$0xff]
    %v151 = vld [vmem:[#allocation2 + $0xe8] sm:$0xff]
    %v152 = vld [vmem:[#allocation2 + $0xf0] sm:$0xff]
    %v153 = vld [vmem:[#allocation2 + $0xf8] sm:$0xff]
    %v154 = vld [vmem:[#allocation2 + $0x100] sm:$0xff]
    %v155 = vld [vmem:[#allocation2 + $0x108] sm:$0xff]
    %v156 = vld [vmem:[#allocation2 + $0x110] sm:$0xff]
    %v157 = vld [vmem:[#allocation2 + $0x118] sm:$0xff]
    %v158 = vld [vmem:[#allocation2 + $0x120] sm:$0xff]
    %v159 = vld [vmem:[#allocation2 + $0x128] sm:$0xff]
    %v160 = vld [vmem:[#allocation2 + $0x130] sm:$0xff]
    %v161 = vld [vmem:[#allocation2 + $0x138] sm:$0xff]
    %v162 = vld [vmem:[#allocation2 + $0x140] sm:$0xff]
    %v163 = vld [vmem:[#allocation2 + $0x148] sm:$0xff]
    %v164 = vld [vmem:[#allocation2 + $0x150] sm:$0xff]
    %v165 = vld [vmem:[#allocation2 + $0x158] sm:$0xff]
    %v166 = vld [vmem:[#allocation2 + $0x160] sm:$0xff]
    %v167 = vld [vmem:[#allocation2 + $0x168] sm:$0xff]
    %v168 = vld [vmem:[#allocation2 + $0x170] sm:$0xff]
    %v169 = vld [vmem:[#allocation2 + $0x178] sm:$0xff]
    %v170 = vld [vmem:[#allocation2 + $0x180] sm:$0xff]
    %v171 = vld [vmem:[#allocation2 + $0x188] sm:$0xff]
    %v172 = vld [vmem:[#allocation2 + $0x190] sm:$0xff]
    %v173 = vld [vmem:[#allocation2 + $0x198] sm:$0xff]
    %v174 = vld [vmem:[#allocation2 + $0x1a0] sm:$0xff]
    %v175 = vld [vmem:[#allocation2 + $0x1a8] sm:$0xff]
    %v176 = vld [vmem:[#allocation2 + $0x1b0] sm:$0xff]
    %v177 = vld [vmem:[#allocation2 + $0x1b8] sm:$0xff]
    %v178 = vld [vmem:[#allocation2 + $0x1c0] sm:$0xff]
    %v179 = vld [vmem:[#allocation2 + $0x1c8] sm:$0xff]
    %v180 = vld [vmem:[#allocation2 + $0x1d0] sm:$0xff]
    %v181 = vld [vmem:[#allocation2 + $0x1d8] sm:$0xff]
    %v182 = vld [vmem:[#allocation2 + $0x1e0] sm:$0xff]
    %v183 = vld [vmem:[#allocation2 + $0x1e8] sm:$0xff]
    %v184 = vld [vmem:[#allocation2 + $0x1f0] sm:$0xff]
    %v185 = vld [vmem:[#allocation2 + $0x1f8] sm:$0xff]
    %v186 = vld [vmem:[#allocation5] sm:$0xff]
    %v187 = vld [vmem:[#allocation5 + $0x8] sm:$0xff]
    %v188 = vld [vmem:[#allocation5 + $0x10] sm:$0xff]
    %v189 = vld [vmem:[#allocation5 + $0x18] sm:$0xff]
    %v190 = vld [vmem:[#allocation5 + $0x20] sm:$0xff]
    %v191 = vld [vmem:[#allocation5 + $0x28] sm:$0xff]
    %v192 = vld [vmem:[#allocation5 + $0x30] sm:$0xff]
    %v193 = vld [vmem:[#allocation5 + $0x38] sm:$0xff]
    %v194 = vld [vmem:[#allocation5 + $0x40] sm:$0xff]
    %v195 = vld [vmem:[#allocation5 + $0x48] sm:$0xff]
    %v196 = vld [vmem:[#allocation5 + $0x50] sm:$0xff]
    %v197 = vld [vmem:[#allocation5 + $0x58] sm:$0xff]
    %v198 = vld [vmem:[#allocation5 + $0x60] sm:$0xff]
    %v199 = vld [vmem:[#allocation5 + $0x68] sm:$0xff]
    %v200 = vld [vmem:[#allocation5 + $0x70] sm:$0xff]
    %v201 = vld [vmem:[#allocation5 + $0x78] sm:$0xff]
    %v202 = vld [vmem:[#allocation5 + $0x80] sm:$0xff]
    %v203 = vld [vmem:[#allocation5 + $0x88] sm:$0xff]
    %v204 = vld [vmem:[#allocation5 + $0x90] sm:$0xff]
    %v205 = vld [vmem:[#allocation5 + $0x98] sm:$0xff]
    %v206 = vld [vmem:[#allocation5 + $0xa0] sm:$0xff]
    %v207 = vld [vmem:[#allocation5 + $0xa8] sm:$0xff]
    %v208 = vld [vmem:[#allocation5 + $0xb0] sm:$0xff]
    %v209 = vld [vmem:[#allocation5 + $0xb8] sm:$0xff]
    %v210 = vld [vmem:[#allocation5 + $0xc0] sm:$0xff]
    %v211 = vld [vmem:[#allocation5 + $0xc8] sm:$0xff]
    %v212 = vld [vmem:[#allocation5 + $0xd0] sm:$0xff]
    %v213 = vld [vmem:[#allocation5 + $0xd8] sm:$0xff]
    %v214 = vld [vmem:[#allocation5 + $0xe0] sm:$0xff]
    %v215 = vld [vmem:[#allocation5 + $0xe8] sm:$0xff]
    %v216 = vld [vmem:[#allocation5 + $0xf0] sm:$0xff]
    %v217 = vld [vmem:[#allocation5 + $0xf8] sm:$0xff]
    %v218 = vld [vmem:[%s2] sm:$0x3]
    %v220 = vlaneseq
    %v221 = vshrl.u32 %v220, 7
    %v222 = vsub.s32 0, %v221
    %v223 = vrot.slane %v218, %v222
    %v224 = vlaneseq
    %v225 = vshrl.u32 %v224, 7
    %v226 = vsub.s32 1, %v225
    %v227 = vrot.slane %v218, %v226
    %230 = vmatprep.subr.mxu0 %v187
    %231 = vmatpush1.msra.mxu0 %v186
    %232 = vmatprep.subr.mxu0 %v189
    %233 = vmatpush1.msra.mxu0 %v188
    %234 = vmatprep.subr.mxu0 %v191
    %235 = vmatpush1.msra.mxu0 %v190
    %236 = vmatprep.subr.mxu0 %v193
    %237 = vmatpush1.msra.mxu0 %v192
    %238 = vmatprep.subr.mxu0 %v195
    %239 = vmatpush1.msra.mxu0 %v194
    %240 = vmatprep.subr.mxu0 %v197
    %241 = vmatpush1.msra.mxu0 %v196
    %242 = vmatprep.subr.mxu0 %v199
    %243 = vmatpush1.msra.mxu0 %v198
    %244 = vmatprep.subr.mxu0 %v201
    %245 = vmatpush1.msra.mxu0 %v200
    %246 = vmatprep.subr.mxu0 %v203
    %247 = vmatpush1.msra.mxu0 %v202
    %248 = vmatprep.subr.mxu0 %v205
    %249 = vmatpush1.msra.mxu0 %v204
    %250 = vmatprep.subr.mxu0 %v207
    %251 = vmatpush1.msra.mxu0 %v206
    %252 = vmatprep.subr.mxu0 %v209
    %253 = vmatpush1.msra.mxu0 %v208
    %254 = vmatprep.subr.mxu0 %v211
    %255 = vmatpush1.msra.mxu0 %v210
    %256 = vmatprep.subr.mxu0 %v213
    %257 = vmatpush1.msra.mxu0 %v212
    %258 = vmatprep.subr.mxu0 %v215
    %259 = vmatpush1.msra.mxu0 %v214
    %260 = vmatprep.subr.mxu0 %v217
    %261 = vmatpush1.msra.mxu0 %v216
    %262 = vmatprep.subr.mxu0 0.0
    %263 = vmatpush1.msra.mxu0 0.0
    %264 = vmatprep.subr.mxu0 0.0
    %265 = vmatpush1.msra.mxu0 0.0
    %266 = vmatprep.subr.mxu0 0.0
    %267 = vmatpush1.msra.mxu0 0.0
    %268 = vmatprep.subr.mxu0 0.0
    %269 = vmatpush1.msra.mxu0 0.0
    %270 = vmatprep.subr.mxu0 0.0
    %271 = vmatpush1.msra.mxu0 0.0
    %272 = vmatprep.subr.mxu0 0.0
    %273 = vmatpush1.msra.mxu0 0.0
    %274 = vmatprep.subr.mxu0 0.0
    %275 = vmatpush1.msra.mxu0 0.0
    %276 = vmatprep.subr.mxu0 0.0
    %277 = vmatpush1.msra.mxu0 0.0
    %278 = vmatprep.subr.mxu0 0.0
    %279 = vmatpush1.msra.mxu0 0.0
    %280 = vmatprep.subr.mxu0 0.0
    %281 = vmatpush1.msra.mxu0 0.0
    %282 = vmatprep.subr.mxu0 0.0
    %283 = vmatpush1.msra.mxu0 0.0
    %284 = vmatprep.subr.mxu0 0.0
    %285 = vmatpush1.msra.mxu0 0.0
    %286 = vmatprep.subr.mxu0 0.0
    %287 = vmatpush1.msra.mxu0 0.0
    %288 = vmatprep.subr.mxu0 0.0
    %289 = vmatpush1.msra.mxu0 0.0
    %290 = vmatprep.subr.mxu0 0.0
    %291 = vmatpush1.msra.mxu0 0.0
    %292 = vmatprep.subr.mxu0 0.0
    %293 = vmatpush1.msra.mxu0 0.0
    %294 = vmatprep.mubr.f32.mxu0 0.0
    %295 = vmatmul.mubr.f32.gmra.mrb[0].mxu0 %v122
    %v296 = vpop.f32.mrb[0].mxu0
    %v297 = vadd.f32 %v223, %v296
    %v298 = vpop.f32.mrb[0].mxu0
    %v299 = vadd.f32 %v227, %v298
    %300 = vmatprep.mubr.f32.mxu0 0.0
    %301 = vmatmul.mubr.f32.gmra.mrb[0].mxu0 %v123
    %v302 = vpop.f32.mrb[0].mxu0
    %v303 = vadd.f32 %v223, %v302
    %v304 = vpop.f32.mrb[0].mxu0
    %v305 = vadd.f32 %v227, %v304
    %306 = vmatprep.mubr.f32.mxu0 0.0
    %307 = vmatmul.mubr.f32.gmra.mrb[0].mxu0 %v124
    %v308 = vpop.f32.mrb[0].mxu0
    %v309 = vadd.f32 %v223, %v308
    %v310 = vpop.f32.mrb[0].mxu0
    %v311 = vadd.f32 %v227, %v310
    %312 = vmatprep.mubr.f32.mxu0 0.0
    %313 = vmatmul.mubr.f32.gmra.mrb[0].mxu0 %v125
    %v314 = vpop.f32.mrb[0].mxu0
    %v315 = vadd.f32 %v223, %v314
    %v316 = vpop.f32.mrb[0].mxu0
    %v317 = vadd.f32 %v227, %v316
    %318 = vmatprep.mubr.f32.mxu0 0.0
    %319 = vmatmul.mubr.f32.gmra.mrb[0].mxu0 %v126
    %v320 = vpop.f32.mrb[0].mxu0
    %v321 = vadd.f32 %v223, %v320
    %v322 = vpop.f32.mrb[0].mxu0
    %v323 = vadd.f32 %v227, %v322
    %324 = vmatprep.mubr.f32.mxu0 0.0
    %325 = vmatmul.mubr.f32.gmra.mrb[0].mxu0 %v127
    %v326 = vpop.f32.mrb[0].mxu0
    %v327 = vadd.f32 %v223, %v326
    %v328 = vpop.f32.mrb[0].mxu0
    %v329 = vadd.f32 %v227, %v328
    %330 = vmatprep.mubr.f32.mxu0 0.0
    %331 = vmatmul.mubr.f32.gmra.mrb[0].mxu0 %v128
    %v332 = vpop.f32.mrb[0].mxu0
    %v333 = vadd.f32 %v223, %v332
    %v334 = vpop.f32.mrb[0].mxu0
    %v335 = vadd.f32 %v227, %v334
    %336 = vmatprep.mubr.f32.mxu0 0.0
    %337 = vmatmul.mubr.f32.gmra.mrb[0].mxu0 %v129
    %v338 = vpop.f32.mrb[0].mxu0
    %v339 = vadd.f32 %v223, %v338
    %v340 = vpop.f32.mrb[0].mxu0
    %v341 = vadd.f32 %v227, %v340
    %342 = vmatprep.mubr.f32.mxu0 0.0
    %343 = vmatmul.mubr.f32.gmra.mrb[0].mxu0 %v130
    %v344 = vpop.f32.mrb[0].mxu0
    %v345 = vadd.f32 %v223, %v344
    %v346 = vpop.f32.mrb[0].mxu0
    %v347 = vadd.f32 %v227, %v346
    %348 = vmatprep.mubr.f32.mxu0 0.0
    %349 = vmatmul.mubr.f32.gmra.mrb[0].mxu0 %v131
    %v350 = vpop.f32.mrb[0].mxu0
    %v351 = vadd.f32 %v223, %v350
    %v352 = vpop.f32.mrb[0].mxu0
    %v353 = vadd.f32 %v227, %v352
    %354 = vmatprep.mubr.f32.mxu0 0.0
    %355 = vmatmul.mubr.f32.gmra.mrb[0].mxu0 %v132
    %v356 = vpop.f32.mrb[0].mxu0
    %v357 = vadd.f32 %v223, %v356
    %v358 = vpop.f32.mrb[0].mxu0
    %v359 = vadd.f32 %v227, %v358
    %360 = vmatprep.mubr.f32.mxu0 0.0
    %361 = vmatmul.mubr.f32.gmra.mrb[0].mxu0 %v133
    %v362 = vpop.f32.mrb[0].mxu0
    %v363 = vadd.f32 %v223, %v362
    %v364 = vpop.f32.mrb[0].mxu0
    %v365 = vadd.f32 %v227, %v364
    %366 = vmatprep.mubr.f32.mxu0 0.0
    %367 = vmatmul.mubr.f32.gmra.mrb[0].mxu0 %v134
    %v368 = vpop.f32.mrb[0].mxu0
    %v369 = vadd.f32 %v223, %v368
    %v370 = vpop.f32.mrb[0].mxu0
    %v371 = vadd.f32 %v227, %v370
    %372 = vmatprep.mubr.f32.mxu0 0.0
    %373 = vmatmul.mubr.f32.gmra.mrb[0].mxu0 %v135
    %v374 = vpop.f32.mrb[0].mxu0
    %v375 = vadd.f32 %v223, %v374
    %v376 = vpop.f32.mrb[0].mxu0
    %v377 = vadd.f32 %v227, %v376
    %378 = vmatprep.mubr.f32.mxu0 0.0
    %379 = vmatmul.mubr.f32.gmra.mrb[0].mxu0 %v136
    %v380 = vpop.f32.mrb[0].mxu0
    %v381 = vadd.f32 %v223, %v380
    %v382 = vpop.f32.mrb[0].mxu0
    %v383 = vadd.f32 %v227, %v382
    %384 = vmatprep.mubr.f32.mxu0 0.0
    %385 = vmatmul.mubr.f32.gmra.mrb[0].mxu0 %v137
    %v386 = vpop.f32.mrb[0].mxu0
    %v387 = vadd.f32 %v223, %v386
    %v388 = vpop.f32.mrb[0].mxu0
    %v389 = vadd.f32 %v227, %v388
    %390 = vmatprep.mubr.f32.mxu0 0.0
    %391 = vmatmul.mubr.f32.gmra.mrb[0].mxu0 %v138
    %v392 = vpop.f32.mrb[0].mxu0
    %v393 = vadd.f32 %v223, %v392
    %v394 = vpop.f32.mrb[0].mxu0
    %v395 = vadd.f32 %v227, %v394
    %396 = vmatprep.mubr.f32.mxu0 0.0
    %397 = vmatmul.mubr.f32.gmra.mrb[0].mxu0 %v139
    %v398 = vpop.f32.mrb[0].mxu0
    %v399 = vadd.f32 %v223, %v398
    %v400 = vpop.f32.mrb[0].mxu0
    %v401 = vadd.f32 %v227, %v400
    %402 = vmatprep.mubr.f32.mxu0 0.0
    %403 = vmatmul.mubr.f32.gmra.mrb[0].mxu0 %v140
    %v404 = vpop.f32.mrb[0].mxu0
    %v405 = vadd.f32 %v223, %v404
    %v406 = vpop.f32.mrb[0].mxu0
    %v407 = vadd.f32 %v227, %v406
    %408 = vmatprep.mubr.f32.mxu0 0.0
    %409 = vmatmul.mubr.f32.gmra.mrb[0].mxu0 %v141
    %v410 = vpop.f32.mrb[0].mxu0
    %v411 = vadd.f32 %v223, %v410
    %v412 = vpop.f32.mrb[0].mxu0
    %v413 = vadd.f32 %v227, %v412
    %414 = vmatprep.mubr.f32.mxu0 0.0
    %415 = vmatmul.mubr.f32.gmra.mrb[0].mxu0 %v142
    %v416 = vpop.f32.mrb[0].mxu0
    %v417 = vadd.f32 %v223, %v416
    %v418 = vpop.f32.mrb[0].mxu0
    %v419 = vadd.f32 %v227, %v418
    %420 = vmatprep.mubr.f32.mxu0 0.0
    %421 = vmatmul.mubr.f32.gmra.mrb[0].mxu0 %v143
    %v422 = vpop.f32.mrb[0].mxu0
    %v423 = vadd.f32 %v223, %v422
    %v424 = vpop.f32.mrb[0].mxu0
    %v425 = vadd.f32 %v227, %v424
    %426 = vmatprep.mubr.f32.mxu0 0.0
    %427 = vmatmul.mubr.f32.gmra.mrb[0].mxu0 %v144
    %v428 = vpop.f32.mrb[0].mxu0
    %v429 = vadd.f32 %v223, %v428
    %v430 = vpop.f32.mrb[0].mxu0
    %v431 = vadd.f32 %v227, %v430
    %432 = vmatprep.mubr.f32.mxu0 0.0
    %433 = vmatmul.mubr.f32.gmra.mrb[0].mxu0 %v145
    %v434 = vpop.f32.mrb[0].mxu0
    %v435 = vadd.f32 %v223, %v434
    %v436 = vpop.f32.mrb[0].mxu0
    %v437 = vadd.f32 %v227, %v436
    %438 = vmatprep.mubr.f32.mxu0 0.0
    %439 = vmatmul.mubr.f32.gmra.mrb[0].mxu0 %v146
    %v440 = vpop.f32.mrb[0].mxu0
    %v441 = vadd.f32 %v223, %v440
    %v442 = vpop.f32.mrb[0].mxu0
    %v443 = vadd.f32 %v227, %v442
    %444 = vmatprep.mubr.f32.mxu0 0.0
    %445 = vmatmul.mubr.f32.gmra.mrb[0].mxu0 %v147
    %v446 = vpop.f32.mrb[0].mxu0
    %v447 = vadd.f32 %v223, %v446
    %v448 = vpop.f32.mrb[0].mxu0
    %v449 = vadd.f32 %v227, %v448
    %450 = vmatprep.mubr.f32.mxu0 0.0
    %451 = vmatmul.mubr.f32.gmra.mrb[0].mxu0 %v148
    %v452 = vpop.f32.mrb[0].mxu0
    %v453 = vadd.f32 %v223, %v452
    %v454 = vpop.f32.mrb[0].mxu0
    %v455 = vadd.f32 %v227, %v454
    %456 = vmatprep.mubr.f32.mxu0 0.0
    %457 = vmatmul.mubr.f32.gmra.mrb[0].mxu0 %v149
    %v458 = vpop.f32.mrb[0].mxu0
    %v459 = vadd.f32 %v223, %v458
    %v460 = vpop.f32.mrb[0].mxu0
    %v461 = vadd.f32 %v227, %v460
    %462 = vmatprep.mubr.f32.mxu0 0.0
    %463 = vmatmul.mubr.f32.gmra.mrb[0].mxu0 %v150
    %v464 = vpop.f32.mrb[0].mxu0
    %v465 = vadd.f32 %v223, %v464
    %v466 = vpop.f32.mrb[0].mxu0
    %v467 = vadd.f32 %v227, %v466
    %468 = vmatprep.mubr.f32.mxu0 0.0
    %469 = vmatmul.mubr.f32.gmra.mrb[0].mxu0 %v151
    %v470 = vpop.f32.mrb[0].mxu0
    %v471 = vadd.f32 %v223, %v470
    %v472 = vpop.f32.mrb[0].mxu0
    %v473 = vadd.f32 %v227, %v472
    %474 = vmatprep.mubr.f32.mxu0 0.0
    %475 = vmatmul.mubr.f32.gmra.mrb[0].mxu0 %v152
    %v476 = vpop.f32.mrb[0].mxu0
    %v477 = vadd.f32 %v223, %v476
    %v478 = vpop.f32.mrb[0].mxu0
    %v479 = vadd.f32 %v227, %v478
    %480 = vmatprep.mubr.f32.mxu0 0.0
    %481 = vmatmul.mubr.f32.gmra.mrb[0].mxu0 %v153
    %v482 = vpop.f32.mrb[0].mxu0
    %v483 = vadd.f32 %v223, %v482
    %v484 = vpop.f32.mrb[0].mxu0
    %v485 = vadd.f32 %v227, %v484
    %486 = vmatprep.mubr.f32.mxu0 0.0
    %487 = vmatmul.mubr.f32.gmra.mrb[0].mxu0 %v154
    %v488 = vpop.f32.mrb[0].mxu0
    %v489 = vadd.f32 %v223, %v488
    %v490 = vpop.f32.mrb[0].mxu0
    %v491 = vadd.f32 %v227, %v490
    %492 = vmatprep.mubr.f32.mxu0 0.0
    %493 = vmatmul.mubr.f32.gmra.mrb[0].mxu0 %v155
    %v494 = vpop.f32.mrb[0].mxu0
    %v495 = vadd.f32 %v223, %v494
    %v496 = vpop.f32.mrb[0].mxu0
    %v497 = vadd.f32 %v227, %v496
    %498 = vmatprep.mubr.f32.mxu0 0.0
    %499 = vmatmul.mubr.f32.gmra.mrb[0].mxu0 %v156
    %v500 = vpop.f32.mrb[0].mxu0
    %v501 = vadd.f32 %v223, %v500
    %v502 = vpop.f32.mrb[0].mxu0
    %v503 = vadd.f32 %v227, %v502
    %504 = vmatprep.mubr.f32.mxu0 0.0
    %505 = vmatmul.mubr.f32.gmra.mrb[0].mxu0 %v157
    %v506 = vpop.f32.mrb[0].mxu0
    %v507 = vadd.f32 %v223, %v506
    %v508 = vpop.f32.mrb[0].mxu0
    %v509 = vadd.f32 %v227, %v508
    %510 = vmatprep.mubr.f32.mxu0 0.0
    %511 = vmatmul.mubr.f32.gmra.mrb[0].mxu0 %v158
    %v512 = vpop.f32.mrb[0].mxu0
    %v513 = vadd.f32 %v223, %v512
    %v514 = vpop.f32.mrb[0].mxu0
    %v515 = vadd.f32 %v227, %v514
    %516 = vmatprep.mubr.f32.mxu0 0.0
    %517 = vmatmul.mubr.f32.gmra.mrb[0].mxu0 %v159
    %v518 = vpop.f32.mrb[0].mxu0
    %v519 = vadd.f32 %v223, %v518
    %v520 = vpop.f32.mrb[0].mxu0
    %v521 = vadd.f32 %v227, %v520
    %522 = vmatprep.mubr.f32.mxu0 0.0
    %523 = vmatmul.mubr.f32.gmra.mrb[0].mxu0 %v160
    %v524 = vpop.f32.mrb[0].mxu0
    %v525 = vadd.f32 %v223, %v524
    %v526 = vpop.f32.mrb[0].mxu0
    %v527 = vadd.f32 %v227, %v526
    %528 = vmatprep.mubr.f32.mxu0 0.0
    %529 = vmatmul.mubr.f32.gmra.mrb[0].mxu0 %v161
    %v530 = vpop.f32.mrb[0].mxu0
    %v531 = vadd.f32 %v223, %v530
    %v532 = vpop.f32.mrb[0].mxu0
    %v533 = vadd.f32 %v227, %v532
    %534 = vmatprep.mubr.f32.mxu0 0.0
    %535 = vmatmul.mubr.f32.gmra.mrb[0].mxu0 %v162
    %v536 = vpop.f32.mrb[0].mxu0
    %v537 = vadd.f32 %v223, %v536
    %v538 = vpop.f32.mrb[0].mxu0
    %v539 = vadd.f32 %v227, %v538
    %540 = vmatprep.mubr.f32.mxu0 0.0
    %541 = vmatmul.mubr.f32.gmra.mrb[0].mxu0 %v163
    %v542 = vpop.f32.mrb[0].mxu0
    %v543 = vadd.f32 %v223, %v542
    %v544 = vpop.f32.mrb[0].mxu0
    %v545 = vadd.f32 %v227, %v544
    %546 = vmatprep.mubr.f32.mxu0 0.0
    %547 = vmatmul.mubr.f32.gmra.mrb[0].mxu0 %v164
    %v548 = vpop.f32.mrb[0].mxu0
    %v549 = vadd.f32 %v223, %v548
    %v550 = vpop.f32.mrb[0].mxu0
    %v551 = vadd.f32 %v227, %v550
    %552 = vmatprep.mubr.f32.mxu0 0.0
    %553 = vmatmul.mubr.f32.gmra.mrb[0].mxu0 %v165
    %v554 = vpop.f32.mrb[0].mxu0
    %v555 = vadd.f32 %v223, %v554
    %v556 = vpop.f32.mrb[0].mxu0
    %v557 = vadd.f32 %v227, %v556
    %558 = vmatprep.mubr.f32.mxu0 0.0
    %559 = vmatmul.mubr.f32.gmra.mrb[0].mxu0 %v166
    %v560 = vpop.f32.mrb[0].mxu0
    %v561 = vadd.f32 %v223, %v560
    %v562 = vpop.f32.mrb[0].mxu0
    %v563 = vadd.f32 %v227, %v562
    %564 = vmatprep.mubr.f32.mxu0 0.0
    %565 = vmatmul.mubr.f32.gmra.mrb[0].mxu0 %v167
    %v566 = vpop.f32.mrb[0].mxu0
    %v567 = vadd.f32 %v223, %v566
    %v568 = vpop.f32.mrb[0].mxu0
    %v569 = vadd.f32 %v227, %v568
    %570 = vmatprep.mubr.f32.mxu0 0.0
    %571 = vmatmul.mubr.f32.gmra.mrb[0].mxu0 %v168
    %v572 = vpop.f32.mrb[0].mxu0
    %v573 = vadd.f32 %v223, %v572
    %v574 = vpop.f32.mrb[0].mxu0
    %v575 = vadd.f32 %v227, %v574
    %576 = vmatprep.mubr.f32.mxu0 0.0
    %577 = vmatmul.mubr.f32.gmra.mrb[0].mxu0 %v169
    %v578 = vpop.f32.mrb[0].mxu0
    %v579 = vadd.f32 %v223, %v578
    %v580 = vpop.f32.mrb[0].mxu0
    %v581 = vadd.f32 %v227, %v580
    %582 = vmatprep.mubr.f32.mxu0 0.0
    %583 = vmatmul.mubr.f32.gmra.mrb[0].mxu0 %v170
    %v584 = vpop.f32.mrb[0].mxu0
    %v585 = vadd.f32 %v223, %v584
    %v586 = vpop.f32.mrb[0].mxu0
    %v587 = vadd.f32 %v227, %v586
    %588 = vmatprep.mubr.f32.mxu0 0.0
    %589 = vmatmul.mubr.f32.gmra.mrb[0].mxu0 %v171
    %v590 = vpop.f32.mrb[0].mxu0
    %v591 = vadd.f32 %v223, %v590
    %v592 = vpop.f32.mrb[0].mxu0
    %v593 = vadd.f32 %v227, %v592
    %594 = vmatprep.mubr.f32.mxu0 0.0
    %595 = vmatmul.mubr.f32.gmra.mrb[0].mxu0 %v172
    %v596 = vpop.f32.mrb[0].mxu0
    %v597 = vadd.f32 %v223, %v596
    %v598 = vpop.f32.mrb[0].mxu0
    %v599 = vadd.f32 %v227, %v598
    %600 = vmatprep.mubr.f32.mxu0 0.0
    %601 = vmatmul.mubr.f32.gmra.mrb[0].mxu0 %v173
    %v602 = vpop.f32.mrb[0].mxu0
    %v603 = vadd.f32 %v223, %v602
    %v604 = vpop.f32.mrb[0].mxu0
    %v605 = vadd.f32 %v227, %v604
    %606 = vmatprep.mubr.f32.mxu0 0.0
    %607 = vmatmul.mubr.f32.gmra.mrb[0].mxu0 %v174
    %v608 = vpop.f32.mrb[0].mxu0
    %v609 = vadd.f32 %v223, %v608
    %v610 = vpop.f32.mrb[0].mxu0
    %v611 = vadd.f32 %v227, %v610
    %612 = vmatprep.mubr.f32.mxu0 0.0
    %613 = vmatmul.mubr.f32.gmra.mrb[0].mxu0 %v175
    %v614 = vpop.f32.mrb[0].mxu0
    %v615 = vadd.f32 %v223, %v614
    %v616 = vpop.f32.mrb[0].mxu0
    %v617 = vadd.f32 %v227, %v616
    %618 = vmatprep.mubr.f32.mxu0 0.0
    %619 = vmatmul.mubr.f32.gmra.mrb[0].mxu0 %v176
    %v620 = vpop.f32.mrb[0].mxu0
    %v621 = vadd.f32 %v223, %v620
    %v622 = vpop.f32.mrb[0].mxu0
    %v623 = vadd.f32 %v227, %v622
    %624 = vmatprep.mubr.f32.mxu0 0.0
    %625 = vmatmul.mubr.f32.gmra.mrb[0].mxu0 %v177
    %v626 = vpop.f32.mrb[0].mxu0
    %v627 = vadd.f32 %v223, %v626
    %v628 = vpop.f32.mrb[0].mxu0
    %v629 = vadd.f32 %v227, %v628
    %630 = vmatprep.mubr.f32.mxu0 0.0
    %631 = vmatmul.mubr.f32.gmra.mrb[0].mxu0 %v178
    %v632 = vpop.f32.mrb[0].mxu0
    %v633 = vadd.f32 %v223, %v632
    %v634 = vpop.f32.mrb[0].mxu0
    %v635 = vadd.f32 %v227, %v634
    %636 = vmatprep.mubr.f32.mxu0 0.0
    %637 = vmatmul.mubr.f32.gmra.mrb[0].mxu0 %v179
    %v638 = vpop.f32.mrb[0].mxu0
    %v639 = vadd.f32 %v223, %v638
    %v640 = vpop.f32.mrb[0].mxu0
    %v641 = vadd.f32 %v227, %v640
    %642 = vmatprep.mubr.f32.mxu0 0.0
    %643 = vmatmul.mubr.f32.gmra.mrb[0].mxu0 %v180
    %v644 = vpop.f32.mrb[0].mxu0
    %v645 = vadd.f32 %v223, %v644
    %v646 = vpop.f32.mrb[0].mxu0
    %v647 = vadd.f32 %v227, %v646
    %648 = vmatprep.mubr.f32.mxu0 0.0
    %649 = vmatmul.mubr.f32.gmra.mrb[0].mxu0 %v181
    %v650 = vpop.f32.mrb[0].mxu0
    %v651 = vadd.f32 %v223, %v650
    %v652 = vpop.f32.mrb[0].mxu0
    %v653 = vadd.f32 %v227, %v652
    %654 = vmatprep.mubr.f32.mxu0 0.0
    %655 = vmatmul.mubr.f32.gmra.mrb[0].mxu0 %v182
    %v656 = vpop.f32.mrb[0].mxu0
    %v657 = vadd.f32 %v223, %v656
    %v658 = vpop.f32.mrb[0].mxu0
    %v659 = vadd.f32 %v227, %v658
    %660 = vmatprep.mubr.f32.mxu0 0.0
    %661 = vmatmul.mubr.f32.gmra.mrb[0].mxu0 %v183
    %v662 = vpop.f32.mrb[0].mxu0
    %v663 = vadd.f32 %v223, %v662
    %v664 = vpop.f32.mrb[0].mxu0
    %v665 = vadd.f32 %v227, %v664
    %666 = vmatprep.mubr.f32.mxu0 0.0
    %667 = vmatmul.mubr.f32.gmra.mrb[0].mxu0 %v184
    %v668 = vpop.f32.mrb[0].mxu0
    %v669 = vadd.f32 %v223, %v668
    %v670 = vpop.f32.mrb[0].mxu0
    %v671 = vadd.f32 %v227, %v670
    %672 = vmatprep.mubr.f32.mxu0 0.0
    %673 = vmatmul.mubr.f32.gmra.mrb[0].mxu0 %v185
    %v674 = vpop.f32.mrb[0].mxu0
    %v675 = vadd.f32 %v223, %v674
    %v676 = vpop.f32.mrb[0].mxu0
    %v677 = vadd.f32 %v227, %v676
    %678 = vdwg.mxu0
    %v679 = vmax.f32 %v297, 0.0
    %v680 = vmax.f32 %v299, 0.0
    %v681 = vmax.f32 %v303, 0.0
    %v682 = vmax.f32 %v305, 0.0
    %v683 = vmax.f32 %v309, 0.0
    %v684 = vmax.f32 %v311, 0.0
    %v685 = vmax.f32 %v315, 0.0
    %v686 = vmax.f32 %v317, 0.0
    %v687 = vmax.f32 %v321, 0.0
    %v688 = vmax.f32 %v323, 0.0
    %v689 = vmax.f32 %v327, 0.0
    %v690 = vmax.f32 %v329, 0.0
    %v691 = vmax.f32 %v333, 0.0
    %v692 = vmax.f32 %v335, 0.0
    %v693 = vmax.f32 %v339, 0.0
    %v694 = vmax.f32 %v341, 0.0
    %v695 = vmax.f32 %v345, 0.0
    %v696 = vmax.f32 %v347, 0.0
    %v697 = vmax.f32 %v351, 0.0
    %v698 = vmax.f32 %v353, 0.0
    %v699 = vmax.f32 %v357, 0.0
    %v700 = vmax.f32 %v359, 0.0
    %v701 = vmax.f32 %v363, 0.0
    %v702 = vmax.f32 %v365, 0.0
    %v703 = vmax.f32 %v369, 0.0
    %v704 = vmax.f32 %v371, 0.0
    %v705 = vmax.f32 %v375, 0.0
    %v706 = vmax.f32 %v377, 0.0
    %v707 = vmax.f32 %v381, 0.0
    %v708 = vmax.f32 %v383, 0.0
    %v709 = vmax.f32 %v387, 0.0
    %v710 = vmax.f32 %v389, 0.0
    %v711 = vmax.f32 %v393, 0.0
    %v712 = vmax.f32 %v395, 0.0
    %v713 = vmax.f32 %v399, 0.0
    %v714 = vmax.f32 %v401, 0.0
    %v715 = vmax.f32 %v405, 0.0
    %v716 = vmax.f32 %v407, 0.0
    %v717 = vmax.f32 %v411, 0.0
    %v718 = vmax.f32 %v413, 0.0
    %v719 = vmax.f32 %v417, 0.0
    %v720 = vmax.f32 %v419, 0.0
    %v721 = vmax.f32 %v423, 0.0
    %v722 = vmax.f32 %v425, 0.0
    %v723 = vmax.f32 %v429, 0.0
    %v724 = vmax.f32 %v431, 0.0
    %v725 = vmax.f32 %v435, 0.0
    %v726 = vmax.f32 %v437, 0.0
    %v727 = vmax.f32 %v441, 0.0
    %v728 = vmax.f32 %v443, 0.0
    %v729 = vmax.f32 %v447, 0.0
    %v730 = vmax.f32 %v449, 0.0
    %v731 = vmax.f32 %v453, 0.0
    %v732 = vmax.f32 %v455, 0.0
    %v733 = vmax.f32 %v459, 0.0
    %v734 = vmax.f32 %v461, 0.0
    %v735 = vmax.f32 %v465, 0.0
    %v736 = vmax.f32 %v467, 0.0
    %v737 = vmax.f32 %v471, 0.0
    %v738 = vmax.f32 %v473, 0.0
    %v739 = vmax.f32 %v477, 0.0
    %v740 = vmax.f32 %v479, 0.0
    %v741 = vmax.f32 %v483, 0.0
    %v742 = vmax.f32 %v485, 0.0
    %v743 = vmax.f32 %v489, 0.0
    %v744 = vmax.f32 %v491, 0.0
    %v745 = vmax.f32 %v495, 0.0
    %v746 = vmax.f32 %v497, 0.0
    %v747 = vmax.f32 %v501, 0.0
    %v748 = vmax.f32 %v503, 0.0
    %v749 = vmax.f32 %v507, 0.0
    %v750 = vmax.f32 %v509, 0.0
    %v751 = vmax.f32 %v513, 0.0
    %v752 = vmax.f32 %v515, 0.0
    %v753 = vmax.f32 %v519, 0.0
    %v754 = vmax.f32 %v521, 0.0
    %v755 = vmax.f32 %v525, 0.0
    %v756 = vmax.f32 %v527, 0.0
    %v757 = vmax.f32 %v531, 0.0
    %v758 = vmax.f32 %v533, 0.0
    %v759 = vmax.f32 %v537, 0.0
    %v760 = vmax.f32 %v539, 0.0
    %v761 = vmax.f32 %v543, 0.0
    %v762 = vmax.f32 %v545, 0.0
    %v763 = vmax.f32 %v549, 0.0
    %v764 = vmax.f32 %v551, 0.0
    %v765 = vmax.f32 %v555, 0.0
    %v766 = vmax.f32 %v557, 0.0
    %v767 = vmax.f32 %v561, 0.0
    %v768 = vmax.f32 %v563, 0.0
    %v769 = vmax.f32 %v567, 0.0
    %v770 = vmax.f32 %v569, 0.0
    %v771 = vmax.f32 %v573, 0.0
    %v772 = vmax.f32 %v575, 0.0
    %v773 = vmax.f32 %v579, 0.0
    %v774 = vmax.f32 %v581, 0.0
    %v775 = vmax.f32 %v585, 0.0
    %v776 = vmax.f32 %v587, 0.0
    %v777 = vmax.f32 %v591, 0.0
    %v778 = vmax.f32 %v593, 0.0
    %v779 = vmax.f32 %v597, 0.0
    %v780 = vmax.f32 %v599, 0.0
    %v781 = vmax.f32 %v603, 0.0
    %v782 = vmax.f32 %v605, 0.0
    %v783 = vmax.f32 %v609, 0.0
    %v784 = vmax.f32 %v611, 0.0
    %v785 = vmax.f32 %v615, 0.0
    %v786 = vmax.f32 %v617, 0.0
    %v787 = vmax.f32 %v621, 0.0
    %v788 = vmax.f32 %v623, 0.0
    %v789 = vmax.f32 %v627, 0.0
    %v790 = vmax.f32 %v629, 0.0
    %v791 = vmax.f32 %v633, 0.0
    %v792 = vmax.f32 %v635, 0.0
    %v793 = vmax.f32 %v639, 0.0
    %v794 = vmax.f32 %v641, 0.0
    %v795 = vmax.f32 %v645, 0.0
    %v796 = vmax.f32 %v647, 0.0
    %v797 = vmax.f32 %v651, 0.0
    %v798 = vmax.f32 %v653, 0.0
    %v799 = vmax.f32 %v657, 0.0
    %v800 = vmax.f32 %v659, 0.0
    %v801 = vmax.f32 %v663, 0.0
    %v802 = vmax.f32 %v665, 0.0
    %v803 = vmax.f32 %v669, 0.0
    %v804 = vmax.f32 %v671, 0.0
    %v805 = vmax.f32 %v675, 0.0
    %v806 = vmax.f32 %v677, 0.0
    %v807 = vld [vmem:[#allocation7] sm:$0xff]
    %v808 = vld [vmem:[#allocation7 + $0x8] sm:$0xff]
    %v809 = vld [vmem:[#allocation7 + $0x10] sm:$0xff]
    %v810 = vld [vmem:[#allocation7 + $0x18] sm:$0xff]
    %v811 = vld [vmem:[#allocation7 + $0x20] sm:$0xff]
    %v812 = vld [vmem:[#allocation7 + $0x28] sm:$0xff]
    %v813 = vld [vmem:[#allocation7 + $0x30] sm:$0xff]
    %v814 = vld [vmem:[#allocation7 + $0x38] sm:$0xff]
    %v815 = vld [vmem:[#allocation7 + $0x40] sm:$0xff]
    %v816 = vld [vmem:[#allocation7 + $0x48] sm:$0xff]
    %v817 = vld [vmem:[#allocation7 + $0x50] sm:$0xff]
    %v818 = vld [vmem:[#allocation7 + $0x58] sm:$0xff]
    %v819 = vld [vmem:[#allocation7 + $0x60] sm:$0xff]
    %v820 = vld [vmem:[#allocation7 + $0x68] sm:$0xff]
    %v821 = vld [vmem:[#allocation7 + $0x70] sm:$0xff]
    %v822 = vld [vmem:[#allocation7 + $0x78] sm:$0xff]
    %v823 = vld [vmem:[#allocation7 + $0x80] sm:$0xff]
    %v824 = vld [vmem:[#allocation7 + $0x88] sm:$0xff]
    %v825 = vld [vmem:[#allocation7 + $0x90] sm:$0xff]
    %v826 = vld [vmem:[#allocation7 + $0x98] sm:$0xff]
    %v827 = vld [vmem:[#allocation7 + $0xa0] sm:$0xff]
    %v828 = vld [vmem:[#allocation7 + $0xa8] sm:$0xff]
    %v829 = vld [vmem:[#allocation7 + $0xb0] sm:$0xff]
    %v830 = vld [vmem:[#allocation7 + $0xb8] sm:$0xff]
    %v831 = vld [vmem:[#allocation7 + $0xc0] sm:$0xff]
    %v832 = vld [vmem:[#allocation7 + $0xc8] sm:$0xff]
    %v833 = vld [vmem:[#allocation7 + $0xd0] sm:$0xff]
    %v834 = vld [vmem:[#allocation7 + $0xd8] sm:$0xff]
    %v835 = vld [vmem:[#allocation7 + $0xe0] sm:$0xff]
    %v836 = vld [vmem:[#allocation7 + $0xe8] sm:$0xff]
    %v837 = vld [vmem:[#allocation7 + $0xf0] sm:$0xff]
    %v838 = vld [vmem:[#allocation7 + $0xf8] sm:$0xff]
    %v839 = vld [vmem:[%s4] sm:$0x3]
    %v840 = vpack.c.bf16 %v681, %v679
    %v841 = vpack.c.bf16 %v682, %v680
    %v842 = vpack.c.bf16 %v685, %v683
    %v843 = vpack.c.bf16 %v686, %v684
    %v844 = vpack.c.bf16 %v689, %v687
    %v845 = vpack.c.bf16 %v690, %v688
    %v846 = vpack.c.bf16 %v693, %v691
    %v847 = vpack.c.bf16 %v694, %v692
    %v848 = vpack.c.bf16 %v697, %v695
    %v849 = vpack.c.bf16 %v698, %v696
    %v850 = vpack.c.bf16 %v701, %v699
    %v851 = vpack.c.bf16 %v702, %v700
    %v852 = vpack.c.bf16 %v705, %v703
    %v853 = vpack.c.bf16 %v706, %v704
    %v854 = vpack.c.bf16 %v709, %v707
    %v855 = vpack.c.bf16 %v710, %v708
    %v856 = vpack.c.bf16 %v713, %v711
    %v857 = vpack.c.bf16 %v714, %v712
    %v858 = vpack.c.bf16 %v717, %v715
    %v859 = vpack.c.bf16 %v718, %v716
    %v860 = vpack.c.bf16 %v721, %v719
    %v861 = vpack.c.bf16 %v722, %v720
    %v862 = vpack.c.bf16 %v725, %v723
    %v863 = vpack.c.bf16 %v726, %v724
    %v864 = vpack.c.bf16 %v729, %v727
    %v865 = vpack.c.bf16 %v730, %v728
    %v866 = vpack.c.bf16 %v733, %v731
    %v867 = vpack.c.bf16 %v734, %v732
    %v868 = vpack.c.bf16 %v737, %v735
    %v869 = vpack.c.bf16 %v738, %v736
    %v870 = vpack.c.bf16 %v741, %v739
    %v871 = vpack.c.bf16 %v742, %v740
    %v872 = vpack.c.bf16 %v745, %v743
    %v873 = vpack.c.bf16 %v746, %v744
    %v874 = vpack.c.bf16 %v749, %v747
    %v875 = vpack.c.bf16 %v750, %v748
    %v876 = vpack.c.bf16 %v753, %v751
    %v877 = vpack.c.bf16 %v754, %v752
    %v878 = vpack.c.bf16 %v757, %v755
    %v879 = vpack.c.bf16 %v758, %v756
    %v880 = vpack.c.bf16 %v761, %v759
    %v881 = vpack.c.bf16 %v762, %v760
    %v882 = vpack.c.bf16 %v765, %v763
    %v883 = vpack.c.bf16 %v766, %v764
    %v884 = vpack.c.bf16 %v769, %v767
    %v885 = vpack.c.bf16 %v770, %v768
    %v886 = vpack.c.bf16 %v773, %v771
    %v887 = vpack.c.bf16 %v774, %v772
    %v888 = vpack.c.bf16 %v777, %v775
    %v889 = vpack.c.bf16 %v778, %v776
    %v890 = vpack.c.bf16 %v781, %v779
    %v891 = vpack.c.bf16 %v782, %v780
    %v892 = vpack.c.bf16 %v785, %v783
    %v893 = vpack.c.bf16 %v786, %v784
    %v894 = vpack.c.bf16 %v789, %v787
    %v895 = vpack.c.bf16 %v790, %v788
    %v896 = vpack.c.bf16 %v793, %v791
    %v897 = vpack.c.bf16 %v794, %v792
    %v898 = vpack.c.bf16 %v797, %v795
    %v899 = vpack.c.bf16 %v798, %v796
    %v900 = vpack.c.bf16 %v801, %v799
    %v901 = vpack.c.bf16 %v802, %v800
    %v902 = vpack.c.bf16 %v805, %v803
    %v903 = vpack.c.bf16 %v806, %v804
    %v905 = vlaneseq
    %v906 = vshrl.u32 %v905, 7
    %v907 = vsub.s32 0, %v906
    %v908 = vrot.slane %v839, %v907
    %v909 = vlaneseq
    %v910 = vshrl.u32 %v909, 7
    %v911 = vsub.s32 1, %v910
    %v912 = vrot.slane %v839, %v911
    %v947 = vunpack.c.l.b16 %v807
    %v948 = vunpack.c.h.b16 %v807
    %v949 = vunpack.c.l.b16 %v808
    %v950 = vunpack.c.h.b16 %v808
    %v951 = vunpack.c.l.b16 %v809
    %v952 = vunpack.c.h.b16 %v809
    %v953 = vunpack.c.l.b16 %v810
    %v954 = vunpack.c.h.b16 %v810
    %v955 = vunpack.c.l.b16 %v811
    %v956 = vunpack.c.h.b16 %v811
    %v957 = vunpack.c.l.b16 %v812
    %v958 = vunpack.c.h.b16 %v812
    %v959 = vunpack.c.l.b16 %v813
    %v960 = vunpack.c.h.b16 %v813
    %v961 = vunpack.c.l.b16 %v814
    %v962 = vunpack.c.h.b16 %v814
    %v963 = vunpack.c.l.b16 %v815
    %v964 = vunpack.c.h.b16 %v815
    %v965 = vunpack.c.l.b16 %v816
    %v966 = vunpack.c.h.b16 %v816
    %v967 = vunpack.c.l.b16 %v817
    %v968 = vunpack.c.h.b16 %v817
    %v969 = vunpack.c.l.b16 %v818
    %v970 = vunpack.c.h.b16 %v818
    %v971 = vunpack.c.l.b16 %v819
    %v972 = vunpack.c.h.b16 %v819
    %v973 = vunpack.c.l.b16 %v820
    %v974 = vunpack.c.h.b16 %v820
    %v975 = vunpack.c.l.b16 %v821
    %v976 = vunpack.c.h.b16 %v821
    %v977 = vunpack.c.l.b16 %v822
    %v978 = vunpack.c.h.b16 %v822
    %v979 = vunpack.c.l.b16 %v823
    %v980 = vunpack.c.h.b16 %v823
    %v981 = vunpack.c.l.b16 %v824
    %v982 = vunpack.c.h.b16 %v824
    %v983 = vunpack.c.l.b16 %v825
    %v984 = vunpack.c.h.b16 %v825
    %v985 = vunpack.c.l.b16 %v826
    %v986 = vunpack.c.h.b16 %v826
    %v987 = vunpack.c.l.b16 %v827
    %v988 = vunpack.c.h.b16 %v827
    %v989 = vunpack.c.l.b16 %v828
    %v990 = vunpack.c.h.b16 %v828
    %v991 = vunpack.c.l.b16 %v829
    %v992 = vunpack.c.h.b16 %v829
    %v993 = vunpack.c.l.b16 %v830
    %v994 = vunpack.c.h.b16 %v830
    %v995 = vunpack.c.l.b16 %v831
    %v996 = vunpack.c.h.b16 %v831
    %v997 = vunpack.c.l.b16 %v832
    %v998 = vunpack.c.h.b16 %v832
    %v999 = vunpack.c.l.b16 %v833
    %v1000 = vunpack.c.h.b16 %v833
    %v1001 = vunpack.c.l.b16 %v834
    %v1002 = vunpack.c.h.b16 %v834
    %v1003 = vunpack.c.l.b16 %v835
    %v1004 = vunpack.c.h.b16 %v835
    %v1005 = vunpack.c.l.b16 %v836
    %v1006 = vunpack.c.h.b16 %v836
    %v1007 = vunpack.c.l.b16 %v837
    %v1008 = vunpack.c.h.b16 %v837
    %v1009 = vunpack.c.l.b16 %v838
    %v1010 = vunpack.c.h.b16 %v838
    %v1011 = vpack.c.b16 %v949, %v947
    %v1012 = vpack.c.b16 %v950, %v948
    %v1013 = vpack.c.b16 %v953, %v951
    %v1014 = vpack.c.b16 %v954, %v952
    %v1015 = vpack.c.b16 %v957, %v955
    %v1016 = vpack.c.b16 %v958, %v956
    %v1017 = vpack.c.b16 %v961, %v959
    %v1018 = vpack.c.b16 %v962, %v960
    %v1019 = vpack.c.b16 %v965, %v963
    %v1020 = vpack.c.b16 %v966, %v964
    %v1021 = vpack.c.b16 %v969, %v967
    %v1022 = vpack.c.b16 %v970, %v968
    %v1023 = vpack.c.b16 %v973, %v971
    %v1024 = vpack.c.b16 %v974, %v972
    %v1025 = vpack.c.b16 %v977, %v975
    %v1026 = vpack.c.b16 %v978, %v976
    %v1027 = vpack.c.b16 %v981, %v979
    %v1028 = vpack.c.b16 %v982, %v980
    %v1029 = vpack.c.b16 %v985, %v983
    %v1030 = vpack.c.b16 %v986, %v984
    %v1031 = vpack.c.b16 %v989, %v987
    %v1032 = vpack.c.b16 %v990, %v988
    %v1033 = vpack.c.b16 %v993, %v991
    %v1034 = vpack.c.b16 %v994, %v992
    %v1035 = vpack.c.b16 %v997, %v995
    %v1036 = vpack.c.b16 %v998, %v996
    %v1037 = vpack.c.b16 %v1001, %v999
    %v1038 = vpack.c.b16 %v1002, %v1000
    %v1039 = vpack.c.b16 %v1005, %v1003
    %v1040 = vpack.c.b16 %v1006, %v1004
    %v1041 = vpack.c.b16 %v1009, %v1007
    %v1042 = vpack.c.b16 %v1010, %v1008
    %1075 = vmatprep.subr.bf16.mxu0 %v1012
    %1076 = vmatpush1.bf16.msra.mxu0 %v1011
    %1077 = vmatprep.subr.bf16.mxu0 %v1014
    %1078 = vmatpush1.bf16.msra.mxu0 %v1013
    %1079 = vmatprep.subr.bf16.mxu0 %v1016
    %1080 = vmatpush1.bf16.msra.mxu0 %v1015
    %1081 = vmatprep.subr.bf16.mxu0 %v1018
    %1082 = vmatpush1.bf16.msra.mxu0 %v1017
    %1083 = vmatprep.subr.bf16.mxu0 %v1020
    %1084 = vmatpush1.bf16.msra.mxu0 %v1019
    %1085 = vmatprep.subr.bf16.mxu0 %v1022
    %1086 = vmatpush1.bf16.msra.mxu0 %v1021
    %1087 = vmatprep.subr.bf16.mxu0 %v1024
    %1088 = vmatpush1.bf16.msra.mxu0 %v1023
    %1089 = vmatprep.subr.bf16.mxu0 %v1026
    %1090 = vmatpush1.bf16.msra.mxu0 %v1025
    %1091 = vmatprep.subr.bf16.mxu0 %v1028
    %1092 = vmatpush1.bf16.msra.mxu0 %v1027
    %1093 = vmatprep.subr.bf16.mxu0 %v1030
    %1094 = vmatpush1.bf16.msra.mxu0 %v1029
    %1095 = vmatprep.subr.bf16.mxu0 %v1032
    %1096 = vmatpush1.bf16.msra.mxu0 %v1031
    %1097 = vmatprep.subr.bf16.mxu0 %v1034
    %1098 = vmatpush1.bf16.msra.mxu0 %v1033
    %1099 = vmatprep.subr.bf16.mxu0 %v1036
    %1100 = vmatpush1.bf16.msra.mxu0 %v1035
    %1101 = vmatprep.subr.bf16.mxu0 %v1038
    %1102 = vmatpush1.bf16.msra.mxu0 %v1037
    %1103 = vmatprep.subr.bf16.mxu0 %v1040
    %1104 = vmatpush1.bf16.msra.mxu0 %v1039
    %1105 = vmatprep.subr.bf16.mxu0 %v1042
    %1106 = vmatpush1.bf16.msra.mxu0 %v1041
    %1107 = vmatprep.mubr.bf16.mxu0 %v841
    %1108 = vmatmul.mubr.bf16.gmra.mrb[0].mxu0 %v840
    %v1109 = vpop.f32.mrb[0].mxu0
    %v1110 = vadd.f32 %v908, %v1109
    %v1111 = vpop.f32.mrb[0].mxu0
    %v1112 = vadd.f32 %v912, %v1111
    %v1113 = vpop.f32.mrb[0].mxu0
    %v1114 = vadd.f32 %v908, %v1113
    %v1115 = vpop.f32.mrb[0].mxu0
    %v1116 = vadd.f32 %v912, %v1115
    %1117 = vmatprep.mubr.bf16.mxu0 %v843
    %1118 = vmatmul.mubr.bf16.gmra.mrb[0].mxu0 %v842
    %v1119 = vpop.f32.mrb[0].mxu0
    %v1120 = vadd.f32 %v908, %v1119
    %v1121 = vpop.f32.mrb[0].mxu0
    %v1122 = vadd.f32 %v912, %v1121
    %v1123 = vpop.f32.mrb[0].mxu0
    %v1124 = vadd.f32 %v908, %v1123
    %v1125 = vpop.f32.mrb[0].mxu0
    %v1126 = vadd.f32 %v912, %v1125
    %1127 = vmatprep.mubr.bf16.mxu0 %v845
    %1128 = vmatmul.mubr.bf16.gmra.mrb[0].mxu0 %v844
    %v1129 = vpop.f32.mrb[0].mxu0
    %v1130 = vadd.f32 %v908, %v1129
    %v1131 = vpop.f32.mrb[0].mxu0
    %v1132 = vadd.f32 %v912, %v1131
    %v1133 = vpop.f32.mrb[0].mxu0
    %v1134 = vadd.f32 %v908, %v1133
    %v1135 = vpop.f32.mrb[0].mxu0
    %v1136 = vadd.f32 %v912, %v1135
    %1137 = vmatprep.mubr.bf16.mxu0 %v847
    %1138 = vmatmul.mubr.bf16.gmra.mrb[0].mxu0 %v846
    %v1139 = vpop.f32.mrb[0].mxu0
    %v1140 = vadd.f32 %v908, %v1139
    %v1141 = vpop.f32.mrb[0].mxu0
    %v1142 = vadd.f32 %v912, %v1141
    %v1143 = vpop.f32.mrb[0].mxu0
    %v1144 = vadd.f32 %v908, %v1143
    %v1145 = vpop.f32.mrb[0].mxu0
    %v1146 = vadd.f32 %v912, %v1145
    %1147 = vmatprep.mubr.bf16.mxu0 %v849
    %1148 = vmatmul.mubr.bf16.gmra.mrb[0].mxu0 %v848
    %v1149 = vpop.f32.mrb[0].mxu0
    %v1150 = vadd.f32 %v908, %v1149
    %v1151 = vpop.f32.mrb[0].mxu0
    %v1152 = vadd.f32 %v912, %v1151
    %v1153 = vpop.f32.mrb[0].mxu0
    %v1154 = vadd.f32 %v908, %v1153
    %v1155 = vpop.f32.mrb[0].mxu0
    %v1156 = vadd.f32 %v912, %v1155
    %1157 = vmatprep.mubr.bf16.mxu0 %v851
    %1158 = vmatmul.mubr.bf16.gmra.mrb[0].mxu0 %v850
    %v1159 = vpop.f32.mrb[0].mxu0
    %v1160 = vadd.f32 %v908, %v1159
    %v1161 = vpop.f32.mrb[0].mxu0
    %v1162 = vadd.f32 %v912, %v1161
    %v1163 = vpop.f32.mrb[0].mxu0
    %v1164 = vadd.f32 %v908, %v1163
    %v1165 = vpop.f32.mrb[0].mxu0
    %v1166 = vadd.f32 %v912, %v1165
    %1167 = vmatprep.mubr.bf16.mxu0 %v853
    %1168 = vmatmul.mubr.bf16.gmra.mrb[0].mxu0 %v852
    %v1169 = vpop.f32.mrb[0].mxu0
    %v1170 = vadd.f32 %v908, %v1169
    %v1171 = vpop.f32.mrb[0].mxu0
    %v1172 = vadd.f32 %v912, %v1171
    %v1173 = vpop.f32.mrb[0].mxu0
    %v1174 = vadd.f32 %v908, %v1173
    %v1175 = vpop.f32.mrb[0].mxu0
    %v1176 = vadd.f32 %v912, %v1175
    %1177 = vmatprep.mubr.bf16.mxu0 %v855
    %1178 = vmatmul.mubr.bf16.gmra.mrb[0].mxu0 %v854
    %v1179 = vpop.f32.mrb[0].mxu0
    %v1180 = vadd.f32 %v908, %v1179
    %v1181 = vpop.f32.mrb[0].mxu0
    %v1182 = vadd.f32 %v912, %v1181
    %v1183 = vpop.f32.mrb[0].mxu0
    %v1184 = vadd.f32 %v908, %v1183
    %v1185 = vpop.f32.mrb[0].mxu0
    %v1186 = vadd.f32 %v912, %v1185
    %1187 = vmatprep.mubr.bf16.mxu0 %v857
    %1188 = vmatmul.mubr.bf16.gmra.mrb[0].mxu0 %v856
    %v1189 = vpop.f32.mrb[0].mxu0
    %v1190 = vadd.f32 %v908, %v1189
    %v1191 = vpop.f32.mrb[0].mxu0
    %v1192 = vadd.f32 %v912, %v1191
    %v1193 = vpop.f32.mrb[0].mxu0
    %v1194 = vadd.f32 %v908, %v1193
    %v1195 = vpop.f32.mrb[0].mxu0
    %v1196 = vadd.f32 %v912, %v1195
    %1197 = vmatprep.mubr.bf16.mxu0 %v859
    %1198 = vmatmul.mubr.bf16.gmra.mrb[0].mxu0 %v858
    %v1199 = vpop.f32.mrb[0].mxu0
    %v1200 = vadd.f32 %v908, %v1199
    %v1201 = vpop.f32.mrb[0].mxu0
    %v1202 = vadd.f32 %v912, %v1201
    %v1203 = vpop.f32.mrb[0].mxu0
    %v1204 = vadd.f32 %v908, %v1203
    %v1205 = vpop.f32.mrb[0].mxu0
    %v1206 = vadd.f32 %v912, %v1205
    %1207 = vmatprep.mubr.bf16.mxu0 %v861
    %1208 = vmatmul.mubr.bf16.gmra.mrb[0].mxu0 %v860
    %v1209 = vpop.f32.mrb[0].mxu0
    %v1210 = vadd.f32 %v908, %v1209
    %v1211 = vpop.f32.mrb[0].mxu0
    %v1212 = vadd.f32 %v912, %v1211
    %v1213 = vpop.f32.mrb[0].mxu0
    %v1214 = vadd.f32 %v908, %v1213
    %v1215 = vpop.f32.mrb[0].mxu0
    %v1216 = vadd.f32 %v912, %v1215
    %1217 = vmatprep.mubr.bf16.mxu0 %v863
    %1218 = vmatmul.mubr.bf16.gmra.mrb[0].mxu0 %v862
    %v1219 = vpop.f32.mrb[0].mxu0
    %v1220 = vadd.f32 %v908, %v1219
    %v1221 = vpop.f32.mrb[0].mxu0
    %v1222 = vadd.f32 %v912, %v1221
    %v1223 = vpop.f32.mrb[0].mxu0
    %v1224 = vadd.f32 %v908, %v1223
    %v1225 = vpop.f32.mrb[0].mxu0
    %v1226 = vadd.f32 %v912, %v1225
    %1227 = vmatprep.mubr.bf16.mxu0 %v865
    %1228 = vmatmul.mubr.bf16.gmra.mrb[0].mxu0 %v864
    %v1229 = vpop.f32.mrb[0].mxu0
    %v1230 = vadd.f32 %v908, %v1229
    %v1231 = vpop.f32.mrb[0].mxu0
    %v1232 = vadd.f32 %v912, %v1231
    %v1233 = vpop.f32.mrb[0].mxu0
    %v1234 = vadd.f32 %v908, %v1233
    %v1235 = vpop.f32.mrb[0].mxu0
    %v1236 = vadd.f32 %v912, %v1235
    %1237 = vmatprep.mubr.bf16.mxu0 %v867
    %1238 = vmatmul.mubr.bf16.gmra.mrb[0].mxu0 %v866
    %v1239 = vpop.f32.mrb[0].mxu0
    %v1240 = vadd.f32 %v908, %v1239
    %v1241 = vpop.f32.mrb[0].mxu0
    %v1242 = vadd.f32 %v912, %v1241
    %v1243 = vpop.f32.mrb[0].mxu0
    %v1244 = vadd.f32 %v908, %v1243
    %v1245 = vpop.f32.mrb[0].mxu0
    %v1246 = vadd.f32 %v912, %v1245
    %1247 = vmatprep.mubr.bf16.mxu0 %v869
    %1248 = vmatmul.mubr.bf16.gmra.mrb[0].mxu0 %v868
    %v1249 = vpop.f32.mrb[0].mxu0
    %v1250 = vadd.f32 %v908, %v1249
    %v1251 = vpop.f32.mrb[0].mxu0
    %v1252 = vadd.f32 %v912, %v1251
    %v1253 = vpop.f32.mrb[0].mxu0
    %v1254 = vadd.f32 %v908, %v1253
    %v1255 = vpop.f32.mrb[0].mxu0
    %v1256 = vadd.f32 %v912, %v1255
    %1257 = vmatprep.mubr.bf16.mxu0 %v871
    %1258 = vmatmul.mubr.bf16.gmra.mrb[0].mxu0 %v870
    %v1259 = vpop.f32.mrb[0].mxu0
    %v1260 = vadd.f32 %v908, %v1259
    %v1261 = vpop.f32.mrb[0].mxu0
    %v1262 = vadd.f32 %v912, %v1261
    %v1263 = vpop.f32.mrb[0].mxu0
    %v1264 = vadd.f32 %v908, %v1263
    %v1265 = vpop.f32.mrb[0].mxu0
    %v1266 = vadd.f32 %v912, %v1265
    %1267 = vmatprep.mubr.bf16.mxu0 %v873
    %1268 = vmatmul.mubr.bf16.gmra.mrb[0].mxu0 %v872
    %v1269 = vpop.f32.mrb[0].mxu0
    %v1270 = vadd.f32 %v908, %v1269
    %v1271 = vpop.f32.mrb[0].mxu0
    %v1272 = vadd.f32 %v912, %v1271
    %v1273 = vpop.f32.mrb[0].mxu0
    %v1274 = vadd.f32 %v908, %v1273
    %v1275 = vpop.f32.mrb[0].mxu0
    %v1276 = vadd.f32 %v912, %v1275
    %1277 = vmatprep.mubr.bf16.mxu0 %v875
    %1278 = vmatmul.mubr.bf16.gmra.mrb[0].mxu0 %v874
    %v1279 = vpop.f32.mrb[0].mxu0
    %v1280 = vadd.f32 %v908, %v1279
    %v1281 = vpop.f32.mrb[0].mxu0
    %v1282 = vadd.f32 %v912, %v1281
    %v1283 = vpop.f32.mrb[0].mxu0
    %v1284 = vadd.f32 %v908, %v1283
    %v1285 = vpop.f32.mrb[0].mxu0
    %v1286 = vadd.f32 %v912, %v1285
    %1287 = vmatprep.mubr.bf16.mxu0 %v877
    %1288 = vmatmul.mubr.bf16.gmra.mrb[0].mxu0 %v876
    %v1289 = vpop.f32.mrb[0].mxu0
    %v1290 = vadd.f32 %v908, %v1289
    %v1291 = vpop.f32.mrb[0].mxu0
    %v1292 = vadd.f32 %v912, %v1291
    %v1293 = vpop.f32.mrb[0].mxu0
    %v1294 = vadd.f32 %v908, %v1293
    %v1295 = vpop.f32.mrb[0].mxu0
    %v1296 = vadd.f32 %v912, %v1295
    %1297 = vmatprep.mubr.bf16.mxu0 %v879
    %1298 = vmatmul.mubr.bf16.gmra.mrb[0].mxu0 %v878
    %v1299 = vpop.f32.mrb[0].mxu0
    %v1300 = vadd.f32 %v908, %v1299
    %v1301 = vpop.f32.mrb[0].mxu0
    %v1302 = vadd.f32 %v912, %v1301
    %v1303 = vpop.f32.mrb[0].mxu0
    %v1304 = vadd.f32 %v908, %v1303
    %v1305 = vpop.f32.mrb[0].mxu0
    %v1306 = vadd.f32 %v912, %v1305
    %1307 = vmatprep.mubr.bf16.mxu0 %v881
    %1308 = vmatmul.mubr.bf16.gmra.mrb[0].mxu0 %v880
    %v1309 = vpop.f32.mrb[0].mxu0
    %v1310 = vadd.f32 %v908, %v1309
    %v1311 = vpop.f32.mrb[0].mxu0
    %v1312 = vadd.f32 %v912, %v1311
    %v1313 = vpop.f32.mrb[0].mxu0
    %v1314 = vadd.f32 %v908, %v1313
    %v1315 = vpop.f32.mrb[0].mxu0
    %v1316 = vadd.f32 %v912, %v1315
    %1317 = vmatprep.mubr.bf16.mxu0 %v883
    %1318 = vmatmul.mubr.bf16.gmra.mrb[0].mxu0 %v882
    %v1319 = vpop.f32.mrb[0].mxu0
    %v1320 = vadd.f32 %v908, %v1319
    %v1321 = vpop.f32.mrb[0].mxu0
    %v1322 = vadd.f32 %v912, %v1321
    %v1323 = vpop.f32.mrb[0].mxu0
    %v1324 = vadd.f32 %v908, %v1323
    %v1325 = vpop.f32.mrb[0].mxu0
    %v1326 = vadd.f32 %v912, %v1325
    %1327 = vmatprep.mubr.bf16.mxu0 %v885
    %1328 = vmatmul.mubr.bf16.gmra.mrb[0].mxu0 %v884
    %v1329 = vpop.f32.mrb[0].mxu0
    %v1330 = vadd.f32 %v908, %v1329
    %v1331 = vpop.f32.mrb[0].mxu0
    %v1332 = vadd.f32 %v912, %v1331
    %v1333 = vpop.f32.mrb[0].mxu0
    %v1334 = vadd.f32 %v908, %v1333
    %v1335 = vpop.f32.mrb[0].mxu0
    %v1336 = vadd.f32 %v912, %v1335
    %1337 = vmatprep.mubr.bf16.mxu0 %v887
    %1338 = vmatmul.mubr.bf16.gmra.mrb[0].mxu0 %v886
    %v1339 = vpop.f32.mrb[0].mxu0
    %v1340 = vadd.f32 %v908, %v1339
    %v1341 = vpop.f32.mrb[0].mxu0
    %v1342 = vadd.f32 %v912, %v1341
    %v1343 = vpop.f32.mrb[0].mxu0
    %v1344 = vadd.f32 %v908, %v1343
    %v1345 = vpop.f32.mrb[0].mxu0
    %v1346 = vadd.f32 %v912, %v1345
    %1347 = vmatprep.mubr.bf16.mxu0 %v889
    %1348 = vmatmul.mubr.bf16.gmra.mrb[0].mxu0 %v888
    %v1349 = vpop.f32.mrb[0].mxu0
    %v1350 = vadd.f32 %v908, %v1349
    %v1351 = vpop.f32.mrb[0].mxu0
    %v1352 = vadd.f32 %v912, %v1351
    %v1353 = vpop.f32.mrb[0].mxu0
    %v1354 = vadd.f32 %v908, %v1353
    %v1355 = vpop.f32.mrb[0].mxu0
    %v1356 = vadd.f32 %v912, %v1355
    %1357 = vmatprep.mubr.bf16.mxu0 %v891
    %1358 = vmatmul.mubr.bf16.gmra.mrb[0].mxu0 %v890
    %v1359 = vpop.f32.mrb[0].mxu0
    %v1360 = vadd.f32 %v908, %v1359
    %v1361 = vpop.f32.mrb[0].mxu0
    %v1362 = vadd.f32 %v912, %v1361
    %v1363 = vpop.f32.mrb[0].mxu0
    %v1364 = vadd.f32 %v908, %v1363
    %v1365 = vpop.f32.mrb[0].mxu0
    %v1366 = vadd.f32 %v912, %v1365
    %1367 = vmatprep.mubr.bf16.mxu0 %v893
    %1368 = vmatmul.mubr.bf16.gmra.mrb[0].mxu0 %v892
    %v1369 = vpop.f32.mrb[0].mxu0
    %v1370 = vadd.f32 %v908, %v1369
    %v1371 = vpop.f32.mrb[0].mxu0
    %v1372 = vadd.f32 %v912, %v1371
    %v1373 = vpop.f32.mrb[0].mxu0
    %v1374 = vadd.f32 %v908, %v1373
    %v1375 = vpop.f32.mrb[0].mxu0
    %v1376 = vadd.f32 %v912, %v1375
    %1377 = vmatprep.mubr.bf16.mxu0 %v895
    %1378 = vmatmul.mubr.bf16.gmra.mrb[0].mxu0 %v894
    %v1379 = vpop.f32.mrb[0].mxu0
    %v1380 = vadd.f32 %v908, %v1379
    %v1381 = vpop.f32.mrb[0].mxu0
    %v1382 = vadd.f32 %v912, %v1381
    %v1383 = vpop.f32.mrb[0].mxu0
    %v1384 = vadd.f32 %v908, %v1383
    %v1385 = vpop.f32.mrb[0].mxu0
    %v1386 = vadd.f32 %v912, %v1385
    %1387 = vmatprep.mubr.bf16.mxu0 %v897
    %1388 = vmatmul.mubr.bf16.gmra.mrb[0].mxu0 %v896
    %v1389 = vpop.f32.mrb[0].mxu0
    %v1390 = vadd.f32 %v908, %v1389
    %v1391 = vpop.f32.mrb[0].mxu0
    %v1392 = vadd.f32 %v912, %v1391
    %v1393 = vpop.f32.mrb[0].mxu0
    %v1394 = vadd.f32 %v908, %v1393
    %v1395 = vpop.f32.mrb[0].mxu0
    %v1396 = vadd.f32 %v912, %v1395
    %1397 = vmatprep.mubr.bf16.mxu0 %v899
    %1398 = vmatmul.mubr.bf16.gmra.mrb[0].mxu0 %v898
    %v1399 = vpop.f32.mrb[0].mxu0
    %v1400 = vadd.f32 %v908, %v1399
    %v1401 = vpop.f32.mrb[0].mxu0
    %v1402 = vadd.f32 %v912, %v1401
    %v1403 = vpop.f32.mrb[0].mxu0
    %v1404 = vadd.f32 %v908, %v1403
    %v1405 = vpop.f32.mrb[0].mxu0
    %v1406 = vadd.f32 %v912, %v1405
    %1407 = vmatprep.mubr.bf16.mxu0 %v901
    %1408 = vmatmul.mubr.bf16.gmra.mrb[0].mxu0 %v900
    %v1409 = vpop.f32.mrb[0].mxu0
    %v1410 = vadd.f32 %v908, %v1409
    %v1411 = vpop.f32.mrb[0].mxu0
    %v1412 = vadd.f32 %v912, %v1411
    %v1413 = vpop.f32.mrb[0].mxu0
    %v1414 = vadd.f32 %v908, %v1413
    %v1415 = vpop.f32.mrb[0].mxu0
    %v1416 = vadd.f32 %v912, %v1415
    %1417 = vmatprep.mubr.bf16.mxu0 %v903
    %1418 = vmatmul.mubr.bf16.gmra.mrb[0].mxu0 %v902
    %v1419 = vpop.f32.mrb[0].mxu0
    %v1420 = vadd.f32 %v908, %v1419
    %v1421 = vpop.f32.mrb[0].mxu0
    %v1422 = vadd.f32 %v912, %v1421
    %v1423 = vpop.f32.mrb[0].mxu0
    %v1424 = vadd.f32 %v908, %v1423
    %v1425 = vpop.f32.mrb[0].mxu0
    %v1426 = vadd.f32 %v912, %v1425
    %1427 = vdwg.mxu0
    %v1428 = vmax.f32 %v1110, 0.0
    %v1429 = vmax.f32 %v1112, 0.0
    %v1430 = vmax.f32 %v1114, 0.0
    %v1431 = vmax.f32 %v1116, 0.0
    %v1432 = vmax.f32 %v1120, 0.0
    %v1433 = vmax.f32 %v1122, 0.0
    %v1434 = vmax.f32 %v1124, 0.0
    %v1435 = vmax.f32 %v1126, 0.0
    %v1436 = vmax.f32 %v1130, 0.0
    %v1437 = vmax.f32 %v1132, 0.0
    %v1438 = vmax.f32 %v1134, 0.0
    %v1439 = vmax.f32 %v1136, 0.0
    %v1440 = vmax.f32 %v1140, 0.0
    %v1441 = vmax.f32 %v1142, 0.0
    %v1442 = vmax.f32 %v1144, 0.0
    %v1443 = vmax.f32 %v1146, 0.0
    %v1444 = vmax.f32 %v1150, 0.0
    %v1445 = vmax.f32 %v1152, 0.0
    %v1446 = vmax.f32 %v1154, 0.0
    %v1447 = vmax.f32 %v1156, 0.0
    %v1448 = vmax.f32 %v1160, 0.0
    %v1449 = vmax.f32 %v1162, 0.0
    %v1450 = vmax.f32 %v1164, 0.0
    %v1451 = vmax.f32 %v1166, 0.0
    %v1452 = vmax.f32 %v1170, 0.0
    %v1453 = vmax.f32 %v1172, 0.0
    %v1454 = vmax.f32 %v1174, 0.0
    %v1455 = vmax.f32 %v1176, 0.0
    %v1456 = vmax.f32 %v1180, 0.0
    %v1457 = vmax.f32 %v1182, 0.0
    %v1458 = vmax.f32 %v1184, 0.0
    %v1459 = vmax.f32 %v1186, 0.0
    %v1460 = vmax.f32 %v1190, 0.0
    %v1461 = vmax.f32 %v1192, 0.0
    %v1462 = vmax.f32 %v1194, 0.0
    %v1463 = vmax.f32 %v1196, 0.0
    %v1464 = vmax.f32 %v1200, 0.0
    %v1465 = vmax.f32 %v1202, 0.0
    %v1466 = vmax.f32 %v1204, 0.0
    %v1467 = vmax.f32 %v1206, 0.0
    %v1468 = vmax.f32 %v1210, 0.0
    %v1469 = vmax.f32 %v1212, 0.0
    %v1470 = vmax.f32 %v1214, 0.0
    %v1471 = vmax.f32 %v1216, 0.0
    %v1472 = vmax.f32 %v1220, 0.0
    %v1473 = vmax.f32 %v1222, 0.0
    %v1474 = vmax.f32 %v1224, 0.0
    %v1475 = vmax.f32 %v1226, 0.0
    %v1476 = vmax.f32 %v1230, 0.0
    %v1477 = vmax.f32 %v1232, 0.0
    %v1478 = vmax.f32 %v1234, 0.0
    %v1479 = vmax.f32 %v1236, 0.0
    %v1480 = vmax.f32 %v1240, 0.0
    %v1481 = vmax.f32 %v1242, 0.0
    %v1482 = vmax.f32 %v1244, 0.0
    %v1483 = vmax.f32 %v1246, 0.0
    %v1484 = vmax.f32 %v1250, 0.0
    %v1485 = vmax.f32 %v1252, 0.0
    %v1486 = vmax.f32 %v1254, 0.0
    %v1487 = vmax.f32 %v1256, 0.0
    %v1488 = vmax.f32 %v1260, 0.0
    %v1489 = vmax.f32 %v1262, 0.0
    %v1490 = vmax.f32 %v1264, 0.0
    %v1491 = vmax.f32 %v1266, 0.0
    %v1492 = vmax.f32 %v1270, 0.0
    %v1493 = vmax.f32 %v1272, 0.0
    %v1494 = vmax.f32 %v1274, 0.0
    %v1495 = vmax.f32 %v1276, 0.0
    %v1496 = vmax.f32 %v1280, 0.0
    %v1497 = vmax.f32 %v1282, 0.0
    %v1498 = vmax.f32 %v1284, 0.0
    %v1499 = vmax.f32 %v1286, 0.0
    %v1500 = vmax.f32 %v1290, 0.0
    %v1501 = vmax.f32 %v1292, 0.0
    %v1502 = vmax.f32 %v1294, 0.0
    %v1503 = vmax.f32 %v1296, 0.0
    %v1504 = vmax.f32 %v1300, 0.0
    %v1505 = vmax.f32 %v1302, 0.0
    %v1506 = vmax.f32 %v1304, 0.0
    %v1507 = vmax.f32 %v1306, 0.0
    %v1508 = vmax.f32 %v1310, 0.0
    %v1509 = vmax.f32 %v1312, 0.0
    %v1510 = vmax.f32 %v1314, 0.0
    %v1511 = vmax.f32 %v1316, 0.0
    %v1512 = vmax.f32 %v1320, 0.0
    %v1513 = vmax.f32 %v1322, 0.0
    %v1514 = vmax.f32 %v1324, 0.0
    %v1515 = vmax.f32 %v1326, 0.0
    %v1516 = vmax.f32 %v1330, 0.0
    %v1517 = vmax.f32 %v1332, 0.0
    %v1518 = vmax.f32 %v1334, 0.0
    %v1519 = vmax.f32 %v1336, 0.0
    %v1520 = vmax.f32 %v1340, 0.0
    %v1521 = vmax.f32 %v1342, 0.0
    %v1522 = vmax.f32 %v1344, 0.0
    %v1523 = vmax.f32 %v1346, 0.0
    %v1524 = vmax.f32 %v1350, 0.0
    %v1525 = vmax.f32 %v1352, 0.0
    %v1526 = vmax.f32 %v1354, 0.0
    %v1527 = vmax.f32 %v1356, 0.0
    %v1528 = vmax.f32 %v1360, 0.0
    %v1529 = vmax.f32 %v1362, 0.0
    %v1530 = vmax.f32 %v1364, 0.0
    %v1531 = vmax.f32 %v1366, 0.0
    %v1532 = vmax.f32 %v1370, 0.0
    %v1533 = vmax.f32 %v1372, 0.0
    %v1534 = vmax.f32 %v1374, 0.0
    %v1535 = vmax.f32 %v1376, 0.0
    %v1536 = vmax.f32 %v1380, 0.0
    %v1537 = vmax.f32 %v1382, 0.0
    %v1538 = vmax.f32 %v1384, 0.0
    %v1539 = vmax.f32 %v1386, 0.0
    %v1540 = vmax.f32 %v1390, 0.0
    %v1541 = vmax.f32 %v1392, 0.0
    %v1542 = vmax.f32 %v1394, 0.0
    %v1543 = vmax.f32 %v1396, 0.0
    %v1544 = vmax.f32 %v1400, 0.0
    %v1545 = vmax.f32 %v1402, 0.0
    %v1546 = vmax.f32 %v1404, 0.0
    %v1547 = vmax.f32 %v1406, 0.0
    %v1548 = vmax.f32 %v1410, 0.0
    %v1549 = vmax.f32 %v1412, 0.0
    %v1550 = vmax.f32 %v1414, 0.0
    %v1551 = vmax.f32 %v1416, 0.0
    %v1552 = vmax.f32 %v1420, 0.0
    %v1553 = vmax.f32 %v1422, 0.0
    %v1554 = vmax.f32 %v1424, 0.0
    %v1555 = vmax.f32 %v1426, 0.0
    %v1556 = vld [vmem:[#allocation8] sm:$0xff]
    %v1557 = vld [vmem:[#allocation8 + $0x8] sm:$0xff]
    %v1558 = vld [vmem:[#allocation8 + $0x10] sm:$0xff]
    %v1559 = vld [vmem:[#allocation8 + $0x18] sm:$0xff]
    %v1560 = vld [vmem:[#allocation8 + $0x20] sm:$0xff]
    %v1561 = vld [vmem:[#allocation8 + $0x28] sm:$0xff]
    %v1562 = vld [vmem:[#allocation8 + $0x30] sm:$0xff]
    %v1563 = vld [vmem:[#allocation8 + $0x38] sm:$0xff]
    %v1564 = vld [vmem:[#allocation8 + $0x40] sm:$0xff]
    %v1565 = vld [vmem:[#allocation8 + $0x48] sm:$0xff]
    %v1566 = vld [vmem:[#allocation8 + $0x50] sm:$0xff]
    %v1567 = vld [vmem:[#allocation8 + $0x58] sm:$0xff]
    %v1568 = vld [vmem:[#allocation8 + $0x60] sm:$0xff]
    %v1569 = vld [vmem:[#allocation8 + $0x68] sm:$0xff]
    %v1570 = vld [vmem:[#allocation8 + $0x70] sm:$0xff]
    %v1571 = vld [vmem:[#allocation8 + $0x78] sm:$0xff]
    %v1572 = vld [vmem:[#allocation8 + $0x80] sm:$0xff]
    %v1573 = vld [vmem:[#allocation8 + $0x88] sm:$0xff]
    %v1574 = vld [vmem:[#allocation8 + $0x90] sm:$0xff]
    %v1575 = vld [vmem:[#allocation8 + $0x98] sm:$0xff]
    %v1576 = vld [vmem:[#allocation8 + $0xa0] sm:$0xff]
    %v1577 = vld [vmem:[#allocation8 + $0xa8] sm:$0xff]
    %v1578 = vld [vmem:[#allocation8 + $0xb0] sm:$0xff]
    %v1579 = vld [vmem:[#allocation8 + $0xb8] sm:$0xff]
    %v1580 = vld [vmem:[#allocation8 + $0xc0] sm:$0xff]
    %v1581 = vld [vmem:[#allocation8 + $0xc8] sm:$0xff]
    %v1582 = vld [vmem:[#allocation8 + $0xd0] sm:$0xff]
    %v1583 = vld [vmem:[#allocation8 + $0xd8] sm:$0xff]
    %v1584 = vld [vmem:[#allocation8 + $0xe0] sm:$0xff]
    %v1585 = vld [vmem:[#allocation8 + $0xe8] sm:$0xff]
    %v1586 = vld [vmem:[#allocation8 + $0xf0] sm:$0xff]
    %v1587 = vld [vmem:[#allocation8 + $0xf8] sm:$0xff]
    %v1588 = vld [vmem:[%s6] sm:$0x3]
    %v1589 = vpack.c.bf16 %v1430, %v1428
    %v1590 = vpack.c.bf16 %v1431, %v1429
    %v1591 = vpack.c.bf16 %v1434, %v1432
    %v1592 = vpack.c.bf16 %v1435, %v1433
    %v1593 = vpack.c.bf16 %v1438, %v1436
    %v1594 = vpack.c.bf16 %v1439, %v1437
    %v1595 = vpack.c.bf16 %v1442, %v1440
    %v1596 = vpack.c.bf16 %v1443, %v1441
    %v1597 = vpack.c.bf16 %v1446, %v1444
    %v1598 = vpack.c.bf16 %v1447, %v1445
    %v1599 = vpack.c.bf16 %v1450, %v1448
    %v1600 = vpack.c.bf16 %v1451, %v1449
    %v1601 = vpack.c.bf16 %v1454, %v1452
    %v1602 = vpack.c.bf16 %v1455, %v1453
    %v1603 = vpack.c.bf16 %v1458, %v1456
    %v1604 = vpack.c.bf16 %v1459, %v1457
    %v1605 = vpack.c.bf16 %v1462, %v1460
    %v1606 = vpack.c.bf16 %v1463, %v1461
    %v1607 = vpack.c.bf16 %v1466, %v1464
    %v1608 = vpack.c.bf16 %v1467, %v1465
    %v1609 = vpack.c.bf16 %v1470, %v1468
    %v1610 = vpack.c.bf16 %v1471, %v1469
    %v1611 = vpack.c.bf16 %v1474, %v1472
    %v1612 = vpack.c.bf16 %v1475, %v1473
    %v1613 = vpack.c.bf16 %v1478, %v1476
    %v1614 = vpack.c.bf16 %v1479, %v1477
    %v1615 = vpack.c.bf16 %v1482, %v1480
    %v1616 = vpack.c.bf16 %v1483, %v1481
    %v1617 = vpack.c.bf16 %v1486, %v1484
    %v1618 = vpack.c.bf16 %v1487, %v1485
    %v1619 = vpack.c.bf16 %v1490, %v1488
    %v1620 = vpack.c.bf16 %v1491, %v1489
    %v1621 = vpack.c.bf16 %v1494, %v1492
    %v1622 = vpack.c.bf16 %v1495, %v1493
    %v1623 = vpack.c.bf16 %v1498, %v1496
    %v1624 = vpack.c.bf16 %v1499, %v1497
    %v1625 = vpack.c.bf16 %v1502, %v1500
    %v1626 = vpack.c.bf16 %v1503, %v1501
    %v1627 = vpack.c.bf16 %v1506, %v1504
    %v1628 = vpack.c.bf16 %v1507, %v1505
    %v1629 = vpack.c.bf16 %v1510, %v1508
    %v1630 = vpack.c.bf16 %v1511, %v1509
    %v1631 = vpack.c.bf16 %v1514, %v1512
    %v1632 = vpack.c.bf16 %v1515, %v1513
    %v1633 = vpack.c.bf16 %v1518, %v1516
    %v1634 = vpack.c.bf16 %v1519, %v1517
    %v1635 = vpack.c.bf16 %v1522, %v1520
    %v1636 = vpack.c.bf16 %v1523, %v1521
    %v1637 = vpack.c.bf16 %v1526, %v1524
    %v1638 = vpack.c.bf16 %v1527, %v1525
    %v1639 = vpack.c.bf16 %v1530, %v1528
    %v1640 = vpack.c.bf16 %v1531, %v1529
    %v1641 = vpack.c.bf16 %v1534, %v1532
    %v1642 = vpack.c.bf16 %v1535, %v1533
    %v1643 = vpack.c.bf16 %v1538, %v1536
    %v1644 = vpack.c.bf16 %v1539, %v1537
    %v1645 = vpack.c.bf16 %v1542, %v1540
    %v1646 = vpack.c.bf16 %v1543, %v1541
    %v1647 = vpack.c.bf16 %v1546, %v1544
    %v1648 = vpack.c.bf16 %v1547, %v1545
    %v1649 = vpack.c.bf16 %v1550, %v1548
    %v1650 = vpack.c.bf16 %v1551, %v1549
    %v1651 = vpack.c.bf16 %v1554, %v1552
    %v1652 = vpack.c.bf16 %v1555, %v1553
    %v1654 = vlaneseq
    %v1655 = vshrl.u32 %v1654, 7
    %v1656 = vsub.s32 0, %v1655
    %v1657 = vrot.slane %v1588, %v1656
    %v1658 = vlaneseq
    %v1659 = vshrl.u32 %v1658, 7
    %v1660 = vsub.s32 1, %v1659
    %v1661 = vrot.slane %v1588, %v1660
    %v1696 = vunpack.c.l.b16 %v1556
    %v1697 = vunpack.c.h.b16 %v1556
    %v1698 = vunpack.c.l.b16 %v1557
    %v1699 = vunpack.c.h.b16 %v1557
    %v1700 = vunpack.c.l.b16 %v1558
    %v1701 = vunpack.c.h.b16 %v1558
    %v1702 = vunpack.c.l.b16 %v1559
    %v1703 = vunpack.c.h.b16 %v1559
    %v1704 = vunpack.c.l.b16 %v1560
    %v1705 = vunpack.c.h.b16 %v1560
    %v1706 = vunpack.c.l.b16 %v1561
    %v1707 = vunpack.c.h.b16 %v1561
    %v1708 = vunpack.c.l.b16 %v1562
    %v1709 = vunpack.c.h.b16 %v1562
    %v1710 = vunpack.c.l.b16 %v1563
    %v1711 = vunpack.c.h.b16 %v1563
    %v1712 = vunpack.c.l.b16 %v1564
    %v1713 = vunpack.c.h.b16 %v1564
    %v1714 = vunpack.c.l.b16 %v1565
    %v1715 = vunpack.c.h.b16 %v1565
    %v1716 = vunpack.c.l.b16 %v1566
    %v1717 = vunpack.c.h.b16 %v1566
    %v1718 = vunpack.c.l.b16 %v1567
    %v1719 = vunpack.c.h.b16 %v1567
    %v1720 = vunpack.c.l.b16 %v1568
    %v1721 = vunpack.c.h.b16 %v1568
    %v1722 = vunpack.c.l.b16 %v1569
    %v1723 = vunpack.c.h.b16 %v1569
    %v1724 = vunpack.c.l.b16 %v1570
    %v1725 = vunpack.c.h.b16 %v1570
    %v1726 = vunpack.c.l.b16 %v1571
    %v1727 = vunpack.c.h.b16 %v1571
    %v1728 = vunpack.c.l.b16 %v1572
    %v1729 = vunpack.c.h.b16 %v1572
    %v1730 = vunpack.c.l.b16 %v1573
    %v1731 = vunpack.c.h.b16 %v1573
    %v1732 = vunpack.c.l.b16 %v1574
    %v1733 = vunpack.c.h.b16 %v1574
    %v1734 = vunpack.c.l.b16 %v1575
    %v1735 = vunpack.c.h.b16 %v1575
    %v1736 = vunpack.c.l.b16 %v1576
    %v1737 = vunpack.c.h.b16 %v1576
    %v1738 = vunpack.c.l.b16 %v1577
    %v1739 = vunpack.c.h.b16 %v1577
    %v1740 = vunpack.c.l.b16 %v1578
    %v1741 = vunpack.c.h.b16 %v1578
    %v1742 = vunpack.c.l.b16 %v1579
    %v1743 = vunpack.c.h.b16 %v1579
    %v1744 = vunpack.c.l.b16 %v1580
    %v1745 = vunpack.c.h.b16 %v1580
    %v1746 = vunpack.c.l.b16 %v1581
    %v1747 = vunpack.c.h.b16 %v1581
    %v1748 = vunpack.c.l.b16 %v1582
    %v1749 = vunpack.c.h.b16 %v1582
    %v1750 = vunpack.c.l.b16 %v1583
    %v1751 = vunpack.c.h.b16 %v1583
    %v1752 = vunpack.c.l.b16 %v1584
    %v1753 = vunpack.c.h.b16 %v1584
    %v1754 = vunpack.c.l.b16 %v1585
    %v1755 = vunpack.c.h.b16 %v1585
    %v1756 = vunpack.c.l.b16 %v1586
    %v1757 = vunpack.c.h.b16 %v1586
    %v1758 = vunpack.c.l.b16 %v1587
    %v1759 = vunpack.c.h.b16 %v1587
    %v1760 = vpack.c.b16 %v1698, %v1696
    %v1761 = vpack.c.b16 %v1699, %v1697
    %v1762 = vpack.c.b16 %v1702, %v1700
    %v1763 = vpack.c.b16 %v1703, %v1701
    %v1764 = vpack.c.b16 %v1706, %v1704
    %v1765 = vpack.c.b16 %v1707, %v1705
    %v1766 = vpack.c.b16 %v1710, %v1708
    %v1767 = vpack.c.b16 %v1711, %v1709
    %v1768 = vpack.c.b16 %v1714, %v1712
    %v1769 = vpack.c.b16 %v1715, %v1713
    %v1770 = vpack.c.b16 %v1718, %v1716
    %v1771 = vpack.c.b16 %v1719, %v1717
    %v1772 = vpack.c.b16 %v1722, %v1720
    %v1773 = vpack.c.b16 %v1723, %v1721
    %v1774 = vpack.c.b16 %v1726, %v1724
    %v1775 = vpack.c.b16 %v1727, %v1725
    %v1776 = vpack.c.b16 %v1730, %v1728
    %v1777 = vpack.c.b16 %v1731, %v1729
    %v1778 = vpack.c.b16 %v1734, %v1732
    %v1779 = vpack.c.b16 %v1735, %v1733
    %v1780 = vpack.c.b16 %v1738, %v1736
    %v1781 = vpack.c.b16 %v1739, %v1737
    %v1782 = vpack.c.b16 %v1742, %v1740
    %v1783 = vpack.c.b16 %v1743, %v1741
    %v1784 = vpack.c.b16 %v1746, %v1744
    %v1785 = vpack.c.b16 %v1747, %v1745
    %v1786 = vpack.c.b16 %v1750, %v1748
    %v1787 = vpack.c.b16 %v1751, %v1749
    %v1788 = vpack.c.b16 %v1754, %v1752
    %v1789 = vpack.c.b16 %v1755, %v1753
    %v1790 = vpack.c.b16 %v1758, %v1756
    %v1791 = vpack.c.b16 %v1759, %v1757
    %1824 = vmatprep.subr.bf16.mxu0 %v1761
    %1825 = vmatpush1.bf16.msra.mxu0 %v1760
    %1826 = vmatprep.subr.bf16.mxu0 %v1763
    %1827 = vmatpush1.bf16.msra.mxu0 %v1762
    %1828 = vmatprep.subr.bf16.mxu0 %v1765
    %1829 = vmatpush1.bf16.msra.mxu0 %v1764
    %1830 = vmatprep.subr.bf16.mxu0 %v1767
    %1831 = vmatpush1.bf16.msra.mxu0 %v1766
    %1832 = vmatprep.subr.bf16.mxu0 %v1769
    %1833 = vmatpush1.bf16.msra.mxu0 %v1768
    %1834 = vmatprep.subr.bf16.mxu0 %v1771
    %1835 = vmatpush1.bf16.msra.mxu0 %v1770
    %1836 = vmatprep.subr.bf16.mxu0 %v1773
    %1837 = vmatpush1.bf16.msra.mxu0 %v1772
    %1838 = vmatprep.subr.bf16.mxu0 %v1775
    %1839 = vmatpush1.bf16.msra.mxu0 %v1774
    %1840 = vmatprep.subr.bf16.mxu0 %v1777
    %1841 = vmatpush1.bf16.msra.mxu0 %v1776
    %1842 = vmatprep.subr.bf16.mxu0 %v1779
    %1843 = vmatpush1.bf16.msra.mxu0 %v1778
    %1844 = vmatprep.subr.bf16.mxu0 %v1781
    %1845 = vmatpush1.bf16.msra.mxu0 %v1780
    %1846 = vmatprep.subr.bf16.mxu0 %v1783
    %1847 = vmatpush1.bf16.msra.mxu0 %v1782
    %1848 = vmatprep.subr.bf16.mxu0 %v1785
    %1849 = vmatpush1.bf16.msra.mxu0 %v1784
    %1850 = vmatprep.subr.bf16.mxu0 %v1787
    %1851 = vmatpush1.bf16.msra.mxu0 %v1786
    %1852 = vmatprep.subr.bf16.mxu0 %v1789
    %1853 = vmatpush1.bf16.msra.mxu0 %v1788
    %1854 = vmatprep.subr.bf16.mxu0 %v1791
    %1855 = vmatpush1.bf16.msra.mxu0 %v1790
    %1856 = vmatprep.mubr.bf16.mxu0 %v1590
    %1857 = vmatmul.mubr.bf16.gmra.mrb[0].mxu0 %v1589
    %v1858 = vpop.f32.mrb[0].mxu0
    %v1859 = vadd.f32 %v1657, %v1858
    %v1860 = vpop.f32.mrb[0].mxu0
    %v1861 = vadd.f32 %v1661, %v1860
    %v1862 = vpop.f32.mrb[0].mxu0
    %v1863 = vadd.f32 %v1657, %v1862
    %v1864 = vpop.f32.mrb[0].mxu0
    %v1865 = vadd.f32 %v1661, %v1864
    %1866 = vmatprep.mubr.bf16.mxu0 %v1592
    %1867 = vmatmul.mubr.bf16.gmra.mrb[0].mxu0 %v1591
    %v1868 = vpop.f32.mrb[0].mxu0
    %v1869 = vadd.f32 %v1657, %v1868
    %v1870 = vpop.f32.mrb[0].mxu0
    %v1871 = vadd.f32 %v1661, %v1870
    %v1872 = vpop.f32.mrb[0].mxu0
    %v1873 = vadd.f32 %v1657, %v1872
    %v1874 = vpop.f32.mrb[0].mxu0
    %v1875 = vadd.f32 %v1661, %v1874
    %1876 = vmatprep.mubr.bf16.mxu0 %v1594
    %1877 = vmatmul.mubr.bf16.gmra.mrb[0].mxu0 %v1593
    %v1878 = vpop.f32.mrb[0].mxu0
    %v1879 = vadd.f32 %v1657, %v1878
    %v1880 = vpop.f32.mrb[0].mxu0
    %v1881 = vadd.f32 %v1661, %v1880
    %v1882 = vpop.f32.mrb[0].mxu0
    %v1883 = vadd.f32 %v1657, %v1882
    %v1884 = vpop.f32.mrb[0].mxu0
    %v1885 = vadd.f32 %v1661, %v1884
    %1886 = vmatprep.mubr.bf16.mxu0 %v1596
    %1887 = vmatmul.mubr.bf16.gmra.mrb[0].mxu0 %v1595
    %v1888 = vpop.f32.mrb[0].mxu0
    %v1889 = vadd.f32 %v1657, %v1888
    %v1890 = vpop.f32.mrb[0].mxu0
    %v1891 = vadd.f32 %v1661, %v1890
    %v1892 = vpop.f32.mrb[0].mxu0
    %v1893 = vadd.f32 %v1657, %v1892
    %v1894 = vpop.f32.mrb[0].mxu0
    %v1895 = vadd.f32 %v1661, %v1894
    %1896 = vmatprep.mubr.bf16.mxu0 %v1598
    %1897 = vmatmul.mubr.bf16.gmra.mrb[0].mxu0 %v1597
    %v1898 = vpop.f32.mrb[0].mxu0
    %v1899 = vadd.f32 %v1657, %v1898
    %v1900 = vpop.f32.mrb[0].mxu0
    %v1901 = vadd.f32 %v1661, %v1900
    %v1902 = vpop.f32.mrb[0].mxu0
    %v1903 = vadd.f32 %v1657, %v1902
    %v1904 = vpop.f32.mrb[0].mxu0
    %v1905 = vadd.f32 %v1661, %v1904
    %1906 = vmatprep.mubr.bf16.mxu0 %v1600
    %1907 = vmatmul.mubr.bf16.gmra.mrb[0].mxu0 %v1599
    %v1908 = vpop.f32.mrb[0].mxu0
    %v1909 = vadd.f32 %v1657, %v1908
    %v1910 = vpop.f32.mrb[0].mxu0
    %v1911 = vadd.f32 %v1661, %v1910
    %v1912 = vpop.f32.mrb[0].mxu0
    %v1913 = vadd.f32 %v1657, %v1912
    %v1914 = vpop.f32.mrb[0].mxu0
    %v1915 = vadd.f32 %v1661, %v1914
    %1916 = vmatprep.mubr.bf16.mxu0 %v1602
    %1917 = vmatmul.mubr.bf16.gmra.mrb[0].mxu0 %v1601
    %v1918 = vpop.f32.mrb[0].mxu0
    %v1919 = vadd.f32 %v1657, %v1918
    %v1920 = vpop.f32.mrb[0].mxu0
    %v1921 = vadd.f32 %v1661, %v1920
    %v1922 = vpop.f32.mrb[0].mxu0
    %v1923 = vadd.f32 %v1657, %v1922
    %v1924 = vpop.f32.mrb[0].mxu0
    %v1925 = vadd.f32 %v1661, %v1924
    %1926 = vmatprep.mubr.bf16.mxu0 %v1604
    %1927 = vmatmul.mubr.bf16.gmra.mrb[0].mxu0 %v1603
    %v1928 = vpop.f32.mrb[0].mxu0
    %v1929 = vadd.f32 %v1657, %v1928
    %v1930 = vpop.f32.mrb[0].mxu0
    %v1931 = vadd.f32 %v1661, %v1930
    %v1932 = vpop.f32.mrb[0].mxu0
    %v1933 = vadd.f32 %v1657, %v1932
    %v1934 = vpop.f32.mrb[0].mxu0
    %v1935 = vadd.f32 %v1661, %v1934
    %1936 = vmatprep.mubr.bf16.mxu0 %v1606
    %1937 = vmatmul.mubr.bf16.gmra.mrb[0].mxu0 %v1605
    %v1938 = vpop.f32.mrb[0].mxu0
    %v1939 = vadd.f32 %v1657, %v1938
    %v1940 = vpop.f32.mrb[0].mxu0
    %v1941 = vadd.f32 %v1661, %v1940
    %v1942 = vpop.f32.mrb[0].mxu0
    %v1943 = vadd.f32 %v1657, %v1942
    %v1944 = vpop.f32.mrb[0].mxu0
    %v1945 = vadd.f32 %v1661, %v1944
    %1946 = vmatprep.mubr.bf16.mxu0 %v1608
    %1947 = vmatmul.mubr.bf16.gmra.mrb[0].mxu0 %v1607
    %v1948 = vpop.f32.mrb[0].mxu0
    %v1949 = vadd.f32 %v1657, %v1948
    %v1950 = vpop.f32.mrb[0].mxu0
    %v1951 = vadd.f32 %v1661, %v1950
    %v1952 = vpop.f32.mrb[0].mxu0
    %v1953 = vadd.f32 %v1657, %v1952
    %v1954 = vpop.f32.mrb[0].mxu0
    %v1955 = vadd.f32 %v1661, %v1954
    %1956 = vmatprep.mubr.bf16.mxu0 %v1610
    %1957 = vmatmul.mubr.bf16.gmra.mrb[0].mxu0 %v1609
    %v1958 = vpop.f32.mrb[0].mxu0
    %v1959 = vadd.f32 %v1657, %v1958
    %v1960 = vpop.f32.mrb[0].mxu0
    %v1961 = vadd.f32 %v1661, %v1960
    %v1962 = vpop.f32.mrb[0].mxu0
    %v1963 = vadd.f32 %v1657, %v1962
    %v1964 = vpop.f32.mrb[0].mxu0
    %v1965 = vadd.f32 %v1661, %v1964
    %1966 = vmatprep.mubr.bf16.mxu0 %v1612
    %1967 = vmatmul.mubr.bf16.gmra.mrb[0].mxu0 %v1611
    %v1968 = vpop.f32.mrb[0].mxu0
    %v1969 = vadd.f32 %v1657, %v1968
    %v1970 = vpop.f32.mrb[0].mxu0
    %v1971 = vadd.f32 %v1661, %v1970
    %v1972 = vpop.f32.mrb[0].mxu0
    %v1973 = vadd.f32 %v1657, %v1972
    %v1974 = vpop.f32.mrb[0].mxu0
    %v1975 = vadd.f32 %v1661, %v1974
    %1976 = vmatprep.mubr.bf16.mxu0 %v1614
    %1977 = vmatmul.mubr.bf16.gmra.mrb[0].mxu0 %v1613
    %v1978 = vpop.f32.mrb[0].mxu0
    %v1979 = vadd.f32 %v1657, %v1978
    %v1980 = vpop.f32.mrb[0].mxu0
    %v1981 = vadd.f32 %v1661, %v1980
    %v1982 = vpop.f32.mrb[0].mxu0
    %v1983 = vadd.f32 %v1657, %v1982
    %v1984 = vpop.f32.mrb[0].mxu0
    %v1985 = vadd.f32 %v1661, %v1984
    %1986 = vmatprep.mubr.bf16.mxu0 %v1616
    %1987 = vmatmul.mubr.bf16.gmra.mrb[0].mxu0 %v1615
    %v1988 = vpop.f32.mrb[0].mxu0
    %v1989 = vadd.f32 %v1657, %v1988
    %v1990 = vpop.f32.mrb[0].mxu0
    %v1991 = vadd.f32 %v1661, %v1990
    %v1992 = vpop.f32.mrb[0].mxu0
    %v1993 = vadd.f32 %v1657, %v1992
    %v1994 = vpop.f32.mrb[0].mxu0
    %v1995 = vadd.f32 %v1661, %v1994
    %1996 = vmatprep.mubr.bf16.mxu0 %v1618
    %1997 = vmatmul.mubr.bf16.gmra.mrb[0].mxu0 %v1617
    %v1998 = vpop.f32.mrb[0].mxu0
    %v1999 = vadd.f32 %v1657, %v1998
    %v2000 = vpop.f32.mrb[0].mxu0
    %v2001 = vadd.f32 %v1661, %v2000
    %v2002 = vpop.f32.mrb[0].mxu0
    %v2003 = vadd.f32 %v1657, %v2002
    %v2004 = vpop.f32.mrb[0].mxu0
    %v2005 = vadd.f32 %v1661, %v2004
    %2006 = vmatprep.mubr.bf16.mxu0 %v1620
    %2007 = vmatmul.mubr.bf16.gmra.mrb[0].mxu0 %v1619
    %v2008 = vpop.f32.mrb[0].mxu0
    %v2009 = vadd.f32 %v1657, %v2008
    %v2010 = vpop.f32.mrb[0].mxu0
    %v2011 = vadd.f32 %v1661, %v2010
    %v2012 = vpop.f32.mrb[0].mxu0
    %v2013 = vadd.f32 %v1657, %v2012
    %v2014 = vpop.f32.mrb[0].mxu0
    %v2015 = vadd.f32 %v1661, %v2014
    %2016 = vmatprep.mubr.bf16.mxu0 %v1622
    %2017 = vmatmul.mubr.bf16.gmra.mrb[0].mxu0 %v1621
    %v2018 = vpop.f32.mrb[0].mxu0
    %v2019 = vadd.f32 %v1657, %v2018
    %v2020 = vpop.f32.mrb[0].mxu0
    %v2021 = vadd.f32 %v1661, %v2020
    %v2022 = vpop.f32.mrb[0].mxu0
    %v2023 = vadd.f32 %v1657, %v2022
    %v2024 = vpop.f32.mrb[0].mxu0
    %v2025 = vadd.f32 %v1661, %v2024
    %2026 = vmatprep.mubr.bf16.mxu0 %v1624
    %2027 = vmatmul.mubr.bf16.gmra.mrb[0].mxu0 %v1623
    %v2028 = vpop.f32.mrb[0].mxu0
    %v2029 = vadd.f32 %v1657, %v2028
    %v2030 = vpop.f32.mrb[0].mxu0
    %v2031 = vadd.f32 %v1661, %v2030
    %v2032 = vpop.f32.mrb[0].mxu0
    %v2033 = vadd.f32 %v1657, %v2032
    %v2034 = vpop.f32.mrb[0].mxu0
    %v2035 = vadd.f32 %v1661, %v2034
    %2036 = vmatprep.mubr.bf16.mxu0 %v1626
    %2037 = vmatmul.mubr.bf16.gmra.mrb[0].mxu0 %v1625
    %v2038 = vpop.f32.mrb[0].mxu0
    %v2039 = vadd.f32 %v1657, %v2038
    %v2040 = vpop.f32.mrb[0].mxu0
    %v2041 = vadd.f32 %v1661, %v2040
    %v2042 = vpop.f32.mrb[0].mxu0
    %v2043 = vadd.f32 %v1657, %v2042
    %v2044 = vpop.f32.mrb[0].mxu0
    %v2045 = vadd.f32 %v1661, %v2044
    %2046 = vmatprep.mubr.bf16.mxu0 %v1628
    %2047 = vmatmul.mubr.bf16.gmra.mrb[0].mxu0 %v1627
    %v2048 = vpop.f32.mrb[0].mxu0
    %v2049 = vadd.f32 %v1657, %v2048
    %v2050 = vpop.f32.mrb[0].mxu0
    %v2051 = vadd.f32 %v1661, %v2050
    %v2052 = vpop.f32.mrb[0].mxu0
    %v2053 = vadd.f32 %v1657, %v2052
    %v2054 = vpop.f32.mrb[0].mxu0
    %v2055 = vadd.f32 %v1661, %v2054
    %2056 = vmatprep.mubr.bf16.mxu0 %v1630
    %2057 = vmatmul.mubr.bf16.gmra.mrb[0].mxu0 %v1629
    %v2058 = vpop.f32.mrb[0].mxu0
    %v2059 = vadd.f32 %v1657, %v2058
    %v2060 = vpop.f32.mrb[0].mxu0
    %v2061 = vadd.f32 %v1661, %v2060
    %v2062 = vpop.f32.mrb[0].mxu0
    %v2063 = vadd.f32 %v1657, %v2062
    %v2064 = vpop.f32.mrb[0].mxu0
    %v2065 = vadd.f32 %v1661, %v2064
    %2066 = vmatprep.mubr.bf16.mxu0 %v1632
    %2067 = vmatmul.mubr.bf16.gmra.mrb[0].mxu0 %v1631
    %v2068 = vpop.f32.mrb[0].mxu0
    %v2069 = vadd.f32 %v1657, %v2068
    %v2070 = vpop.f32.mrb[0].mxu0
    %v2071 = vadd.f32 %v1661, %v2070
    %v2072 = vpop.f32.mrb[0].mxu0
    %v2073 = vadd.f32 %v1657, %v2072
    %v2074 = vpop.f32.mrb[0].mxu0
    %v2075 = vadd.f32 %v1661, %v2074
    %2076 = vmatprep.mubr.bf16.mxu0 %v1634
    %2077 = vmatmul.mubr.bf16.gmra.mrb[0].mxu0 %v1633
    %v2078 = vpop.f32.mrb[0].mxu0
    %v2079 = vadd.f32 %v1657, %v2078
    %v2080 = vpop.f32.mrb[0].mxu0
    %v2081 = vadd.f32 %v1661, %v2080
    %v2082 = vpop.f32.mrb[0].mxu0
    %v2083 = vadd.f32 %v1657, %v2082
    %v2084 = vpop.f32.mrb[0].mxu0
    %v2085 = vadd.f32 %v1661, %v2084
    %2086 = vmatprep.mubr.bf16.mxu0 %v1636
    %2087 = vmatmul.mubr.bf16.gmra.mrb[0].mxu0 %v1635
    %v2088 = vpop.f32.mrb[0].mxu0
    %v2089 = vadd.f32 %v1657, %v2088
    %v2090 = vpop.f32.mrb[0].mxu0
    %v2091 = vadd.f32 %v1661, %v2090
    %v2092 = vpop.f32.mrb[0].mxu0
    %v2093 = vadd.f32 %v1657, %v2092
    %v2094 = vpop.f32.mrb[0].mxu0
    %v2095 = vadd.f32 %v1661, %v2094
    %2096 = vmatprep.mubr.bf16.mxu0 %v1638
    %2097 = vmatmul.mubr.bf16.gmra.mrb[0].mxu0 %v1637
    %v2098 = vpop.f32.mrb[0].mxu0
    %v2099 = vadd.f32 %v1657, %v2098
    %v2100 = vpop.f32.mrb[0].mxu0
    %v2101 = vadd.f32 %v1661, %v2100
    %v2102 = vpop.f32.mrb[0].mxu0
    %v2103 = vadd.f32 %v1657, %v2102
    %v2104 = vpop.f32.mrb[0].mxu0
    %v2105 = vadd.f32 %v1661, %v2104
    %2106 = vmatprep.mubr.bf16.mxu0 %v1640
    %2107 = vmatmul.mubr.bf16.gmra.mrb[0].mxu0 %v1639
    %v2108 = vpop.f32.mrb[0].mxu0
    %v2109 = vadd.f32 %v1657, %v2108
    %v2110 = vpop.f32.mrb[0].mxu0
    %v2111 = vadd.f32 %v1661, %v2110
    %v2112 = vpop.f32.mrb[0].mxu0
    %v2113 = vadd.f32 %v1657, %v2112
    %v2114 = vpop.f32.mrb[0].mxu0
    %v2115 = vadd.f32 %v1661, %v2114
    %2116 = vmatprep.mubr.bf16.mxu0 %v1642
    %2117 = vmatmul.mubr.bf16.gmra.mrb[0].mxu0 %v1641
    %v2118 = vpop.f32.mrb[0].mxu0
    %v2119 = vadd.f32 %v1657, %v2118
    %v2120 = vpop.f32.mrb[0].mxu0
    %v2121 = vadd.f32 %v1661, %v2120
    %v2122 = vpop.f32.mrb[0].mxu0
    %v2123 = vadd.f32 %v1657, %v2122
    %v2124 = vpop.f32.mrb[0].mxu0
    %v2125 = vadd.f32 %v1661, %v2124
    %2126 = vmatprep.mubr.bf16.mxu0 %v1644
    %2127 = vmatmul.mubr.bf16.gmra.mrb[0].mxu0 %v1643
    %v2128 = vpop.f32.mrb[0].mxu0
    %v2129 = vadd.f32 %v1657, %v2128
    %v2130 = vpop.f32.mrb[0].mxu0
    %v2131 = vadd.f32 %v1661, %v2130
    %v2132 = vpop.f32.mrb[0].mxu0
    %v2133 = vadd.f32 %v1657, %v2132
    %v2134 = vpop.f32.mrb[0].mxu0
    %v2135 = vadd.f32 %v1661, %v2134
    %2136 = vmatprep.mubr.bf16.mxu0 %v1646
    %2137 = vmatmul.mubr.bf16.gmra.mrb[0].mxu0 %v1645
    %v2138 = vpop.f32.mrb[0].mxu0
    %v2139 = vadd.f32 %v1657, %v2138
    %v2140 = vpop.f32.mrb[0].mxu0
    %v2141 = vadd.f32 %v1661, %v2140
    %v2142 = vpop.f32.mrb[0].mxu0
    %v2143 = vadd.f32 %v1657, %v2142
    %v2144 = vpop.f32.mrb[0].mxu0
    %v2145 = vadd.f32 %v1661, %v2144
    %2146 = vmatprep.mubr.bf16.mxu0 %v1648
    %2147 = vmatmul.mubr.bf16.gmra.mrb[0].mxu0 %v1647
    %v2148 = vpop.f32.mrb[0].mxu0
    %v2149 = vadd.f32 %v1657, %v2148
    %v2150 = vpop.f32.mrb[0].mxu0
    %v2151 = vadd.f32 %v1661, %v2150
    %v2152 = vpop.f32.mrb[0].mxu0
    %v2153 = vadd.f32 %v1657, %v2152
    %v2154 = vpop.f32.mrb[0].mxu0
    %v2155 = vadd.f32 %v1661, %v2154
    %2156 = vmatprep.mubr.bf16.mxu0 %v1650
    %2157 = vmatmul.mubr.bf16.gmra.mrb[0].mxu0 %v1649
    %v2158 = vpop.f32.mrb[0].mxu0
    %v2159 = vadd.f32 %v1657, %v2158
    %v2160 = vpop.f32.mrb[0].mxu0
    %v2161 = vadd.f32 %v1661, %v2160
    %v2162 = vpop.f32.mrb[0].mxu0
    %v2163 = vadd.f32 %v1657, %v2162
    %v2164 = vpop.f32.mrb[0].mxu0
    %v2165 = vadd.f32 %v1661, %v2164
    %2166 = vmatprep.mubr.bf16.mxu0 %v1652
    %2167 = vmatmul.mubr.bf16.gmra.mrb[0].mxu0 %v1651
    %v2168 = vpop.f32.mrb[0].mxu0
    %v2169 = vadd.f32 %v1657, %v2168
    %v2170 = vpop.f32.mrb[0].mxu0
    %v2171 = vadd.f32 %v1661, %v2170
    %v2172 = vpop.f32.mrb[0].mxu0
    %v2173 = vadd.f32 %v1657, %v2172
    %v2174 = vpop.f32.mrb[0].mxu0
    %v2175 = vadd.f32 %v1661, %v2174
    %2176 = vdwg.mxu0
    %v2177 = vmax.f32 %v1859, 0.0
    %v2178 = vmax.f32 %v1861, 0.0
    %v2179 = vmax.f32 %v1863, 0.0
    %v2180 = vmax.f32 %v1865, 0.0
    %v2181 = vmax.f32 %v1869, 0.0
    %v2182 = vmax.f32 %v1871, 0.0
    %v2183 = vmax.f32 %v1873, 0.0
    %v2184 = vmax.f32 %v1875, 0.0
    %v2185 = vmax.f32 %v1879, 0.0
    %v2186 = vmax.f32 %v1881, 0.0
    %v2187 = vmax.f32 %v1883, 0.0
    %v2188 = vmax.f32 %v1885, 0.0
    %v2189 = vmax.f32 %v1889, 0.0
    %v2190 = vmax.f32 %v1891, 0.0
    %v2191 = vmax.f32 %v1893, 0.0
    %v2192 = vmax.f32 %v1895, 0.0
    %v2193 = vmax.f32 %v1899, 0.0
    %v2194 = vmax.f32 %v1901, 0.0
    %v2195 = vmax.f32 %v1903, 0.0
    %v2196 = vmax.f32 %v1905, 0.0
    %v2197 = vmax.f32 %v1909, 0.0
    %v2198 = vmax.f32 %v1911, 0.0
    %v2199 = vmax.f32 %v1913, 0.0
    %v2200 = vmax.f32 %v1915, 0.0
    %v2201 = vmax.f32 %v1919, 0.0
    %v2202 = vmax.f32 %v1921, 0.0
    %v2203 = vmax.f32 %v1923, 0.0
    %v2204 = vmax.f32 %v1925, 0.0
    %v2205 = vmax.f32 %v1929, 0.0
    %v2206 = vmax.f32 %v1931, 0.0
    %v2207 = vmax.f32 %v1933, 0.0
    %v2208 = vmax.f32 %v1935, 0.0
    %v2209 = vmax.f32 %v1939, 0.0
    %v2210 = vmax.f32 %v1941, 0.0
    %v2211 = vmax.f32 %v1943, 0.0
    %v2212 = vmax.f32 %v1945, 0.0
    %v2213 = vmax.f32 %v1949, 0.0
    %v2214 = vmax.f32 %v1951, 0.0
    %v2215 = vmax.f32 %v1953, 0.0
    %v2216 = vmax.f32 %v1955, 0.0
    %v2217 = vmax.f32 %v1959, 0.0
    %v2218 = vmax.f32 %v1961, 0.0
    %v2219 = vmax.f32 %v1963, 0.0
    %v2220 = vmax.f32 %v1965, 0.0
    %v2221 = vmax.f32 %v1969, 0.0
    %v2222 = vmax.f32 %v1971, 0.0
    %v2223 = vmax.f32 %v1973, 0.0
    %v2224 = vmax.f32 %v1975, 0.0
    %v2225 = vmax.f32 %v1979, 0.0
    %v2226 = vmax.f32 %v1981, 0.0
    %v2227 = vmax.f32 %v1983, 0.0
    %v2228 = vmax.f32 %v1985, 0.0
    %v2229 = vmax.f32 %v1989, 0.0
    %v2230 = vmax.f32 %v1991, 0.0
    %v2231 = vmax.f32 %v1993, 0.0
    %v2232 = vmax.f32 %v1995, 0.0
    %v2233 = vmax.f32 %v1999, 0.0
    %v2234 = vmax.f32 %v2001, 0.0
    %v2235 = vmax.f32 %v2003, 0.0
    %v2236 = vmax.f32 %v2005, 0.0
    %v2237 = vmax.f32 %v2009, 0.0
    %v2238 = vmax.f32 %v2011, 0.0
    %v2239 = vmax.f32 %v2013, 0.0
    %v2240 = vmax.f32 %v2015, 0.0
    %v2241 = vmax.f32 %v2019, 0.0
    %v2242 = vmax.f32 %v2021, 0.0
    %v2243 = vmax.f32 %v2023, 0.0
    %v2244 = vmax.f32 %v2025, 0.0
    %v2245 = vmax.f32 %v2029, 0.0
    %v2246 = vmax.f32 %v2031, 0.0
    %v2247 = vmax.f32 %v2033, 0.0
    %v2248 = vmax.f32 %v2035, 0.0
    %v2249 = vmax.f32 %v2039, 0.0
    %v2250 = vmax.f32 %v2041, 0.0
    %v2251 = vmax.f32 %v2043, 0.0
    %v2252 = vmax.f32 %v2045, 0.0
    %v2253 = vmax.f32 %v2049, 0.0
    %v2254 = vmax.f32 %v2051, 0.0
    %v2255 = vmax.f32 %v2053, 0.0
    %v2256 = vmax.f32 %v2055, 0.0
    %v2257 = vmax.f32 %v2059, 0.0
    %v2258 = vmax.f32 %v2061, 0.0
    %v2259 = vmax.f32 %v2063, 0.0
    %v2260 = vmax.f32 %v2065, 0.0
    %v2261 = vmax.f32 %v2069, 0.0
    %v2262 = vmax.f32 %v2071, 0.0
    %v2263 = vmax.f32 %v2073, 0.0
    %v2264 = vmax.f32 %v2075, 0.0
    %v2265 = vmax.f32 %v2079, 0.0
    %v2266 = vmax.f32 %v2081, 0.0
    %v2267 = vmax.f32 %v2083, 0.0
    %v2268 = vmax.f32 %v2085, 0.0
    %v2269 = vmax.f32 %v2089, 0.0
    %v2270 = vmax.f32 %v2091, 0.0
    %v2271 = vmax.f32 %v2093, 0.0
    %v2272 = vmax.f32 %v2095, 0.0
    %v2273 = vmax.f32 %v2099, 0.0
    %v2274 = vmax.f32 %v2101, 0.0
    %v2275 = vmax.f32 %v2103, 0.0
    %v2276 = vmax.f32 %v2105, 0.0
    %v2277 = vmax.f32 %v2109, 0.0
    %v2278 = vmax.f32 %v2111, 0.0
    %v2279 = vmax.f32 %v2113, 0.0
    %v2280 = vmax.f32 %v2115, 0.0
    %v2281 = vmax.f32 %v2119, 0.0
    %v2282 = vmax.f32 %v2121, 0.0
    %v2283 = vmax.f32 %v2123, 0.0
    %v2284 = vmax.f32 %v2125, 0.0
    %v2285 = vmax.f32 %v2129, 0.0
    %v2286 = vmax.f32 %v2131, 0.0
    %v2287 = vmax.f32 %v2133, 0.0
    %v2288 = vmax.f32 %v2135, 0.0
    %v2289 = vmax.f32 %v2139, 0.0
    %v2290 = vmax.f32 %v2141, 0.0
    %v2291 = vmax.f32 %v2143, 0.0
    %v2292 = vmax.f32 %v2145, 0.0
    %v2293 = vmax.f32 %v2149, 0.0
    %v2294 = vmax.f32 %v2151, 0.0
    %v2295 = vmax.f32 %v2153, 0.0
    %v2296 = vmax.f32 %v2155, 0.0
    %v2297 = vmax.f32 %v2159, 0.0
    %v2298 = vmax.f32 %v2161, 0.0
    %v2299 = vmax.f32 %v2163, 0.0
    %v2300 = vmax.f32 %v2165, 0.0
    %v2301 = vmax.f32 %v2169, 0.0
    %v2302 = vmax.f32 %v2171, 0.0
    %v2303 = vmax.f32 %v2173, 0.0
    %v2304 = vmax.f32 %v2175, 0.0
    %v2305 = vld [vmem:[#allocation10] sm:$0xff]
    %v2306 = vld [vmem:[#allocation10 + $0x8] sm:$0xff]
    %v2307 = vld [vmem:[#allocation10 + $0x10] sm:$0xff]
    %v2308 = vld [vmem:[#allocation10 + $0x18] sm:$0xff]
    %v2309 = vld [vmem:[#allocation10 + $0x20] sm:$0xff]
    %v2310 = vld [vmem:[#allocation10 + $0x28] sm:$0xff]
    %v2311 = vld [vmem:[#allocation10 + $0x30] sm:$0xff]
    %v2312 = vld [vmem:[#allocation10 + $0x38] sm:$0xff]
    %v2313 = vld [vmem:[#allocation10 + $0x40] sm:$0xff]
    %v2314 = vld [vmem:[#allocation10 + $0x48] sm:$0xff]
    %v2315 = vld [vmem:[#allocation10 + $0x50] sm:$0xff]
    %v2316 = vld [vmem:[#allocation10 + $0x58] sm:$0xff]
    %v2317 = vld [vmem:[#allocation10 + $0x60] sm:$0xff]
    %v2318 = vld [vmem:[#allocation10 + $0x68] sm:$0xff]
    %v2319 = vld [vmem:[#allocation10 + $0x70] sm:$0xff]
    %v2320 = vld [vmem:[#allocation10 + $0x78] sm:$0xff]
    %v2321 = vld [vmem:[#allocation10 + $0x80] sm:$0xff]
    %v2322 = vld [vmem:[#allocation10 + $0x88] sm:$0xff]
    %v2323 = vld [vmem:[#allocation10 + $0x90] sm:$0xff]
    %v2324 = vld [vmem:[#allocation10 + $0x98] sm:$0xff]
    %v2325 = vld [vmem:[#allocation10 + $0xa0] sm:$0xff]
    %v2326 = vld [vmem:[#allocation10 + $0xa8] sm:$0xff]
    %v2327 = vld [vmem:[#allocation10 + $0xb0] sm:$0xff]
    %v2328 = vld [vmem:[#allocation10 + $0xb8] sm:$0xff]
    %v2329 = vld [vmem:[#allocation10 + $0xc0] sm:$0xff]
    %v2330 = vld [vmem:[#allocation10 + $0xc8] sm:$0xff]
    %v2331 = vld [vmem:[#allocation10 + $0xd0] sm:$0xff]
    %v2332 = vld [vmem:[#allocation10 + $0xd8] sm:$0xff]
    %v2333 = vld [vmem:[#allocation10 + $0xe0] sm:$0xff]
    %v2334 = vld [vmem:[#allocation10 + $0xe8] sm:$0xff]
    %v2335 = vld [vmem:[#allocation10 + $0xf0] sm:$0xff]
    %v2336 = vld [vmem:[#allocation10 + $0xf8] sm:$0xff]
    %v2337 = vld [vmem:[%s8] sm:$0x3]
    %v2338 = vpack.c.bf16 %v2179, %v2177
    %v2339 = vpack.c.bf16 %v2180, %v2178
    %v2340 = vpack.c.bf16 %v2183, %v2181
    %v2341 = vpack.c.bf16 %v2184, %v2182
    %v2342 = vpack.c.bf16 %v2187, %v2185
    %v2343 = vpack.c.bf16 %v2188, %v2186
    %v2344 = vpack.c.bf16 %v2191, %v2189
    %v2345 = vpack.c.bf16 %v2192, %v2190
    %v2346 = vpack.c.bf16 %v2195, %v2193
    %v2347 = vpack.c.bf16 %v2196, %v2194
    %v2348 = vpack.c.bf16 %v2199, %v2197
    %v2349 = vpack.c.bf16 %v2200, %v2198
    %v2350 = vpack.c.bf16 %v2203, %v2201
    %v2351 = vpack.c.bf16 %v2204, %v2202
    %v2352 = vpack.c.bf16 %v2207, %v2205
    %v2353 = vpack.c.bf16 %v2208, %v2206
    %v2354 = vpack.c.bf16 %v2211, %v2209
    %v2355 = vpack.c.bf16 %v2212, %v2210
    %v2356 = vpack.c.bf16 %v2215, %v2213
    %v2357 = vpack.c.bf16 %v2216, %v2214
    %v2358 = vpack.c.bf16 %v2219, %v2217
    %v2359 = vpack.c.bf16 %v2220, %v2218
    %v2360 = vpack.c.bf16 %v2223, %v2221
    %v2361 = vpack.c.bf16 %v2224, %v2222
    %v2362 = vpack.c.bf16 %v2227, %v2225
    %v2363 = vpack.c.bf16 %v2228, %v2226
    %v2364 = vpack.c.bf16 %v2231, %v2229
    %v2365 = vpack.c.bf16 %v2232, %v2230
    %v2366 = vpack.c.bf16 %v2235, %v2233
    %v2367 = vpack.c.bf16 %v2236, %v2234
    %v2368 = vpack.c.bf16 %v2239, %v2237
    %v2369 = vpack.c.bf16 %v2240, %v2238
    %v2370 = vpack.c.bf16 %v2243, %v2241
    %v2371 = vpack.c.bf16 %v2244, %v2242
    %v2372 = vpack.c.bf16 %v2247, %v2245
    %v2373 = vpack.c.bf16 %v2248, %v2246
    %v2374 = vpack.c.bf16 %v2251, %v2249
    %v2375 = vpack.c.bf16 %v2252, %v2250
    %v2376 = vpack.c.bf16 %v2255, %v2253
    %v2377 = vpack.c.bf16 %v2256, %v2254
    %v2378 = vpack.c.bf16 %v2259, %v2257
    %v2379 = vpack.c.bf16 %v2260, %v2258
    %v2380 = vpack.c.bf16 %v2263, %v2261
    %v2381 = vpack.c.bf16 %v2264, %v2262
    %v2382 = vpack.c.bf16 %v2267, %v2265
    %v2383 = vpack.c.bf16 %v2268, %v2266
    %v2384 = vpack.c.bf16 %v2271, %v2269
    %v2385 = vpack.c.bf16 %v2272, %v2270
    %v2386 = vpack.c.bf16 %v2275, %v2273
    %v2387 = vpack.c.bf16 %v2276, %v2274
    %v2388 = vpack.c.bf16 %v2279, %v2277
    %v2389 = vpack.c.bf16 %v2280, %v2278
    %v2390 = vpack.c.bf16 %v2283, %v2281
    %v2391 = vpack.c.bf16 %v2284, %v2282
    %v2392 = vpack.c.bf16 %v2287, %v2285
    %v2393 = vpack.c.bf16 %v2288, %v2286
    %v2394 = vpack.c.bf16 %v2291, %v2289
    %v2395 = vpack.c.bf16 %v2292, %v2290
    %v2396 = vpack.c.bf16 %v2295, %v2293
    %v2397 = vpack.c.bf16 %v2296, %v2294
    %v2398 = vpack.c.bf16 %v2299, %v2297
    %v2399 = vpack.c.bf16 %v2300, %v2298
    %v2400 = vpack.c.bf16 %v2303, %v2301
    %v2401 = vpack.c.bf16 %v2304, %v2302
    %v2403 = vlaneseq
    %v2404 = vshrl.u32 %v2403, 7
    %v2405 = vsub.s32 0, %v2404
    %v2406 = vrot.slane %v2337, %v2405
    %v2407 = vlaneseq
    %v2408 = vshrl.u32 %v2407, 7
    %v2409 = vsub.s32 1, %v2408
    %v2410 = vrot.slane %v2337, %v2409
    %v2445 = vunpack.c.l.b16 %v2305
    %v2446 = vunpack.c.h.b16 %v2305
    %v2447 = vunpack.c.l.b16 %v2306
    %v2448 = vunpack.c.h.b16 %v2306
    %v2449 = vunpack.c.l.b16 %v2307
    %v2450 = vunpack.c.h.b16 %v2307
    %v2451 = vunpack.c.l.b16 %v2308
    %v2452 = vunpack.c.h.b16 %v2308
    %v2453 = vunpack.c.l.b16 %v2309
    %v2454 = vunpack.c.h.b16 %v2309
    %v2455 = vunpack.c.l.b16 %v2310
    %v2456 = vunpack.c.h.b16 %v2310
    %v2457 = vunpack.c.l.b16 %v2311
    %v2458 = vunpack.c.h.b16 %v2311
    %v2459 = vunpack.c.l.b16 %v2312
    %v2460 = vunpack.c.h.b16 %v2312
    %v2461 = vunpack.c.l.b16 %v2313
    %v2462 = vunpack.c.h.b16 %v2313
    %v2463 = vunpack.c.l.b16 %v2314
    %v2464 = vunpack.c.h.b16 %v2314
    %v2465 = vunpack.c.l.b16 %v2315
    %v2466 = vunpack.c.h.b16 %v2315
    %v2467 = vunpack.c.l.b16 %v2316
    %v2468 = vunpack.c.h.b16 %v2316
    %v2469 = vunpack.c.l.b16 %v2317
    %v2470 = vunpack.c.h.b16 %v2317
    %v2471 = vunpack.c.l.b16 %v2318
    %v2472 = vunpack.c.h.b16 %v2318
    %v2473 = vunpack.c.l.b16 %v2319
    %v2474 = vunpack.c.h.b16 %v2319
    %v2475 = vunpack.c.l.b16 %v2320
    %v2476 = vunpack.c.h.b16 %v2320
    %v2477 = vunpack.c.l.b16 %v2321
    %v2478 = vunpack.c.h.b16 %v2321
    %v2479 = vunpack.c.l.b16 %v2322
    %v2480 = vunpack.c.h.b16 %v2322
    %v2481 = vunpack.c.l.b16 %v2323
    %v2482 = vunpack.c.h.b16 %v2323
    %v2483 = vunpack.c.l.b16 %v2324
    %v2484 = vunpack.c.h.b16 %v2324
    %v2485 = vunpack.c.l.b16 %v2325
    %v2486 = vunpack.c.h.b16 %v2325
    %v2487 = vunpack.c.l.b16 %v2326
    %v2488 = vunpack.c.h.b16 %v2326
    %v2489 = vunpack.c.l.b16 %v2327
    %v2490 = vunpack.c.h.b16 %v2327
    %v2491 = vunpack.c.l.b16 %v2328
    %v2492 = vunpack.c.h.b16 %v2328
    %v2493 = vunpack.c.l.b16 %v2329
    %v2494 = vunpack.c.h.b16 %v2329
    %v2495 = vunpack.c.l.b16 %v2330
    %v2496 = vunpack.c.h.b16 %v2330
    %v2497 = vunpack.c.l.b16 %v2331
    %v2498 = vunpack.c.h.b16 %v2331
    %v2499 = vunpack.c.l.b16 %v2332
    %v2500 = vunpack.c.h.b16 %v2332
    %v2501 = vunpack.c.l.b16 %v2333
    %v2502 = vunpack.c.h.b16 %v2333
    %v2503 = vunpack.c.l.b16 %v2334
    %v2504 = vunpack.c.h.b16 %v2334
    %v2505 = vunpack.c.l.b16 %v2335
    %v2506 = vunpack.c.h.b16 %v2335
    %v2507 = vunpack.c.l.b16 %v2336
    %v2508 = vunpack.c.h.b16 %v2336
    %v2509 = vpack.c.b16 %v2447, %v2445
    %v2510 = vpack.c.b16 %v2448, %v2446
    %v2511 = vpack.c.b16 %v2451, %v2449
    %v2512 = vpack.c.b16 %v2452, %v2450
    %v2513 = vpack.c.b16 %v2455, %v2453
    %v2514 = vpack.c.b16 %v2456, %v2454
    %v2515 = vpack.c.b16 %v2459, %v2457
    %v2516 = vpack.c.b16 %v2460, %v2458
    %v2517 = vpack.c.b16 %v2463, %v2461
    %v2518 = vpack.c.b16 %v2464, %v2462
    %v2519 = vpack.c.b16 %v2467, %v2465
    %v2520 = vpack.c.b16 %v2468, %v2466
    %v2521 = vpack.c.b16 %v2471, %v2469
    %v2522 = vpack.c.b16 %v2472, %v2470
    %v2523 = vpack.c.b16 %v2475, %v2473
    %v2524 = vpack.c.b16 %v2476, %v2474
    %v2525 = vpack.c.b16 %v2479, %v2477
    %v2526 = vpack.c.b16 %v2480, %v2478
    %v2527 = vpack.c.b16 %v2483, %v2481
    %v2528 = vpack.c.b16 %v2484, %v2482
    %v2529 = vpack.c.b16 %v2487, %v2485
    %v2530 = vpack.c.b16 %v2488, %v2486
    %v2531 = vpack.c.b16 %v2491, %v2489
    %v2532 = vpack.c.b16 %v2492, %v2490
    %v2533 = vpack.c.b16 %v2495, %v2493
    %v2534 = vpack.c.b16 %v2496, %v2494
    %v2535 = vpack.c.b16 %v2499, %v2497
    %v2536 = vpack.c.b16 %v2500, %v2498
    %v2537 = vpack.c.b16 %v2503, %v2501
    %v2538 = vpack.c.b16 %v2504, %v2502
    %v2539 = vpack.c.b16 %v2507, %v2505
    %v2540 = vpack.c.b16 %v2508, %v2506
    %2573 = vmatprep.subr.bf16.mxu0 %v2510
    %2574 = vmatpush1.bf16.msra.mxu0 %v2509
    %2575 = vmatprep.subr.bf16.mxu0 %v2512
    %2576 = vmatpush1.bf16.msra.mxu0 %v2511
    %2577 = vmatprep.subr.bf16.mxu0 %v2514
    %2578 = vmatpush1.bf16.msra.mxu0 %v2513
    %2579 = vmatprep.subr.bf16.mxu0 %v2516
    %2580 = vmatpush1.bf16.msra.mxu0 %v2515
    %2581 = vmatprep.subr.bf16.mxu0 %v2518
    %2582 = vmatpush1.bf16.msra.mxu0 %v2517
    %2583 = vmatprep.subr.bf16.mxu0 %v2520
    %2584 = vmatpush1.bf16.msra.mxu0 %v2519
    %2585 = vmatprep.subr.bf16.mxu0 %v2522
    %2586 = vmatpush1.bf16.msra.mxu0 %v2521
    %2587 = vmatprep.subr.bf16.mxu0 %v2524
    %2588 = vmatpush1.bf16.msra.mxu0 %v2523
    %2589 = vmatprep.subr.bf16.mxu0 %v2526
    %2590 = vmatpush1.bf16.msra.mxu0 %v2525
    %2591 = vmatprep.subr.bf16.mxu0 %v2528
    %2592 = vmatpush1.bf16.msra.mxu0 %v2527
    %2593 = vmatprep.subr.bf16.mxu0 %v2530
    %2594 = vmatpush1.bf16.msra.mxu0 %v2529
    %2595 = vmatprep.subr.bf16.mxu0 %v2532
    %2596 = vmatpush1.bf16.msra.mxu0 %v2531
    %2597 = vmatprep.subr.bf16.mxu0 %v2534
    %2598 = vmatpush1.bf16.msra.mxu0 %v2533
    %2599 = vmatprep.subr.bf16.mxu0 %v2536
    %2600 = vmatpush1.bf16.msra.mxu0 %v2535
    %2601 = vmatprep.subr.bf16.mxu0 %v2538
    %2602 = vmatpush1.bf16.msra.mxu0 %v2537
    %2603 = vmatprep.subr.bf16.mxu0 %v2540
    %2604 = vmatpush1.bf16.msra.mxu0 %v2539
    %2605 = vmatprep.mubr.bf16.mxu0 %v2339
    %2606 = vmatmul.mubr.bf16.gmra.mrb[0].mxu0 %v2338
    %v2607 = vpop.f32.mrb[0].mxu0
    %v2608 = vadd.f32 %v2406, %v2607
    %v2609 = vpop.f32.mrb[0].mxu0
    %v2610 = vadd.f32 %v2410, %v2609
    %v2611 = vpop.f32.mrb[0].mxu0
    %v2612 = vadd.f32 %v2406, %v2611
    %v2613 = vpop.f32.mrb[0].mxu0
    %v2614 = vadd.f32 %v2410, %v2613
    %2615 = vmatprep.mubr.bf16.mxu0 %v2341
    %2616 = vmatmul.mubr.bf16.gmra.mrb[0].mxu0 %v2340
    %v2617 = vpop.f32.mrb[0].mxu0
    %v2618 = vadd.f32 %v2406, %v2617
    %v2619 = vpop.f32.mrb[0].mxu0
    %v2620 = vadd.f32 %v2410, %v2619
    %v2621 = vpop.f32.mrb[0].mxu0
    %v2622 = vadd.f32 %v2406, %v2621
    %v2623 = vpop.f32.mrb[0].mxu0
    %v2624 = vadd.f32 %v2410, %v2623
    %2625 = vmatprep.mubr.bf16.mxu0 %v2343
    %2626 = vmatmul.mubr.bf16.gmra.mrb[0].mxu0 %v2342
    %v2627 = vpop.f32.mrb[0].mxu0
    %v2628 = vadd.f32 %v2406, %v2627
    %v2629 = vpop.f32.mrb[0].mxu0
    %v2630 = vadd.f32 %v2410, %v2629
    %v2631 = vpop.f32.mrb[0].mxu0
    %v2632 = vadd.f32 %v2406, %v2631
    %v2633 = vpop.f32.mrb[0].mxu0
    %v2634 = vadd.f32 %v2410, %v2633
    %2635 = vmatprep.mubr.bf16.mxu0 %v2345
    %2636 = vmatmul.mubr.bf16.gmra.mrb[0].mxu0 %v2344
    %v2637 = vpop.f32.mrb[0].mxu0
    %v2638 = vadd.f32 %v2406, %v2637
    %v2639 = vpop.f32.mrb[0].mxu0
    %v2640 = vadd.f32 %v2410, %v2639
    %v2641 = vpop.f32.mrb[0].mxu0
    %v2642 = vadd.f32 %v2406, %v2641
    %v2643 = vpop.f32.mrb[0].mxu0
    %v2644 = vadd.f32 %v2410, %v2643
    %2645 = vmatprep.mubr.bf16.mxu0 %v2347
    %2646 = vmatmul.mubr.bf16.gmra.mrb[0].mxu0 %v2346
    %v2647 = vpop.f32.mrb[0].mxu0
    %v2648 = vadd.f32 %v2406, %v2647
    %v2649 = vpop.f32.mrb[0].mxu0
    %v2650 = vadd.f32 %v2410, %v2649
    %v2651 = vpop.f32.mrb[0].mxu0
    %v2652 = vadd.f32 %v2406, %v2651
    %v2653 = vpop.f32.mrb[0].mxu0
    %v2654 = vadd.f32 %v2410, %v2653
    %2655 = vmatprep.mubr.bf16.mxu0 %v2349
    %2656 = vmatmul.mubr.bf16.gmra.mrb[0].mxu0 %v2348
    %v2657 = vpop.f32.mrb[0].mxu0
    %v2658 = vadd.f32 %v2406, %v2657
    %v2659 = vpop.f32.mrb[0].mxu0
    %v2660 = vadd.f32 %v2410, %v2659
    %v2661 = vpop.f32.mrb[0].mxu0
    %v2662 = vadd.f32 %v2406, %v2661
    %v2663 = vpop.f32.mrb[0].mxu0
    %v2664 = vadd.f32 %v2410, %v2663
    %2665 = vmatprep.mubr.bf16.mxu0 %v2351
    %2666 = vmatmul.mubr.bf16.gmra.mrb[0].mxu0 %v2350
    %v2667 = vpop.f32.mrb[0].mxu0
    %v2668 = vadd.f32 %v2406, %v2667
    %v2669 = vpop.f32.mrb[0].mxu0
    %v2670 = vadd.f32 %v2410, %v2669
    %v2671 = vpop.f32.mrb[0].mxu0
    %v2672 = vadd.f32 %v2406, %v2671
    %v2673 = vpop.f32.mrb[0].mxu0
    %v2674 = vadd.f32 %v2410, %v2673
    %2675 = vmatprep.mubr.bf16.mxu0 %v2353
    %2676 = vmatmul.mubr.bf16.gmra.mrb[0].mxu0 %v2352
    %v2677 = vpop.f32.mrb[0].mxu0
    %v2678 = vadd.f32 %v2406, %v2677
    %v2679 = vpop.f32.mrb[0].mxu0
    %v2680 = vadd.f32 %v2410, %v2679
    %v2681 = vpop.f32.mrb[0].mxu0
    %v2682 = vadd.f32 %v2406, %v2681
    %v2683 = vpop.f32.mrb[0].mxu0
    %v2684 = vadd.f32 %v2410, %v2683
    %2685 = vmatprep.mubr.bf16.mxu0 %v2355
    %2686 = vmatmul.mubr.bf16.gmra.mrb[0].mxu0 %v2354
    %v2687 = vpop.f32.mrb[0].mxu0
    %v2688 = vadd.f32 %v2406, %v2687
    %v2689 = vpop.f32.mrb[0].mxu0
    %v2690 = vadd.f32 %v2410, %v2689
    %v2691 = vpop.f32.mrb[0].mxu0
    %v2692 = vadd.f32 %v2406, %v2691
    %v2693 = vpop.f32.mrb[0].mxu0
    %v2694 = vadd.f32 %v2410, %v2693
    %2695 = vmatprep.mubr.bf16.mxu0 %v2357
    %2696 = vmatmul.mubr.bf16.gmra.mrb[0].mxu0 %v2356
    %v2697 = vpop.f32.mrb[0].mxu0
    %v2698 = vadd.f32 %v2406, %v2697
    %v2699 = vpop.f32.mrb[0].mxu0
    %v2700 = vadd.f32 %v2410, %v2699
    %v2701 = vpop.f32.mrb[0].mxu0
    %v2702 = vadd.f32 %v2406, %v2701
    %v2703 = vpop.f32.mrb[0].mxu0
    %v2704 = vadd.f32 %v2410, %v2703
    %2705 = vmatprep.mubr.bf16.mxu0 %v2359
    %2706 = vmatmul.mubr.bf16.gmra.mrb[0].mxu0 %v2358
    %v2707 = vpop.f32.mrb[0].mxu0
    %v2708 = vadd.f32 %v2406, %v2707
    %v2709 = vpop.f32.mrb[0].mxu0
    %v2710 = vadd.f32 %v2410, %v2709
    %v2711 = vpop.f32.mrb[0].mxu0
    %v2712 = vadd.f32 %v2406, %v2711
    %v2713 = vpop.f32.mrb[0].mxu0
    %v2714 = vadd.f32 %v2410, %v2713
    %2715 = vmatprep.mubr.bf16.mxu0 %v2361
    %2716 = vmatmul.mubr.bf16.gmra.mrb[0].mxu0 %v2360
    %v2717 = vpop.f32.mrb[0].mxu0
    %v2718 = vadd.f32 %v2406, %v2717
    %v2719 = vpop.f32.mrb[0].mxu0
    %v2720 = vadd.f32 %v2410, %v2719
    %v2721 = vpop.f32.mrb[0].mxu0
    %v2722 = vadd.f32 %v2406, %v2721
    %v2723 = vpop.f32.mrb[0].mxu0
    %v2724 = vadd.f32 %v2410, %v2723
    %2725 = vmatprep.mubr.bf16.mxu0 %v2363
    %2726 = vmatmul.mubr.bf16.gmra.mrb[0].mxu0 %v2362
    %v2727 = vpop.f32.mrb[0].mxu0
    %v2728 = vadd.f32 %v2406, %v2727
    %v2729 = vpop.f32.mrb[0].mxu0
    %v2730 = vadd.f32 %v2410, %v2729
    %v2731 = vpop.f32.mrb[0].mxu0
    %v2732 = vadd.f32 %v2406, %v2731
    %v2733 = vpop.f32.mrb[0].mxu0
    %v2734 = vadd.f32 %v2410, %v2733
    %2735 = vmatprep.mubr.bf16.mxu0 %v2365
    %2736 = vmatmul.mubr.bf16.gmra.mrb[0].mxu0 %v2364
    %v2737 = vpop.f32.mrb[0].mxu0
    %v2738 = vadd.f32 %v2406, %v2737
    %v2739 = vpop.f32.mrb[0].mxu0
    %v2740 = vadd.f32 %v2410, %v2739
    %v2741 = vpop.f32.mrb[0].mxu0
    %v2742 = vadd.f32 %v2406, %v2741
    %v2743 = vpop.f32.mrb[0].mxu0
    %v2744 = vadd.f32 %v2410, %v2743
    %2745 = vmatprep.mubr.bf16.mxu0 %v2367
    %2746 = vmatmul.mubr.bf16.gmra.mrb[0].mxu0 %v2366
    %v2747 = vpop.f32.mrb[0].mxu0
    %v2748 = vadd.f32 %v2406, %v2747
    %v2749 = vpop.f32.mrb[0].mxu0
    %v2750 = vadd.f32 %v2410, %v2749
    %v2751 = vpop.f32.mrb[0].mxu0
    %v2752 = vadd.f32 %v2406, %v2751
    %v2753 = vpop.f32.mrb[0].mxu0
    %v2754 = vadd.f32 %v2410, %v2753
    %2755 = vmatprep.mubr.bf16.mxu0 %v2369
    %2756 = vmatmul.mubr.bf16.gmra.mrb[0].mxu0 %v2368
    %v2757 = vpop.f32.mrb[0].mxu0
    %v2758 = vadd.f32 %v2406, %v2757
    %v2759 = vpop.f32.mrb[0].mxu0
    %v2760 = vadd.f32 %v2410, %v2759
    %v2761 = vpop.f32.mrb[0].mxu0
    %v2762 = vadd.f32 %v2406, %v2761
    %v2763 = vpop.f32.mrb[0].mxu0
    %v2764 = vadd.f32 %v2410, %v2763
    %2765 = vmatprep.mubr.bf16.mxu0 %v2371
    %2766 = vmatmul.mubr.bf16.gmra.mrb[0].mxu0 %v2370
    %v2767 = vpop.f32.mrb[0].mxu0
    %v2768 = vadd.f32 %v2406, %v2767
    %v2769 = vpop.f32.mrb[0].mxu0
    %v2770 = vadd.f32 %v2410, %v2769
    %v2771 = vpop.f32.mrb[0].mxu0
    %v2772 = vadd.f32 %v2406, %v2771
    %v2773 = vpop.f32.mrb[0].mxu0
    %v2774 = vadd.f32 %v2410, %v2773
    %2775 = vmatprep.mubr.bf16.mxu0 %v2373
    %2776 = vmatmul.mubr.bf16.gmra.mrb[0].mxu0 %v2372
    %v2777 = vpop.f32.mrb[0].mxu0
    %v2778 = vadd.f32 %v2406, %v2777
    %v2779 = vpop.f32.mrb[0].mxu0
    %v2780 = vadd.f32 %v2410, %v2779
    %v2781 = vpop.f32.mrb[0].mxu0
    %v2782 = vadd.f32 %v2406, %v2781
    %v2783 = vpop.f32.mrb[0].mxu0
    %v2784 = vadd.f32 %v2410, %v2783
    %2785 = vmatprep.mubr.bf16.mxu0 %v2375
    %2786 = vmatmul.mubr.bf16.gmra.mrb[0].mxu0 %v2374
    %v2787 = vpop.f32.mrb[0].mxu0
    %v2788 = vadd.f32 %v2406, %v2787
    %v2789 = vpop.f32.mrb[0].mxu0
    %v2790 = vadd.f32 %v2410, %v2789
    %v2791 = vpop.f32.mrb[0].mxu0
    %v2792 = vadd.f32 %v2406, %v2791
    %v2793 = vpop.f32.mrb[0].mxu0
    %v2794 = vadd.f32 %v2410, %v2793
    %2795 = vmatprep.mubr.bf16.mxu0 %v2377
    %2796 = vmatmul.mubr.bf16.gmra.mrb[0].mxu0 %v2376
    %v2797 = vpop.f32.mrb[0].mxu0
    %v2798 = vadd.f32 %v2406, %v2797
    %v2799 = vpop.f32.mrb[0].mxu0
    %v2800 = vadd.f32 %v2410, %v2799
    %v2801 = vpop.f32.mrb[0].mxu0
    %v2802 = vadd.f32 %v2406, %v2801
    %v2803 = vpop.f32.mrb[0].mxu0
    %v2804 = vadd.f32 %v2410, %v2803
    %2805 = vmatprep.mubr.bf16.mxu0 %v2379
    %2806 = vmatmul.mubr.bf16.gmra.mrb[0].mxu0 %v2378
    %v2807 = vpop.f32.mrb[0].mxu0
    %v2808 = vadd.f32 %v2406, %v2807
    %v2809 = vpop.f32.mrb[0].mxu0
    %v2810 = vadd.f32 %v2410, %v2809
    %v2811 = vpop.f32.mrb[0].mxu0
    %v2812 = vadd.f32 %v2406, %v2811
    %v2813 = vpop.f32.mrb[0].mxu0
    %v2814 = vadd.f32 %v2410, %v2813
    %2815 = vmatprep.mubr.bf16.mxu0 %v2381
    %2816 = vmatmul.mubr.bf16.gmra.mrb[0].mxu0 %v2380
    %v2817 = vpop.f32.mrb[0].mxu0
    %v2818 = vadd.f32 %v2406, %v2817
    %v2819 = vpop.f32.mrb[0].mxu0
    %v2820 = vadd.f32 %v2410, %v2819
    %v2821 = vpop.f32.mrb[0].mxu0
    %v2822 = vadd.f32 %v2406, %v2821
    %v2823 = vpop.f32.mrb[0].mxu0
    %v2824 = vadd.f32 %v2410, %v2823
    %2825 = vmatprep.mubr.bf16.mxu0 %v2383
    %2826 = vmatmul.mubr.bf16.gmra.mrb[0].mxu0 %v2382
    %v2827 = vpop.f32.mrb[0].mxu0
    %v2828 = vadd.f32 %v2406, %v2827
    %v2829 = vpop.f32.mrb[0].mxu0
    %v2830 = vadd.f32 %v2410, %v2829
    %v2831 = vpop.f32.mrb[0].mxu0
    %v2832 = vadd.f32 %v2406, %v2831
    %v2833 = vpop.f32.mrb[0].mxu0
    %v2834 = vadd.f32 %v2410, %v2833
    %2835 = vmatprep.mubr.bf16.mxu0 %v2385
    %2836 = vmatmul.mubr.bf16.gmra.mrb[0].mxu0 %v2384
    %v2837 = vpop.f32.mrb[0].mxu0
    %v2838 = vadd.f32 %v2406, %v2837
    %v2839 = vpop.f32.mrb[0].mxu0
    %v2840 = vadd.f32 %v2410, %v2839
    %v2841 = vpop.f32.mrb[0].mxu0
    %v2842 = vadd.f32 %v2406, %v2841
    %v2843 = vpop.f32.mrb[0].mxu0
    %v2844 = vadd.f32 %v2410, %v2843
    %2845 = vmatprep.mubr.bf16.mxu0 %v2387
    %2846 = vmatmul.mubr.bf16.gmra.mrb[0].mxu0 %v2386
    %v2847 = vpop.f32.mrb[0].mxu0
    %v2848 = vadd.f32 %v2406, %v2847
    %v2849 = vpop.f32.mrb[0].mxu0
    %v2850 = vadd.f32 %v2410, %v2849
    %v2851 = vpop.f32.mrb[0].mxu0
    %v2852 = vadd.f32 %v2406, %v2851
    %v2853 = vpop.f32.mrb[0].mxu0
    %v2854 = vadd.f32 %v2410, %v2853
    %2855 = vmatprep.mubr.bf16.mxu0 %v2389
    %2856 = vmatmul.mubr.bf16.gmra.mrb[0].mxu0 %v2388
    %v2857 = vpop.f32.mrb[0].mxu0
    %v2858 = vadd.f32 %v2406, %v2857
    %v2859 = vpop.f32.mrb[0].mxu0
    %v2860 = vadd.f32 %v2410, %v2859
    %v2861 = vpop.f32.mrb[0].mxu0
    %v2862 = vadd.f32 %v2406, %v2861
    %v2863 = vpop.f32.mrb[0].mxu0
    %v2864 = vadd.f32 %v2410, %v2863
    %2865 = vmatprep.mubr.bf16.mxu0 %v2391
    %2866 = vmatmul.mubr.bf16.gmra.mrb[0].mxu0 %v2390
    %v2867 = vpop.f32.mrb[0].mxu0
    %v2868 = vadd.f32 %v2406, %v2867
    %v2869 = vpop.f32.mrb[0].mxu0
    %v2870 = vadd.f32 %v2410, %v2869
    %v2871 = vpop.f32.mrb[0].mxu0
    %v2872 = vadd.f32 %v2406, %v2871
    %v2873 = vpop.f32.mrb[0].mxu0
    %v2874 = vadd.f32 %v2410, %v2873
    %2875 = vmatprep.mubr.bf16.mxu0 %v2393
    %2876 = vmatmul.mubr.bf16.gmra.mrb[0].mxu0 %v2392
    %v2877 = vpop.f32.mrb[0].mxu0
    %v2878 = vadd.f32 %v2406, %v2877
    %v2879 = vpop.f32.mrb[0].mxu0
    %v2880 = vadd.f32 %v2410, %v2879
    %v2881 = vpop.f32.mrb[0].mxu0
    %v2882 = vadd.f32 %v2406, %v2881
    %v2883 = vpop.f32.mrb[0].mxu0
    %v2884 = vadd.f32 %v2410, %v2883
    %2885 = vmatprep.mubr.bf16.mxu0 %v2395
    %2886 = vmatmul.mubr.bf16.gmra.mrb[0].mxu0 %v2394
    %v2887 = vpop.f32.mrb[0].mxu0
    %v2888 = vadd.f32 %v2406, %v2887
    %v2889 = vpop.f32.mrb[0].mxu0
    %v2890 = vadd.f32 %v2410, %v2889
    %v2891 = vpop.f32.mrb[0].mxu0
    %v2892 = vadd.f32 %v2406, %v2891
    %v2893 = vpop.f32.mrb[0].mxu0
    %v2894 = vadd.f32 %v2410, %v2893
    %2895 = vmatprep.mubr.bf16.mxu0 %v2397
    %2896 = vmatmul.mubr.bf16.gmra.mrb[0].mxu0 %v2396
    %v2897 = vpop.f32.mrb[0].mxu0
    %v2898 = vadd.f32 %v2406, %v2897
    %v2899 = vpop.f32.mrb[0].mxu0
    %v2900 = vadd.f32 %v2410, %v2899
    %v2901 = vpop.f32.mrb[0].mxu0
    %v2902 = vadd.f32 %v2406, %v2901
    %v2903 = vpop.f32.mrb[0].mxu0
    %v2904 = vadd.f32 %v2410, %v2903
    %2905 = vmatprep.mubr.bf16.mxu0 %v2399
    %2906 = vmatmul.mubr.bf16.gmra.mrb[0].mxu0 %v2398
    %v2907 = vpop.f32.mrb[0].mxu0
    %v2908 = vadd.f32 %v2406, %v2907
    %v2909 = vpop.f32.mrb[0].mxu0
    %v2910 = vadd.f32 %v2410, %v2909
    %v2911 = vpop.f32.mrb[0].mxu0
    %v2912 = vadd.f32 %v2406, %v2911
    %v2913 = vpop.f32.mrb[0].mxu0
    %v2914 = vadd.f32 %v2410, %v2913
    %2915 = vmatprep.mubr.bf16.mxu0 %v2401
    %2916 = vmatmul.mubr.bf16.gmra.mrb[0].mxu0 %v2400
    %v2917 = vpop.f32.mrb[0].mxu0
    %v2918 = vadd.f32 %v2406, %v2917
    %v2919 = vpop.f32.mrb[0].mxu0
    %v2920 = vadd.f32 %v2410, %v2919
    %v2921 = vpop.f32.mrb[0].mxu0
    %v2922 = vadd.f32 %v2406, %v2921
    %v2923 = vpop.f32.mrb[0].mxu0
    %v2924 = vadd.f32 %v2410, %v2923
    %2925 = vdwg.mxu0
    %v2926 = vmax.f32 %v2608, 0.0
    %v2927 = vmax.f32 %v2610, 0.0
    %v2928 = vmax.f32 %v2612, 0.0
    %v2929 = vmax.f32 %v2614, 0.0
    %v2930 = vmax.f32 %v2618, 0.0
    %v2931 = vmax.f32 %v2620, 0.0
    %v2932 = vmax.f32 %v2622, 0.0
    %v2933 = vmax.f32 %v2624, 0.0
    %v2934 = vmax.f32 %v2628, 0.0
    %v2935 = vmax.f32 %v2630, 0.0
    %v2936 = vmax.f32 %v2632, 0.0
    %v2937 = vmax.f32 %v2634, 0.0
    %v2938 = vmax.f32 %v2638, 0.0
    %v2939 = vmax.f32 %v2640, 0.0
    %v2940 = vmax.f32 %v2642, 0.0
    %v2941 = vmax.f32 %v2644, 0.0
    %v2942 = vmax.f32 %v2648, 0.0
    %v2943 = vmax.f32 %v2650, 0.0
    %v2944 = vmax.f32 %v2652, 0.0
    %v2945 = vmax.f32 %v2654, 0.0
    %v2946 = vmax.f32 %v2658, 0.0
    %v2947 = vmax.f32 %v2660, 0.0
    %v2948 = vmax.f32 %v2662, 0.0
    %v2949 = vmax.f32 %v2664, 0.0
    %v2950 = vmax.f32 %v2668, 0.0
    %v2951 = vmax.f32 %v2670, 0.0
    %v2952 = vmax.f32 %v2672, 0.0
    %v2953 = vmax.f32 %v2674, 0.0
    %v2954 = vmax.f32 %v2678, 0.0
    %v2955 = vmax.f32 %v2680, 0.0
    %v2956 = vmax.f32 %v2682, 0.0
    %v2957 = vmax.f32 %v2684, 0.0
    %v2958 = vmax.f32 %v2688, 0.0
    %v2959 = vmax.f32 %v2690, 0.0
    %v2960 = vmax.f32 %v2692, 0.0
    %v2961 = vmax.f32 %v2694, 0.0
    %v2962 = vmax.f32 %v2698, 0.0
    %v2963 = vmax.f32 %v2700, 0.0
    %v2964 = vmax.f32 %v2702, 0.0
    %v2965 = vmax.f32 %v2704, 0.0
    %v2966 = vmax.f32 %v2708, 0.0
    %v2967 = vmax.f32 %v2710, 0.0
    %v2968 = vmax.f32 %v2712, 0.0
    %v2969 = vmax.f32 %v2714, 0.0
    %v2970 = vmax.f32 %v2718, 0.0
    %v2971 = vmax.f32 %v2720, 0.0
    %v2972 = vmax.f32 %v2722, 0.0
    %v2973 = vmax.f32 %v2724, 0.0
    %v2974 = vmax.f32 %v2728, 0.0
    %v2975 = vmax.f32 %v2730, 0.0
    %v2976 = vmax.f32 %v2732, 0.0
    %v2977 = vmax.f32 %v2734, 0.0
    %v2978 = vmax.f32 %v2738, 0.0
    %v2979 = vmax.f32 %v2740, 0.0
    %v2980 = vmax.f32 %v2742, 0.0
    %v2981 = vmax.f32 %v2744, 0.0
    %v2982 = vmax.f32 %v2748, 0.0
    %v2983 = vmax.f32 %v2750, 0.0
    %v2984 = vmax.f32 %v2752, 0.0
    %v2985 = vmax.f32 %v2754, 0.0
    %v2986 = vmax.f32 %v2758, 0.0
    %v2987 = vmax.f32 %v2760, 0.0
    %v2988 = vmax.f32 %v2762, 0.0
    %v2989 = vmax.f32 %v2764, 0.0
    %v2990 = vmax.f32 %v2768, 0.0
    %v2991 = vmax.f32 %v2770, 0.0
    %v2992 = vmax.f32 %v2772, 0.0
    %v2993 = vmax.f32 %v2774, 0.0
    %v2994 = vmax.f32 %v2778, 0.0
    %v2995 = vmax.f32 %v2780, 0.0
    %v2996 = vmax.f32 %v2782, 0.0
    %v2997 = vmax.f32 %v2784, 0.0
    %v2998 = vmax.f32 %v2788, 0.0
    %v2999 = vmax.f32 %v2790, 0.0
    %v3000 = vmax.f32 %v2792, 0.0
    %v3001 = vmax.f32 %v2794, 0.0
    %v3002 = vmax.f32 %v2798, 0.0
    %v3003 = vmax.f32 %v2800, 0.0
    %v3004 = vmax.f32 %v2802, 0.0
    %v3005 = vmax.f32 %v2804, 0.0
    %v3006 = vmax.f32 %v2808, 0.0
    %v3007 = vmax.f32 %v2810, 0.0
    %v3008 = vmax.f32 %v2812, 0.0
    %v3009 = vmax.f32 %v2814, 0.0
    %v3010 = vmax.f32 %v2818, 0.0
    %v3011 = vmax.f32 %v2820, 0.0
    %v3012 = vmax.f32 %v2822, 0.0
    %v3013 = vmax.f32 %v2824, 0.0
    %v3014 = vmax.f32 %v2828, 0.0
    %v3015 = vmax.f32 %v2830, 0.0
    %v3016 = vmax.f32 %v2832, 0.0
    %v3017 = vmax.f32 %v2834, 0.0
    %v3018 = vmax.f32 %v2838, 0.0
    %v3019 = vmax.f32 %v2840, 0.0
    %v3020 = vmax.f32 %v2842, 0.0
    %v3021 = vmax.f32 %v2844, 0.0
    %v3022 = vmax.f32 %v2848, 0.0
    %v3023 = vmax.f32 %v2850, 0.0
    %v3024 = vmax.f32 %v2852, 0.0
    %v3025 = vmax.f32 %v2854, 0.0
    %v3026 = vmax.f32 %v2858, 0.0
    %v3027 = vmax.f32 %v2860, 0.0
    %v3028 = vmax.f32 %v2862, 0.0
    %v3029 = vmax.f32 %v2864, 0.0
    %v3030 = vmax.f32 %v2868, 0.0
    %v3031 = vmax.f32 %v2870, 0.0
    %v3032 = vmax.f32 %v2872, 0.0
    %v3033 = vmax.f32 %v2874, 0.0
    %v3034 = vmax.f32 %v2878, 0.0
    %v3035 = vmax.f32 %v2880, 0.0
    %v3036 = vmax.f32 %v2882, 0.0
    %v3037 = vmax.f32 %v2884, 0.0
    %v3038 = vmax.f32 %v2888, 0.0
    %v3039 = vmax.f32 %v2890, 0.0
    %v3040 = vmax.f32 %v2892, 0.0
    %v3041 = vmax.f32 %v2894, 0.0
    %v3042 = vmax.f32 %v2898, 0.0
    %v3043 = vmax.f32 %v2900, 0.0
    %v3044 = vmax.f32 %v2902, 0.0
    %v3045 = vmax.f32 %v2904, 0.0
    %v3046 = vmax.f32 %v2908, 0.0
    %v3047 = vmax.f32 %v2910, 0.0
    %v3048 = vmax.f32 %v2912, 0.0
    %v3049 = vmax.f32 %v2914, 0.0
    %v3050 = vmax.f32 %v2918, 0.0
    %v3051 = vmax.f32 %v2920, 0.0
    %v3052 = vmax.f32 %v2922, 0.0
    %v3053 = vmax.f32 %v2924, 0.0
    %v3054 = vld [vmem:[#allocation11] sm:$0xf]
    %v3055 = vld [vmem:[#allocation11 + $0x4] sm:$0xf]
    %v3056 = vld [vmem:[#allocation11 + $0x8] sm:$0xf]
    %v3057 = vld [vmem:[#allocation11 + $0xc] sm:$0xf]
    %v3058 = vld [vmem:[#allocation11 + $0x10] sm:$0xf]
    %v3059 = vld [vmem:[#allocation11 + $0x14] sm:$0xf]
    %v3060 = vld [vmem:[#allocation11 + $0x18] sm:$0xf]
    %v3061 = vld [vmem:[#allocation11 + $0x1c] sm:$0xf]
    %v3062 = vld [vmem:[#allocation11 + $0x20] sm:$0xf]
    %v3063 = vld [vmem:[#allocation11 + $0x24] sm:$0xf]
    %v3064 = vld [vmem:[#allocation11 + $0x28] sm:$0xf]
    %v3065 = vld [vmem:[#allocation11 + $0x2c] sm:$0xf]
    %v3066 = vld [vmem:[#allocation11 + $0x30] sm:$0xf]
    %v3067 = vld [vmem:[#allocation11 + $0x34] sm:$0xf]
    %v3068 = vld [vmem:[#allocation11 + $0x38] sm:$0xf]
    %v3069 = vld [vmem:[#allocation11 + $0x3c] sm:$0xf]
    %v3070 = vld [vmem:[#allocation11 + $0x40] sm:$0xf]
    %v3071 = vld [vmem:[#allocation11 + $0x44] sm:$0xf]
    %v3072 = vld [vmem:[#allocation11 + $0x48] sm:$0xf]
    %v3073 = vld [vmem:[#allocation11 + $0x4c] sm:$0xf]
    %v3074 = vld [vmem:[#allocation11 + $0x50] sm:$0xf]
    %v3075 = vld [vmem:[#allocation11 + $0x54] sm:$0xf]
    %v3076 = vld [vmem:[#allocation11 + $0x58] sm:$0xf]
    %v3077 = vld [vmem:[#allocation11 + $0x5c] sm:$0xf]
    %v3078 = vld [vmem:[#allocation11 + $0x60] sm:$0xf]
    %v3079 = vld [vmem:[#allocation11 + $0x64] sm:$0xf]
    %v3080 = vld [vmem:[#allocation11 + $0x68] sm:$0xf]
    %v3081 = vld [vmem:[#allocation11 + $0x6c] sm:$0xf]
    %v3082 = vld [vmem:[#allocation11 + $0x70] sm:$0xf]
    %v3083 = vld [vmem:[#allocation11 + $0x74] sm:$0xf]
    %v3084 = vld [vmem:[#allocation11 + $0x78] sm:$0xf]
    %v3085 = vld [vmem:[#allocation11 + $0x7c] sm:$0xf]
    %v3086 = vld [vmem:[%s10] sm:$0x1]
    %v3087 = vpack.c.bf16 %v2928, %v2926
    %v3088 = vpack.c.bf16 %v2929, %v2927
    %v3089 = vpack.c.bf16 %v2932, %v2930
    %v3090 = vpack.c.bf16 %v2933, %v2931
    %v3091 = vpack.c.bf16 %v2936, %v2934
    %v3092 = vpack.c.bf16 %v2937, %v2935
    %v3093 = vpack.c.bf16 %v2940, %v2938
    %v3094 = vpack.c.bf16 %v2941, %v2939
    %v3095 = vpack.c.bf16 %v2944, %v2942
    %v3096 = vpack.c.bf16 %v2945, %v2943
    %v3097 = vpack.c.bf16 %v2948, %v2946
    %v3098 = vpack.c.bf16 %v2949, %v2947
    %v3099 = vpack.c.bf16 %v2952, %v2950
    %v3100 = vpack.c.bf16 %v2953, %v2951
    %v3101 = vpack.c.bf16 %v2956, %v2954
    %v3102 = vpack.c.bf16 %v2957, %v2955
    %v3103 = vpack.c.bf16 %v2960, %v2958
    %v3104 = vpack.c.bf16 %v2961, %v2959
    %v3105 = vpack.c.bf16 %v2964, %v2962
    %v3106 = vpack.c.bf16 %v2965, %v2963
    %v3107 = vpack.c.bf16 %v2968, %v2966
    %v3108 = vpack.c.bf16 %v2969, %v2967
    %v3109 = vpack.c.bf16 %v2972, %v2970
    %v3110 = vpack.c.bf16 %v2973, %v2971
    %v3111 = vpack.c.bf16 %v2976, %v2974
    %v3112 = vpack.c.bf16 %v2977, %v2975
    %v3113 = vpack.c.bf16 %v2980, %v2978
    %v3114 = vpack.c.bf16 %v2981, %v2979
    %v3115 = vpack.c.bf16 %v2984, %v2982
    %v3116 = vpack.c.bf16 %v2985, %v2983
    %v3117 = vpack.c.bf16 %v2988, %v2986
    %v3118 = vpack.c.bf16 %v2989, %v2987
    %v3119 = vpack.c.bf16 %v2992, %v2990
    %v3120 = vpack.c.bf16 %v2993, %v2991
    %v3121 = vpack.c.bf16 %v2996, %v2994
    %v3122 = vpack.c.bf16 %v2997, %v2995
    %v3123 = vpack.c.bf16 %v3000, %v2998
    %v3124 = vpack.c.bf16 %v3001, %v2999
    %v3125 = vpack.c.bf16 %v3004, %v3002
    %v3126 = vpack.c.bf16 %v3005, %v3003
    %v3127 = vpack.c.bf16 %v3008, %v3006
    %v3128 = vpack.c.bf16 %v3009, %v3007
    %v3129 = vpack.c.bf16 %v3012, %v3010
    %v3130 = vpack.c.bf16 %v3013, %v3011
    %v3131 = vpack.c.bf16 %v3016, %v3014
    %v3132 = vpack.c.bf16 %v3017, %v3015
    %v3133 = vpack.c.bf16 %v3020, %v3018
    %v3134 = vpack.c.bf16 %v3021, %v3019
    %v3135 = vpack.c.bf16 %v3024, %v3022
    %v3136 = vpack.c.bf16 %v3025, %v3023
    %v3137 = vpack.c.bf16 %v3028, %v3026
    %v3138 = vpack.c.bf16 %v3029, %v3027
    %v3139 = vpack.c.bf16 %v3032, %v3030
    %v3140 = vpack.c.bf16 %v3033, %v3031
    %v3141 = vpack.c.bf16 %v3036, %v3034
    %v3142 = vpack.c.bf16 %v3037, %v3035
    %v3143 = vpack.c.bf16 %v3040, %v3038
    %v3144 = vpack.c.bf16 %v3041, %v3039
    %v3145 = vpack.c.bf16 %v3044, %v3042
    %v3146 = vpack.c.bf16 %v3045, %v3043
    %v3147 = vpack.c.bf16 %v3048, %v3046
    %v3148 = vpack.c.bf16 %v3049, %v3047
    %v3149 = vpack.c.bf16 %v3052, %v3050
    %v3150 = vpack.c.bf16 %v3053, %v3051
    %v3152 = vlaneseq
    %v3153 = vshrl.u32 %v3152, 7
    %v3154 = vsub.s32 0, %v3153
    %v3155 = vrot.slane %v3086, %v3154
    %v3189 = vunpack.c.l.b16 %v3054
    %v3190 = vunpack.c.l.b16 %v3055
    %v3191 = vunpack.c.l.b16 %v3056
    %v3192 = vunpack.c.l.b16 %v3057
    %v3193 = vunpack.c.l.b16 %v3058
    %v3194 = vunpack.c.l.b16 %v3059
    %v3195 = vunpack.c.l.b16 %v3060
    %v3196 = vunpack.c.l.b16 %v3061
    %v3197 = vunpack.c.l.b16 %v3062
    %v3198 = vunpack.c.l.b16 %v3063
    %v3199 = vunpack.c.l.b16 %v3064
    %v3200 = vunpack.c.l.b16 %v3065
    %v3201 = vunpack.c.l.b16 %v3066
    %v3202 = vunpack.c.l.b16 %v3067
    %v3203 = vunpack.c.l.b16 %v3068
    %v3204 = vunpack.c.l.b16 %v3069
    %v3205 = vunpack.c.l.b16 %v3070
    %v3206 = vunpack.c.l.b16 %v3071
    %v3207 = vunpack.c.l.b16 %v3072
    %v3208 = vunpack.c.l.b16 %v3073
    %v3209 = vunpack.c.l.b16 %v3074
    %v3210 = vunpack.c.l.b16 %v3075
    %v3211 = vunpack.c.l.b16 %v3076
    %v3212 = vunpack.c.l.b16 %v3077
    %v3213 = vunpack.c.l.b16 %v3078
    %v3214 = vunpack.c.l.b16 %v3079
    %v3215 = vunpack.c.l.b16 %v3080
    %v3216 = vunpack.c.l.b16 %v3081
    %v3217 = vunpack.c.l.b16 %v3082
    %v3218 = vunpack.c.l.b16 %v3083
    %v3219 = vunpack.c.l.b16 %v3084
    %v3220 = vunpack.c.l.b16 %v3085
    %v3221 = vpack.c.b16 %v3190, %v3189
    %v3222 = vpack.c.b16 %v3192, %v3191
    %v3223 = vpack.c.b16 %v3194, %v3193
    %v3224 = vpack.c.b16 %v3196, %v3195
    %v3225 = vpack.c.b16 %v3198, %v3197
    %v3226 = vpack.c.b16 %v3200, %v3199
    %v3227 = vpack.c.b16 %v3202, %v3201
    %v3228 = vpack.c.b16 %v3204, %v3203
    %v3229 = vpack.c.b16 %v3206, %v3205
    %v3230 = vpack.c.b16 %v3208, %v3207
    %v3231 = vpack.c.b16 %v3210, %v3209
    %v3232 = vpack.c.b16 %v3212, %v3211
    %v3233 = vpack.c.b16 %v3214, %v3213
    %v3234 = vpack.c.b16 %v3216, %v3215
    %v3235 = vpack.c.b16 %v3218, %v3217
    %v3236 = vpack.c.b16 %v3220, %v3219
    %3253 = vmatprep.subr.bf16.mxu0 0
    %3254 = vmatpush1.bf16.msra.mxu0 %v3221
    %3255 = vmatprep.subr.bf16.mxu0 0
    %3256 = vmatpush1.bf16.msra.mxu0 %v3222
    %3257 = vmatprep.subr.bf16.mxu0 0
    %3258 = vmatpush1.bf16.msra.mxu0 %v3223
    %3259 = vmatprep.subr.bf16.mxu0 0
    %3260 = vmatpush1.bf16.msra.mxu0 %v3224
    %3261 = vmatprep.subr.bf16.mxu0 0
    %3262 = vmatpush1.bf16.msra.mxu0 %v3225
    %3263 = vmatprep.subr.bf16.mxu0 0
    %3264 = vmatpush1.bf16.msra.mxu0 %v3226
    %3265 = vmatprep.subr.bf16.mxu0 0
    %3266 = vmatpush1.bf16.msra.mxu0 %v3227
    %3267 = vmatprep.subr.bf16.mxu0 0
    %3268 = vmatpush1.bf16.msra.mxu0 %v3228
    %3269 = vmatprep.subr.bf16.mxu0 0
    %3270 = vmatpush1.bf16.msra.mxu0 %v3229
    %3271 = vmatprep.subr.bf16.mxu0 0
    %3272 = vmatpush1.bf16.msra.mxu0 %v3230
    %3273 = vmatprep.subr.bf16.mxu0 0
    %3274 = vmatpush1.bf16.msra.mxu0 %v3231
    %3275 = vmatprep.subr.bf16.mxu0 0
    %3276 = vmatpush1.bf16.msra.mxu0 %v3232
    %3277 = vmatprep.subr.bf16.mxu0 0
    %3278 = vmatpush1.bf16.msra.mxu0 %v3233
    %3279 = vmatprep.subr.bf16.mxu0 0
    %3280 = vmatpush1.bf16.msra.mxu0 %v3234
    %3281 = vmatprep.subr.bf16.mxu0 0
    %3282 = vmatpush1.bf16.msra.mxu0 %v3235
    %3283 = vmatprep.subr.bf16.mxu0 0
    %3284 = vmatpush1.bf16.msra.mxu0 %v3236
    %3285 = vmatprep.mubr.bf16.mxu0 %v3088
    %3286 = vmatmul.mubr.bf16.gmra.mrb[0].mxu0 %v3087
    %v3287 = vpop.f32.mrb[0].mxu0
    %v3288 = vadd.f32 %v3155, %v3287
    %v3289 = vpop.f32.mrb[0].mxu0
    %v3290 = vpop.f32.mrb[0].mxu0
    %v3291 = vadd.f32 %v3155, %v3290
    %v3292 = vpop.f32.mrb[0].mxu0
    %3293 = vmatprep.mubr.bf16.mxu0 %v3090
    %3294 = vmatmul.mubr.bf16.gmra.mrb[0].mxu0 %v3089
    %v3295 = vpop.f32.mrb[0].mxu0
    %v3296 = vadd.f32 %v3155, %v3295
    %v3297 = vpop.f32.mrb[0].mxu0
    %v3298 = vpop.f32.mrb[0].mxu0
    %v3299 = vadd.f32 %v3155, %v3298
    %v3300 = vpop.f32.mrb[0].mxu0
    %3301 = vmatprep.mubr.bf16.mxu0 %v3092
    %3302 = vmatmul.mubr.bf16.gmra.mrb[0].mxu0 %v3091
    %v3303 = vpop.f32.mrb[0].mxu0
    %v3304 = vadd.f32 %v3155, %v3303
    %v3305 = vpop.f32.mrb[0].mxu0
    %v3306 = vpop.f32.mrb[0].mxu0
    %v3307 = vadd.f32 %v3155, %v3306
    %v3308 = vpop.f32.mrb[0].mxu0
    %3309 = vmatprep.mubr.bf16.mxu0 %v3094
    %3310 = vmatmul.mubr.bf16.gmra.mrb[0].mxu0 %v3093
    %v3311 = vpop.f32.mrb[0].mxu0
    %v3312 = vadd.f32 %v3155, %v3311
    %v3313 = vpop.f32.mrb[0].mxu0
    %v3314 = vpop.f32.mrb[0].mxu0
    %v3315 = vadd.f32 %v3155, %v3314
    %v3316 = vpop.f32.mrb[0].mxu0
    %3317 = vmatprep.mubr.bf16.mxu0 %v3096
    %3318 = vmatmul.mubr.bf16.gmra.mrb[0].mxu0 %v3095
    %v3319 = vpop.f32.mrb[0].mxu0
    %v3320 = vadd.f32 %v3155, %v3319
    %v3321 = vpop.f32.mrb[0].mxu0
    %v3322 = vpop.f32.mrb[0].mxu0
    %v3323 = vadd.f32 %v3155, %v3322
    %v3324 = vpop.f32.mrb[0].mxu0
    %3325 = vmatprep.mubr.bf16.mxu0 %v3098
    %3326 = vmatmul.mubr.bf16.gmra.mrb[0].mxu0 %v3097
    %v3327 = vpop.f32.mrb[0].mxu0
    %v3328 = vadd.f32 %v3155, %v3327
    %v3329 = vpop.f32.mrb[0].mxu0
    %v3330 = vpop.f32.mrb[0].mxu0
    %v3331 = vadd.f32 %v3155, %v3330
    %v3332 = vpop.f32.mrb[0].mxu0
    %3333 = vmatprep.mubr.bf16.mxu0 %v3100
    %3334 = vmatmul.mubr.bf16.gmra.mrb[0].mxu0 %v3099
    %v3335 = vpop.f32.mrb[0].mxu0
    %v3336 = vadd.f32 %v3155, %v3335
    %v3337 = vpop.f32.mrb[0].mxu0
    %v3338 = vpop.f32.mrb[0].mxu0
    %v3339 = vadd.f32 %v3155, %v3338
    %v3340 = vpop.f32.mrb[0].mxu0
    %3341 = vmatprep.mubr.bf16.mxu0 %v3102
    %3342 = vmatmul.mubr.bf16.gmra.mrb[0].mxu0 %v3101
    %v3343 = vpop.f32.mrb[0].mxu0
    %v3344 = vadd.f32 %v3155, %v3343
    %v3345 = vpop.f32.mrb[0].mxu0
    %v3346 = vpop.f32.mrb[0].mxu0
    %v3347 = vadd.f32 %v3155, %v3346
    %v3348 = vpop.f32.mrb[0].mxu0
    %3349 = vmatprep.mubr.bf16.mxu0 %v3104
    %3350 = vmatmul.mubr.bf16.gmra.mrb[0].mxu0 %v3103
    %v3351 = vpop.f32.mrb[0].mxu0
    %v3352 = vadd.f32 %v3155, %v3351
    %v3353 = vpop.f32.mrb[0].mxu0
    %v3354 = vpop.f32.mrb[0].mxu0
    %v3355 = vadd.f32 %v3155, %v3354
    %v3356 = vpop.f32.mrb[0].mxu0
    %3357 = vmatprep.mubr.bf16.mxu0 %v3106
    %3358 = vmatmul.mubr.bf16.gmra.mrb[0].mxu0 %v3105
    %v3359 = vpop.f32.mrb[0].mxu0
    %v3360 = vadd.f32 %v3155, %v3359
    %v3361 = vpop.f32.mrb[0].mxu0
    %v3362 = vpop.f32.mrb[0].mxu0
    %v3363 = vadd.f32 %v3155, %v3362
    %v3364 = vpop.f32.mrb[0].mxu0
    %3365 = vmatprep.mubr.bf16.mxu0 %v3108
    %3366 = vmatmul.mubr.bf16.gmra.mrb[0].mxu0 %v3107
    %v3367 = vpop.f32.mrb[0].mxu0
    %v3368 = vadd.f32 %v3155, %v3367
    %v3369 = vpop.f32.mrb[0].mxu0
    %v3370 = vpop.f32.mrb[0].mxu0
    %v3371 = vadd.f32 %v3155, %v3370
    %v3372 = vpop.f32.mrb[0].mxu0
    %3373 = vmatprep.mubr.bf16.mxu0 %v3110
    %3374 = vmatmul.mubr.bf16.gmra.mrb[0].mxu0 %v3109
    %v3375 = vpop.f32.mrb[0].mxu0
    %v3376 = vadd.f32 %v3155, %v3375
    %v3377 = vpop.f32.mrb[0].mxu0
    %v3378 = vpop.f32.mrb[0].mxu0
    %v3379 = vadd.f32 %v3155, %v3378
    %v3380 = vpop.f32.mrb[0].mxu0
    %3381 = vmatprep.mubr.bf16.mxu0 %v3112
    %3382 = vmatmul.mubr.bf16.gmra.mrb[0].mxu0 %v3111
    %v3383 = vpop.f32.mrb[0].mxu0
    %v3384 = vadd.f32 %v3155, %v3383
    %v3385 = vpop.f32.mrb[0].mxu0
    %v3386 = vpop.f32.mrb[0].mxu0
    %v3387 = vadd.f32 %v3155, %v3386
    %v3388 = vpop.f32.mrb[0].mxu0
    %3389 = vmatprep.mubr.bf16.mxu0 %v3114
    %3390 = vmatmul.mubr.bf16.gmra.mrb[0].mxu0 %v3113
    %v3391 = vpop.f32.mrb[0].mxu0
    %v3392 = vadd.f32 %v3155, %v3391
    %v3393 = vpop.f32.mrb[0].mxu0
    %v3394 = vpop.f32.mrb[0].mxu0
    %v3395 = vadd.f32 %v3155, %v3394
    %v3396 = vpop.f32.mrb[0].mxu0
    %3397 = vmatprep.mubr.bf16.mxu0 %v3116
    %3398 = vmatmul.mubr.bf16.gmra.mrb[0].mxu0 %v3115
    %v3399 = vpop.f32.mrb[0].mxu0
    %v3400 = vadd.f32 %v3155, %v3399
    %v3401 = vpop.f32.mrb[0].mxu0
    %v3402 = vpop.f32.mrb[0].mxu0
    %v3403 = vadd.f32 %v3155, %v3402
    %v3404 = vpop.f32.mrb[0].mxu0
    %3405 = vmatprep.mubr.bf16.mxu0 %v3118
    %3406 = vmatmul.mubr.bf16.gmra.mrb[0].mxu0 %v3117
    %v3407 = vpop.f32.mrb[0].mxu0
    %v3408 = vadd.f32 %v3155, %v3407
    %v3409 = vpop.f32.mrb[0].mxu0
    %v3410 = vpop.f32.mrb[0].mxu0
    %v3411 = vadd.f32 %v3155, %v3410
    %v3412 = vpop.f32.mrb[0].mxu0
    %3413 = vmatprep.mubr.bf16.mxu0 %v3120
    %3414 = vmatmul.mubr.bf16.gmra.mrb[0].mxu0 %v3119
    %v3415 = vpop.f32.mrb[0].mxu0
    %v3416 = vadd.f32 %v3155, %v3415
    %v3417 = vpop.f32.mrb[0].mxu0
    %v3418 = vpop.f32.mrb[0].mxu0
    %v3419 = vadd.f32 %v3155, %v3418
    %v3420 = vpop.f32.mrb[0].mxu0
    %3421 = vmatprep.mubr.bf16.mxu0 %v3122
    %3422 = vmatmul.mubr.bf16.gmra.mrb[0].mxu0 %v3121
    %v3423 = vpop.f32.mrb[0].mxu0
    %v3424 = vadd.f32 %v3155, %v3423
    %v3425 = vpop.f32.mrb[0].mxu0
    %v3426 = vpop.f32.mrb[0].mxu0
    %v3427 = vadd.f32 %v3155, %v3426
    %v3428 = vpop.f32.mrb[0].mxu0
    %3429 = vmatprep.mubr.bf16.mxu0 %v3124
    %3430 = vmatmul.mubr.bf16.gmra.mrb[0].mxu0 %v3123
    %v3431 = vpop.f32.mrb[0].mxu0
    %v3432 = vadd.f32 %v3155, %v3431
    %v3433 = vpop.f32.mrb[0].mxu0
    %v3434 = vpop.f32.mrb[0].mxu0
    %v3435 = vadd.f32 %v3155, %v3434
    %v3436 = vpop.f32.mrb[0].mxu0
    %3437 = vmatprep.mubr.bf16.mxu0 %v3126
    %3438 = vmatmul.mubr.bf16.gmra.mrb[0].mxu0 %v3125
    %v3439 = vpop.f32.mrb[0].mxu0
    %v3440 = vadd.f32 %v3155, %v3439
    %v3441 = vpop.f32.mrb[0].mxu0
    %v3442 = vpop.f32.mrb[0].mxu0
    %v3443 = vadd.f32 %v3155, %v3442
    %v3444 = vpop.f32.mrb[0].mxu0
    %3445 = vmatprep.mubr.bf16.mxu0 %v3128
    %3446 = vmatmul.mubr.bf16.gmra.mrb[0].mxu0 %v3127
    %v3447 = vpop.f32.mrb[0].mxu0
    %v3448 = vadd.f32 %v3155, %v3447
    %v3449 = vpop.f32.mrb[0].mxu0
    %v3450 = vpop.f32.mrb[0].mxu0
    %v3451 = vadd.f32 %v3155, %v3450
    %v3452 = vpop.f32.mrb[0].mxu0
    %3453 = vmatprep.mubr.bf16.mxu0 %v3130
    %3454 = vmatmul.mubr.bf16.gmra.mrb[0].mxu0 %v3129
    %v3455 = vpop.f32.mrb[0].mxu0
    %v3456 = vadd.f32 %v3155, %v3455
    %v3457 = vpop.f32.mrb[0].mxu0
    %v3458 = vpop.f32.mrb[0].mxu0
    %v3459 = vadd.f32 %v3155, %v3458
    %v3460 = vpop.f32.mrb[0].mxu0
    %3461 = vmatprep.mubr.bf16.mxu0 %v3132
    %3462 = vmatmul.mubr.bf16.gmra.mrb[0].mxu0 %v3131
    %v3463 = vpop.f32.mrb[0].mxu0
    %v3464 = vadd.f32 %v3155, %v3463
    %v3465 = vpop.f32.mrb[0].mxu0
    %v3466 = vpop.f32.mrb[0].mxu0
    %v3467 = vadd.f32 %v3155, %v3466
    %v3468 = vpop.f32.mrb[0].mxu0
    %3469 = vmatprep.mubr.bf16.mxu0 %v3134
    %3470 = vmatmul.mubr.bf16.gmra.mrb[0].mxu0 %v3133
    %v3471 = vpop.f32.mrb[0].mxu0
    %v3472 = vadd.f32 %v3155, %v3471
    %v3473 = vpop.f32.mrb[0].mxu0
    %v3474 = vpop.f32.mrb[0].mxu0
    %v3475 = vadd.f32 %v3155, %v3474
    %v3476 = vpop.f32.mrb[0].mxu0
    %3477 = vmatprep.mubr.bf16.mxu0 %v3136
    %3478 = vmatmul.mubr.bf16.gmra.mrb[0].mxu0 %v3135
    %v3479 = vpop.f32.mrb[0].mxu0
    %v3480 = vadd.f32 %v3155, %v3479
    %v3481 = vpop.f32.mrb[0].mxu0
    %v3482 = vpop.f32.mrb[0].mxu0
    %v3483 = vadd.f32 %v3155, %v3482
    %v3484 = vpop.f32.mrb[0].mxu0
    %3485 = vmatprep.mubr.bf16.mxu0 %v3138
    %3486 = vmatmul.mubr.bf16.gmra.mrb[0].mxu0 %v3137
    %v3487 = vpop.f32.mrb[0].mxu0
    %v3488 = vadd.f32 %v3155, %v3487
    %v3489 = vpop.f32.mrb[0].mxu0
    %v3490 = vpop.f32.mrb[0].mxu0
    %v3491 = vadd.f32 %v3155, %v3490
    %v3492 = vpop.f32.mrb[0].mxu0
    %3493 = vmatprep.mubr.bf16.mxu0 %v3140
    %3494 = vmatmul.mubr.bf16.gmra.mrb[0].mxu0 %v3139
    %v3495 = vpop.f32.mrb[0].mxu0
    %v3496 = vadd.f32 %v3155, %v3495
    %v3497 = vpop.f32.mrb[0].mxu0
    %v3498 = vpop.f32.mrb[0].mxu0
    %v3499 = vadd.f32 %v3155, %v3498
    %v3500 = vpop.f32.mrb[0].mxu0
    %3501 = vmatprep.mubr.bf16.mxu0 %v3142
    %3502 = vmatmul.mubr.bf16.gmra.mrb[0].mxu0 %v3141
    %v3503 = vpop.f32.mrb[0].mxu0
    %v3504 = vadd.f32 %v3155, %v3503
    %v3505 = vpop.f32.mrb[0].mxu0
    %v3506 = vpop.f32.mrb[0].mxu0
    %v3507 = vadd.f32 %v3155, %v3506
    %v3508 = vpop.f32.mrb[0].mxu0
    %3509 = vmatprep.mubr.bf16.mxu0 %v3144
    %3510 = vmatmul.mubr.bf16.gmra.mrb[0].mxu0 %v3143
    %v3511 = vpop.f32.mrb[0].mxu0
    %v3512 = vadd.f32 %v3155, %v3511
    %v3513 = vpop.f32.mrb[0].mxu0
    %v3514 = vpop.f32.mrb[0].mxu0
    %v3515 = vadd.f32 %v3155, %v3514
    %v3516 = vpop.f32.mrb[0].mxu0
    %3517 = vmatprep.mubr.bf16.mxu0 %v3146
    %3518 = vmatmul.mubr.bf16.gmra.mrb[0].mxu0 %v3145
    %v3519 = vpop.f32.mrb[0].mxu0
    %v3520 = vadd.f32 %v3155, %v3519
    %v3521 = vpop.f32.mrb[0].mxu0
    %v3522 = vpop.f32.mrb[0].mxu0
    %v3523 = vadd.f32 %v3155, %v3522
    %v3524 = vpop.f32.mrb[0].mxu0
    %3525 = vmatprep.mubr.bf16.mxu0 %v3148
    %3526 = vmatmul.mubr.bf16.gmra.mrb[0].mxu0 %v3147
    %v3527 = vpop.f32.mrb[0].mxu0
    %v3528 = vadd.f32 %v3155, %v3527
    %v3529 = vpop.f32.mrb[0].mxu0
    %v3530 = vpop.f32.mrb[0].mxu0
    %v3531 = vadd.f32 %v3155, %v3530
    %v3532 = vpop.f32.mrb[0].mxu0
    %3533 = vmatprep.mubr.bf16.mxu0 %v3150
    %3534 = vmatmul.mubr.bf16.gmra.mrb[0].mxu0 %v3149
    %v3535 = vpop.f32.mrb[0].mxu0
    %v3536 = vadd.f32 %v3155, %v3535
    %v3537 = vpop.f32.mrb[0].mxu0
    %v3538 = vpop.f32.mrb[0].mxu0
    %v3539 = vadd.f32 %v3155, %v3538
    %v3540 = vpop.f32.mrb[0].mxu0
    %3541 = vdwg.mxu0
    %v3542 = vpack.c.bf16 %v3291, %v3288
    %v3543 = vpack.c.bf16 %v3299, %v3296
    %v3544 = vpack.c.bf16 %v3307, %v3304
    %v3545 = vpack.c.bf16 %v3315, %v3312
    %v3546 = vpack.c.bf16 %v3323, %v3320
    %v3547 = vpack.c.bf16 %v3331, %v3328
    %v3548 = vpack.c.bf16 %v3339, %v3336
    %v3549 = vpack.c.bf16 %v3347, %v3344
    %v3550 = vpack.c.bf16 %v3355, %v3352
    %v3551 = vpack.c.bf16 %v3363, %v3360
    %v3552 = vpack.c.bf16 %v3371, %v3368
    %v3553 = vpack.c.bf16 %v3379, %v3376
    %v3554 = vpack.c.bf16 %v3387, %v3384
    %v3555 = vpack.c.bf16 %v3395, %v3392
    %v3556 = vpack.c.bf16 %v3403, %v3400
    %v3557 = vpack.c.bf16 %v3411, %v3408
    %v3558 = vpack.c.bf16 %v3419, %v3416
    %v3559 = vpack.c.bf16 %v3427, %v3424
    %v3560 = vpack.c.bf16 %v3435, %v3432
    %v3561 = vpack.c.bf16 %v3443, %v3440
    %v3562 = vpack.c.bf16 %v3451, %v3448
    %v3563 = vpack.c.bf16 %v3459, %v3456
    %v3564 = vpack.c.bf16 %v3467, %v3464
    %v3565 = vpack.c.bf16 %v3475, %v3472
    %v3566 = vpack.c.bf16 %v3483, %v3480
    %v3567 = vpack.c.bf16 %v3491, %v3488
    %v3568 = vpack.c.bf16 %v3499, %v3496
    %v3569 = vpack.c.bf16 %v3507, %v3504
    %v3570 = vpack.c.bf16 %v3515, %v3512
    %v3571 = vpack.c.bf16 %v3523, %v3520
    %v3572 = vpack.c.bf16 %v3531, %v3528
    %v3573 = vpack.c.bf16 %v3539, %v3536
    %v3606 = vunpack.c.l.b16 %v3542
    %v3607 = vunpack.c.h.b16 %v3542
    %v3608 = vunpack.c.l.b16 %v3543
    %v3609 = vunpack.c.h.b16 %v3543
    %v3610 = vunpack.c.l.b16 %v3544
    %v3611 = vunpack.c.h.b16 %v3544
    %v3612 = vunpack.c.l.b16 %v3545
    %v3613 = vunpack.c.h.b16 %v3545
    %v3614 = vunpack.c.l.b16 %v3546
    %v3615 = vunpack.c.h.b16 %v3546
    %v3616 = vunpack.c.l.b16 %v3547
    %v3617 = vunpack.c.h.b16 %v3547
    %v3618 = vunpack.c.l.b16 %v3548
    %v3619 = vunpack.c.h.b16 %v3548
    %v3620 = vunpack.c.l.b16 %v3549
    %v3621 = vunpack.c.h.b16 %v3549
    %v3622 = vunpack.c.l.b16 %v3550
    %v3623 = vunpack.c.h.b16 %v3550
    %v3624 = vunpack.c.l.b16 %v3551
    %v3625 = vunpack.c.h.b16 %v3551
    %v3626 = vunpack.c.l.b16 %v3552
    %v3627 = vunpack.c.h.b16 %v3552
    %v3628 = vunpack.c.l.b16 %v3553
    %v3629 = vunpack.c.h.b16 %v3553
    %v3630 = vunpack.c.l.b16 %v3554
    %v3631 = vunpack.c.h.b16 %v3554
    %v3632 = vunpack.c.l.b16 %v3555
    %v3633 = vunpack.c.h.b16 %v3555
    %v3634 = vunpack.c.l.b16 %v3556
    %v3635 = vunpack.c.h.b16 %v3556
    %v3636 = vunpack.c.l.b16 %v3557
    %v3637 = vunpack.c.h.b16 %v3557
    %v3638 = vunpack.c.l.b16 %v3558
    %v3639 = vunpack.c.h.b16 %v3558
    %v3640 = vunpack.c.l.b16 %v3559
    %v3641 = vunpack.c.h.b16 %v3559
    %v3642 = vunpack.c.l.b16 %v3560
    %v3643 = vunpack.c.h.b16 %v3560
    %v3644 = vunpack.c.l.b16 %v3561
    %v3645 = vunpack.c.h.b16 %v3561
    %v3646 = vunpack.c.l.b16 %v3562
    %v3647 = vunpack.c.h.b16 %v3562
    %v3648 = vunpack.c.l.b16 %v3563
    %v3649 = vunpack.c.h.b16 %v3563
    %v3650 = vunpack.c.l.b16 %v3564
    %v3651 = vunpack.c.h.b16 %v3564
    %v3652 = vunpack.c.l.b16 %v3565
    %v3653 = vunpack.c.h.b16 %v3565
    %v3654 = vunpack.c.l.b16 %v3566
    %v3655 = vunpack.c.h.b16 %v3566
    %v3656 = vunpack.c.l.b16 %v3567
    %v3657 = vunpack.c.h.b16 %v3567
    %v3658 = vunpack.c.l.b16 %v3568
    %v3659 = vunpack.c.h.b16 %v3568
    %v3660 = vunpack.c.l.b16 %v3569
    %v3661 = vunpack.c.h.b16 %v3569
    %v3662 = vunpack.c.l.b16 %v3570
    %v3663 = vunpack.c.h.b16 %v3570
    %v3664 = vunpack.c.l.b16 %v3571
    %v3665 = vunpack.c.h.b16 %v3571
    %v3666 = vunpack.c.l.b16 %v3572
    %v3667 = vunpack.c.h.b16 %v3572
    %v3668 = vunpack.c.l.b16 %v3573
    %v3669 = vunpack.c.h.b16 %v3573
    %v3670 = vpack.c.b16 %v3606, %v3606
    %v3671 = vpack.c.b16 %v3607, %v3607
    %v3672 = vpack.c.b16 %v3608, %v3608
    %v3673 = vpack.c.b16 %v3609, %v3609
    %v3674 = vpack.c.b16 %v3610, %v3610
    %v3675 = vpack.c.b16 %v3611, %v3611
    %v3676 = vpack.c.b16 %v3612, %v3612
    %v3677 = vpack.c.b16 %v3613, %v3613
    %v3678 = vpack.c.b16 %v3614, %v3614
    %v3679 = vpack.c.b16 %v3615, %v3615
    %v3680 = vpack.c.b16 %v3616, %v3616
    %v3681 = vpack.c.b16 %v3617, %v3617
    %v3682 = vpack.c.b16 %v3618, %v3618
    %v3683 = vpack.c.b16 %v3619, %v3619
    %v3684 = vpack.c.b16 %v3620, %v3620
    %v3685 = vpack.c.b16 %v3621, %v3621
    %v3686 = vpack.c.b16 %v3622, %v3622
    %v3687 = vpack.c.b16 %v3623, %v3623
    %v3688 = vpack.c.b16 %v3624, %v3624
    %v3689 = vpack.c.b16 %v3625, %v3625
    %v3690 = vpack.c.b16 %v3626, %v3626
    %v3691 = vpack.c.b16 %v3627, %v3627
    %v3692 = vpack.c.b16 %v3628, %v3628
    %v3693 = vpack.c.b16 %v3629, %v3629
    %v3694 = vpack.c.b16 %v3630, %v3630
    %v3695 = vpack.c.b16 %v3631, %v3631
    %v3696 = vpack.c.b16 %v3632, %v3632
    %v3697 = vpack.c.b16 %v3633, %v3633
    %v3698 = vpack.c.b16 %v3634, %v3634
    %v3699 = vpack.c.b16 %v3635, %v3635
    %v3700 = vpack.c.b16 %v3636, %v3636
    %v3701 = vpack.c.b16 %v3637, %v3637
    %v3702 = vpack.c.b16 %v3638, %v3638
    %v3703 = vpack.c.b16 %v3639, %v3639
    %v3704 = vpack.c.b16 %v3640, %v3640
    %v3705 = vpack.c.b16 %v3641, %v3641
    %v3706 = vpack.c.b16 %v3642, %v3642
    %v3707 = vpack.c.b16 %v3643, %v3643
    %v3708 = vpack.c.b16 %v3644, %v3644
    %v3709 = vpack.c.b16 %v3645, %v3645
    %v3710 = vpack.c.b16 %v3646, %v3646
    %v3711 = vpack.c.b16 %v3647, %v3647
    %v3712 = vpack.c.b16 %v3648, %v3648
    %v3713 = vpack.c.b16 %v3649, %v3649
    %v3714 = vpack.c.b16 %v3650, %v3650
    %v3715 = vpack.c.b16 %v3651, %v3651
    %v3716 = vpack.c.b16 %v3652, %v3652
    %v3717 = vpack.c.b16 %v3653, %v3653
    %v3718 = vpack.c.b16 %v3654, %v3654
    %v3719 = vpack.c.b16 %v3655, %v3655
    %v3720 = vpack.c.b16 %v3656, %v3656
    %v3721 = vpack.c.b16 %v3657, %v3657
    %v3722 = vpack.c.b16 %v3658, %v3658
    %v3723 = vpack.c.b16 %v3659, %v3659
    %v3724 = vpack.c.b16 %v3660, %v3660
    %v3725 = vpack.c.b16 %v3661, %v3661
    %v3726 = vpack.c.b16 %v3662, %v3662
    %v3727 = vpack.c.b16 %v3663, %v3663
    %v3728 = vpack.c.b16 %v3664, %v3664
    %v3729 = vpack.c.b16 %v3665, %v3665
    %v3730 = vpack.c.b16 %v3666, %v3666
    %v3731 = vpack.c.b16 %v3667, %v3667
    %v3732 = vpack.c.b16 %v3668, %v3668
    %v3733 = vpack.c.b16 %v3669, %v3669
    %3798 = vst [vmem:[#allocation13] sm:$0xf] %v3670
    %3799 = vst [vmem:[#allocation13 + $0x4] sm:$0xf] %v3671
    %3800 = vst [vmem:[#allocation13 + $0x8] sm:$0xf] %v3672
    %3801 = vst [vmem:[#allocation13 + $0xc] sm:$0xf] %v3673
    %3802 = vst [vmem:[#allocation13 + $0x10] sm:$0xf] %v3674
    %3803 = vst [vmem:[#allocation13 + $0x14] sm:$0xf] %v3675
    %3804 = vst [vmem:[#allocation13 + $0x18] sm:$0xf] %v3676
    %3805 = vst [vmem:[#allocation13 + $0x1c] sm:$0xf] %v3677
    %3806 = vst [vmem:[#allocation13 + $0x20] sm:$0xf] %v3678
    %3807 = vst [vmem:[#allocation13 + $0x24] sm:$0xf] %v3679
    %3808 = vst [vmem:[#allocation13 + $0x28] sm:$0xf] %v3680
    %3809 = vst [vmem:[#allocation13 + $0x2c] sm:$0xf] %v3681
    %3810 = vst [vmem:[#allocation13 + $0x30] sm:$0xf] %v3682
    %3811 = vst [vmem:[#allocation13 + $0x34] sm:$0xf] %v3683
    %3812 = vst [vmem:[#allocation13 + $0x38] sm:$0xf] %v3684
    %3813 = vst [vmem:[#allocation13 + $0x3c] sm:$0xf] %v3685
    %3814 = vst [vmem:[#allocation13 + $0x40] sm:$0xf] %v3686
    %3815 = vst [vmem:[#allocation13 + $0x44] sm:$0xf] %v3687
    %3816 = vst [vmem:[#allocation13 + $0x48] sm:$0xf] %v3688
    %3817 = vst [vmem:[#allocation13 + $0x4c] sm:$0xf] %v3689
    %3818 = vst [vmem:[#allocation13 + $0x50] sm:$0xf] %v3690
    %3819 = vst [vmem:[#allocation13 + $0x54] sm:$0xf] %v3691
    %3820 = vst [vmem:[#allocation13 + $0x58] sm:$0xf] %v3692
    %3821 = vst [vmem:[#allocation13 + $0x5c] sm:$0xf] %v3693
    %3822 = vst [vmem:[#allocation13 + $0x60] sm:$0xf] %v3694
    %3823 = vst [vmem:[#allocation13 + $0x64] sm:$0xf] %v3695
    %3824 = vst [vmem:[#allocation13 + $0x68] sm:$0xf] %v3696
    %3825 = vst [vmem:[#allocation13 + $0x6c] sm:$0xf] %v3697
    %3826 = vst [vmem:[#allocation13 + $0x70] sm:$0xf] %v3698
    %3827 = vst [vmem:[#allocation13 + $0x74] sm:$0xf] %v3699
    %3828 = vst [vmem:[#allocation13 + $0x78] sm:$0xf] %v3700
    %3829 = vst [vmem:[#allocation13 + $0x7c] sm:$0xf] %v3701
    %3830 = vst [vmem:[#allocation13 + $0x80] sm:$0xf] %v3702
    %3831 = vst [vmem:[#allocation13 + $0x84] sm:$0xf] %v3703
    %3832 = vst [vmem:[#allocation13 + $0x88] sm:$0xf] %v3704
    %3833 = vst [vmem:[#allocation13 + $0x8c] sm:$0xf] %v3705
    %3834 = vst [vmem:[#allocation13 + $0x90] sm:$0xf] %v3706
    %3835 = vst [vmem:[#allocation13 + $0x94] sm:$0xf] %v3707
    %3836 = vst [vmem:[#allocation13 + $0x98] sm:$0xf] %v3708
    %3837 = vst [vmem:[#allocation13 + $0x9c] sm:$0xf] %v3709
    %3838 = vst [vmem:[#allocation13 + $0xa0] sm:$0xf] %v3710
    %3839 = vst [vmem:[#allocation13 + $0xa4] sm:$0xf] %v3711
    %3840 = vst [vmem:[#allocation13 + $0xa8] sm:$0xf] %v3712
    %3841 = vst [vmem:[#allocation13 + $0xac] sm:$0xf] %v3713
    %3842 = vst [vmem:[#allocation13 + $0xb0] sm:$0xf] %v3714
    %3843 = vst [vmem:[#allocation13 + $0xb4] sm:$0xf] %v3715
    %3844 = vst [vmem:[#allocation13 + $0xb8] sm:$0xf] %v3716
    %3845 = vst [vmem:[#allocation13 + $0xbc] sm:$0xf] %v3717
    %3846 = vst [vmem:[#allocation13 + $0xc0] sm:$0xf] %v3718
    %3847 = vst [vmem:[#allocation13 + $0xc4] sm:$0xf] %v3719
    %3848 = vst [vmem:[#allocation13 + $0xc8] sm:$0xf] %v3720
    %3849 = vst [vmem:[#allocation13 + $0xcc] sm:$0xf] %v3721
    %3850 = vst [vmem:[#allocation13 + $0xd0] sm:$0xf] %v3722
    %3851 = vst [vmem:[#allocation13 + $0xd4] sm:$0xf] %v3723
    %3852 = vst [vmem:[#allocation13 + $0xd8] sm:$0xf] %v3724
    %3853 = vst [vmem:[#allocation13 + $0xdc] sm:$0xf] %v3725
    %3854 = vst [vmem:[#allocation13 + $0xe0] sm:$0xf] %v3726
    %3855 = vst [vmem:[#allocation13 + $0xe4] sm:$0xf] %v3727
    %3856 = vst [vmem:[#allocation13 + $0xe8] sm:$0xf] %v3728
    %3857 = vst [vmem:[#allocation13 + $0xec] sm:$0xf] %v3729
    %3858 = vst [vmem:[#allocation13 + $0xf0] sm:$0xf] %v3730
    %3859 = vst [vmem:[#allocation13 + $0xf4] sm:$0xf] %v3731
    %3860 = vst [vmem:[#allocation13 + $0xf8] sm:$0xf] %v3732
    %3861 = vst [vmem:[#allocation13 + $0xfc] sm:$0xf] %v3733
    // Predicated region
    $region70: #{tpu_custom_call.1} parent=1 // pred_check
      _
    $region71: #{tpu_custom_call.1} parent=1 // pred_check_branch
      %3863 = sbr.rel (0) target = $region73
    $region72: #{tpu_custom_call.1} parent=1 // pred_region
      %s3865 = ssub.s32 4096, 4096
      %3866 = vsyncadd [#allocation4], %s3865
      %s3867 = sshll.u32 [#allocation13], 4
      %s3868 = int_to_ptr.vmem [resolvable:$true] %s3867
      %3873 = dma.vmem_to_hbm [thread:$0]  %s3868, 4096, %s11, [#allocation4], 64, 64, 4
    $region73: #{tpu_custom_call.1} parent=1 // pred_fallthru
      _
    // Predicated region
    $region74: #{tpu_custom_call.1} parent=1 // pred_check
      _
    $region75: #{tpu_custom_call.1} parent=1 // pred_check_branch
      %3875 = sbr.rel (0) target = $region77
    $region76: #{tpu_custom_call.1} parent=1 // pred_region
      %3876 = dma.done [#allocation4], 4096
    $region77: #{tpu_custom_call.1} parent=1 // pred_fallthru
      _
    %3877 = vsyncpa [#allocation3], 1
    %3878 = vsyncpa [#allocation6], 1
    %3879 = vsyncpa [#allocation9], 1
    %3880 = vsyncpa [#allocation12], 1
    %3881 = vsyncpa [#allocation4], 1

</llo_original>
